<compile_context>
chip_gen: v5e
topology: v5e:2x2
jax: 0.10.0
libtpu: 0.0.40
codegen_flags: <defaults>
</compile_context>

<pallas_src>
import jax
import jax.numpy as jnp
from jax.experimental import pallas as pl
from jax.experimental.pallas import tpu as pltpu

EPS = 1e-5      # nn.BatchNorm2d default eps
LANES = 128     # TPU lane width; channels are padded to this


def _round_up(a, b):
    return ((a + b - 1) // b) * b


def restnet_basic_block(x_nchw, params, stride=1, compute_dtype=jnp.bfloat16):
    """relu( x + bn2(conv2(relu(bn1(conv1(x))))) ), training-mode BN."""
    assert stride == 1, "residual add (x + output) requires stride=1"
    N, C, H, W = x_nchw.shape
    assert C <= LANES, "TODO(synk): channel tiling for C > 128"
    Cp = LANES                          # lane-dense channel padding
    Hp = H + 2                          # zero-padded rows (conv padding=1)
    Wp_pad = _round_up(W + 2, 8)        # 8-aligned flattened row stride
    R = Hp * Wp_pad                     # flat rows per image (incl. halo)
    PAD = _round_up(Wp_pad + 1, 8)      # 8-aligned halo extension rows
    Rext = PAD + R + PAD
    CNT = float(N * H * W)              # BN population count (biased stats)
    inv_cnt = 1.0 / CNT
    cdt = compute_dtype

    # ------------- wrapper-side layout prep (cheap XLA ops) -------------------
    x = jnp.transpose(x_nchw, (0, 2, 3, 1))                       # NCHW -> NHWC
    x = jnp.pad(x, ((0, 0), (1, 1), (1, Wp_pad - W - 1), (0, Cp - C)))
    xflat = x.reshape(N, R, Cp).astype(jnp.float32)               # (N, R, Cp)
    # extra zero rows above/below so every 3x3 tap is an in-bounds row slice
    xext = jnp.pad(xflat, ((0, 0), (PAD, PAD), (0, 0)))           # (N, Rext, Cp)

    def prep_w(w_oihw):
        w = jnp.transpose(w_oihw, (2, 3, 1, 0))                   # (3,3,Cin,Cout)
        w = jnp.pad(w, ((0, 0), (0, 0), (0, Cp - C), (0, Cp - C)))
        return w.reshape(9, Cp, Cp).astype(cdt)                   # per-tap weights

    w1, w2 = prep_w(params["W1"]), prep_w(params["W2"])
    # NOTE: conv biases ("bc1"/"bc2") are intentionally dropped: training-mode
    # BN subtracts the batch mean, which cancels a per-channel bias exactly.
    vec = lambda v: jnp.pad(v.astype(jnp.float32), (0, Cp - C)).reshape(1, Cp)
    g1, b1 = vec(params["g1"]), vec(params["beta1"])
    g2, b2 = vec(params["g2"]), vec(params["beta2"])

    # lane-dense interior mask (1 = real pixel, 0 = halo row / pad column)
    yy, xx = jnp.meshgrid(jnp.arange(Hp), jnp.arange(Wp_pad), indexing="ij")
    mask2d = ((yy >= 1) & (yy <= H) & (xx >= 1) & (xx <= W)).astype(jnp.float32)
    mask = jnp.broadcast_to(mask2d.reshape(R, 1), (R, Cp))        # (R, Cp)

    # -------------------------------- kernels ---------------------------------
    def conv3x3(load_row_slice, w_ref, acc_ref):
        # nine (R,Cp)x(Cp,Cp) MXU matmuls accumulated in an f32 VMEM scratch.
        # dx==1 (center-column) taps are 8-aligned row slices; dx=+-1 are
        # static 1-row-offset slices of an f32 buffer.
        for t in range(9):
            dy, dx = divmod(t, 3)
            off = PAD + (dy - 1) * Wp_pad + (dx - 1)
            lhs = load_row_slice(off).astype(cdt)
            contrib = jnp.dot(lhs, w_ref[t], preferred_element_type=jnp.float32)
            if t == 0:
                acc_ref[...] = contrib
            else:
                acc_ref[...] += contrib
        return acc_ref[...]

    def write_stats(stats_ref, y):
        # per-image one-pass batch statistics (sum, sum of squares)
        stats_ref[0, 0:1, :] = jnp.sum(y, axis=0, keepdims=True)
        stats_ref[0, 1:2, :] = jnp.sum(y * y, axis=0, keepdims=True)

    # kernel A: conv1 + per-image (sum, sum^2) partial stats
    def conv1_kernel(x_ref, w_ref, mask_ref, y_ref, stats_ref, acc_ref):
        y = conv3x3(lambda off: x_ref[0, off:off + R, :], w_ref, acc_ref)
        y = y * mask_ref[...]            # zero halo rows -> exact masked stats
        y_ref[0] = y.astype(y_ref.dtype)
        write_stats(stats_ref, y)

    # kernel B: bn1 + relu + conv2 + per-image (sum, sum^2) partial stats
    def conv2_kernel(y1_ref, s1_ref, g1_ref, b1_ref, w_ref, mask_ref,
                     y2_ref, stats_ref, pext_ref, acc_ref):
        # halo-extension rows must be zero (never NaN) before the row slices;
        # zeroed every step (cheap) so the grid axis can be fully parallel.
        pext_ref[0:PAD, :] = jnp.zeros((PAD, Cp), jnp.float32)
        pext_ref[PAD + R:PAD + R + PAD, :] = jnp.zeros((PAD, Cp), jnp.float32)

        mean = s1_ref[0:1, :] * inv_cnt
        var = s1_ref[1:2, :] * inv_cnt - mean * mean       # E[y^2] - mean^2
        scale = jax.lax.rsqrt(var + EPS) * g1_ref[...]
        shift = b1_ref[...] - mean * scale
        h = jnp.maximum(y1_ref[0].astype(jnp.float32) * scale + shift, 0.0)
        pext_ref[PAD:PAD + R, :] = h * mask_ref[...]

        y = conv3x3(lambda off: pext_ref[off:off + R, :], w_ref, acc_ref)
        y = y * mask_ref[...]
        y2_ref[0] = y.astype(y2_ref.dtype)
        write_stats(stats_ref, y)

    # kernel C: bn2 + residual add + relu (reads the un-extended x slab)
    def bn_add_kernel(x_ref, y2_ref, s2_ref, g2_ref, b2_ref, out_ref):
        mean = s2_ref[0:1, :] * inv_cnt
        var = s2_ref[1:2, :] * inv_cnt - mean * mean
        scale = jax.lax.rsqrt(var + EPS) * g2_ref[...]
        shift = b2_ref[...] - mean * scale
        out_ref[0] = jnp.maximum(
            x_ref[0] + y2_ref[0].astype(jnp.float32) * scale + shift,
            0.0).astype(out_ref.dtype)

    # ----------------------------- pallas calls --------------------------------
    img_ext = pl.BlockSpec((1, Rext, Cp), lambda n: (n, 0, 0))
    img = pl.BlockSpec((1, R, Cp), lambda n: (n, 0, 0))
    per_img_stats = pl.BlockSpec((1, 2, Cp), lambda n: (n, 0, 0))
    fix2 = lambda r, c: pl.BlockSpec((r, c), lambda n: (0, 0))
    w_spec = pl.BlockSpec((9, Cp, Cp), lambda n: (0, 0, 0))

    # derive the VMEM budget from the actual per-step working set (headroom x2,
    # clamped to 40 MiB to stay inside v7x's 64 MiB physical VMEM)
    isz = jnp.dtype(cdt).itemsize
    est = (2 * Rext * Cp * 4          # extended input block, double-buffered
           + 4 * R * Cp * isz         # y1/y2 blocks, double-buffered
           + 2 * R * Cp * 4           # x / out f32 blocks (kernel C)
           + 9 * Cp * Cp * isz        # resident per-tap conv weights
           + R * Cp * 4               # resident lane-dense interior mask
           + Rext * Cp * 4            # pext scratch (kernel B)
           + R * Cp * 4               # f32 conv accumulator scratch
           + 16 * Cp * 4)             # stats / BN vectors
    vmem_lim = int(min(max(2 * est, 8 * 1024 * 1024), 40 * 1024 * 1024))
    cparams = pltpu.CompilerParams(dimension_semantics=("parallel",),
                                   vmem_limit_bytes=vmem_lim)

    y1, s1n = pl.pallas_call(
        conv1_kernel,
        grid=(N,),
        in_specs=[img_ext, w_spec, fix2(R, Cp)],
        out_specs=[img, per_img_stats],
        out_shape=(jax.ShapeDtypeStruct((N, R, Cp), cdt),
                   jax.ShapeDtypeStruct((N, 2, Cp), jnp.float32)),
        scratch_shapes=[pltpu.VMEM((R, Cp), jnp.float32)],
        compiler_params=cparams,
    )(xext, w1, mask)
    s1 = jnp.sum(s1n, axis=0)          # (2, Cp) reduced batch stats for bn1

    y2, s2n = pl.pallas_call(
        conv2_kernel,
        grid=(N,),
        in_specs=[img, fix2(2, Cp), fix2(1, Cp), fix2(1, Cp),
                  w_spec, fix2(R, Cp)],
        out_specs=[img, per_img_stats],
        out_shape=(jax.ShapeDtypeStruct((N, R, Cp), cdt),
                   jax.ShapeDtypeStruct((N, 2, Cp), jnp.float32)),
        scratch_shapes=[pltpu.VMEM((Rext, Cp), jnp.float32),
                        pltpu.VMEM((R, Cp), jnp.float32)],
        compiler_params=cparams,
    )(y1, s1, g1, b1, w2, mask)
    s2 = jnp.sum(s2n, axis=0)          # (2, Cp) reduced batch stats for bn2

    out_flat = pl.pallas_call(
        bn_add_kernel,
        grid=(N,),
        in_specs=[img, img, fix2(2, Cp), fix2(1, Cp), fix2(1, Cp)],
        out_specs=img,
        out_shape=jax.ShapeDtypeStruct((N, R, Cp), x_nchw.dtype),
        compiler_params=cparams,
    )(xflat, y2, s2, g2, b2)

    # crop halo rows/cols + padded channels, back to NCHW
    out = out_flat.reshape(N, Hp, Wp_pad, Cp)[:, 1:H + 1, 1:W + 1, :C]
    return jnp.transpose(out, (0, 3, 1, 2))


def reference(x_nchw, p):
    # pure-JAX reference of the PyTorch forward (training-mode BN, with biases)
    def conv(x, w, b):
        y = jax.lax.conv_general_dilated(
            x, w, window_strides=(1, 1), padding=((1, 1), (1, 1)),
            dimension_numbers=("NCHW", "OIHW", "NCHW"))
        return y + b[None, :, None, None]

    def bn(y, g, beta):
        mean = y.mean(axis=(0, 2, 3), keepdims=True)
        var = ((y - mean) ** 2).mean(axis=(0, 2, 3), keepdims=True)
        return (y - mean) / jnp.sqrt(var + EPS) * g[None, :, None, None] \
               + beta[None, :, None, None]

    h = jax.nn.relu(bn(conv(x_nchw, p["W1"], p["bc1"]), p["g1"], p["beta1"]))
    h = bn(conv(h, p["W2"], p["bc2"]), p["g2"], p["beta2"])
    return jax.nn.relu(x_nchw + h)


if __name__ == "__main__":
    N, C, H, W = 2, 8, 16, 16        # in_channels == out_channels, stride=1
    key = jax.random.PRNGKey(0)
    kx, k1, k2, kb1, kb2, kg1, kg2, ke1, ke2 = jax.random.split(key, 9)

    x = jax.random.normal(kx, (N, C, H, W), jnp.float32)
    params = {
        # conv weights / biases in PyTorch OIHW layout
        "W1": 0.1 * jax.random.normal(k1, (C, C, 3, 3), jnp.float32),
        "bc1": 0.05 * jax.random.normal(kb1, (C,), jnp.float32),
        "W2": 0.1 * jax.random.normal(k2, (C, C, 3, 3), jnp.float32),
        "bc2": 0.05 * jax.random.normal(kb2, (C,), jnp.float32),
        # non-trivial BN affine params to exercise the full scale/shift path
        "g1": 1.0 + 0.1 * jax.random.normal(kg1, (C,), jnp.float32),
        "beta1": 0.1 * jax.random.normal(ke1, (C,), jnp.float32),
        "g2": 1.0 + 0.1 * jax.random.normal(kg2, (C,), jnp.float32),
        "beta2": 0.1 * jax.random.normal(ke2, (C,), jnp.float32),
    }

    ref = reference(x, params)

    # default bf16 MXU-operand / bf16-intermediate path (v5e/v6e/v7x bf16 MXU)
    out = jax.block_until_ready(restnet_basic_block(x, params, stride=1))
    assert out.shape == ref.shape == (N, C, H, W)
    assert jnp.allclose(out, ref, atol=1e-1, rtol=1e-1), "bf16 path mismatch"

    # opt-in f32 numerics path: tight tolerance
    out_f32 = jax.block_until_ready(
        restnet_basic_block(x, params, stride=1, compute_dtype=jnp.float32))
    assert jnp.allclose(out_f32, ref, atol=5e-3, rtol=5e-3), "f32 path mismatch"

    print("KERNEL_OK")
</pallas_src>

<mosaic_0001>
module attributes {stable_mosaic.version = 11 : i64} {
  func.func @conv1_kernel(%arg0: i32, %arg1: memref<1x496x128xf32, #tpu.memory_space<vmem>>, %arg2: memref<9x128x128xbf16, #tpu.memory_space<vmem>>, %arg3: memref<432x128xf32, #tpu.memory_space<vmem>>, %arg4: memref<1x432x128xbf16, #tpu.memory_space<vmem>>, %arg5: memref<1x2x128xf32, #tpu.memory_space<vmem>>, %arg6: memref<432x128xf32, #tpu.memory_space<vmem>>) attributes {dimension_semantics = [#tpu.dimension_semantics<parallel>], iteration_bounds = array<i64: 2>, scalar_prefetch = 0 : i64, scratch_operands = 1 : i64, tpu.core_type = #tpu.core_type<tc>, window_params = [{transform_indices = @transform_0, window_bounds = array<i64: 1, 496, 128>}, {pipeline_mode = #tpu.pipeline_mode<synchronous>, transform_indices = @transform_1, window_bounds = array<i64: 9, 128, 128>}, {pipeline_mode = #tpu.pipeline_mode<synchronous>, transform_indices = @transform_2, window_bounds = array<i64: 432, 128>}, {transform_indices = @transform_3, window_bounds = array<i64: 1, 432, 128>}, {transform_indices = @transform_4, window_bounds = array<i64: 1, 2, 128>}]} {
    %c0 = arith.constant 0 : index
    %c7 = arith.constant 7 : index
    %c0_0 = arith.constant 0 : index
    %0 = vector.load %arg1[%c0, %c7, %c0_0] : memref<1x496x128xf32, #tpu.memory_space<vmem>>, vector<1x432x128xf32>
    %1 = vector.shape_cast %0 : vector<1x432x128xf32> to vector<432x128xf32>
    %2 = arith.truncf %1 : vector<432x128xf32> to vector<432x128xbf16>
    %c0_1 = arith.constant 0 : index
    %c0_2 = arith.constant 0 : index
    %c0_3 = arith.constant 0 : index
    %3 = vector.load %arg2[%c0_1, %c0_2, %c0_3] : memref<9x128x128xbf16, #tpu.memory_space<vmem>>, vector<1x128x128xbf16>
    %4 = vector.shape_cast %3 : vector<1x128x128xbf16> to vector<128x128xbf16>
    %cst = arith.constant dense<0.000000e+00> : vector<432x128xf32>
    %5 = tpu.matmul %2, %4, %cst {dimension_numbers = #tpu.dot_dimension_numbers<[1], [0], [0], [1], [0, 0, 1, 1], [], []>} : vector<432x128xbf16>, vector<128x128xbf16>, vector<432x128xf32> -> vector<432x128xf32>
    %c0_4 = arith.constant 0 : index
    %c0_5 = arith.constant 0 : index
    %6 = vector.load %arg6[%c0_4, %c0_5] : memref<432x128xf32, #tpu.memory_space<vmem>>, vector<432x128xf32>
    tpu.vector_store %arg6[%c0_4, %c0_5], %5 {strides = array<i32>} : memref<432x128xf32, #tpu.memory_space<vmem>>, vector<432x128xf32>,
    %c0_6 = arith.constant 0 : index
    %c8 = arith.constant 8 : index
    %c0_7 = arith.constant 0 : index
    %7 = vector.load %arg1[%c0_6, %c8, %c0_7] : memref<1x496x128xf32, #tpu.memory_space<vmem>>, vector<1x432x128xf32>
    %8 = vector.shape_cast %7 : vector<1x432x128xf32> to vector<432x128xf32>
    %9 = arith.truncf %8 : vector<432x128xf32> to vector<432x128xbf16>
    %c1 = arith.constant 1 : index
    %c0_8 = arith.constant 0 : index
    %c0_9 = arith.constant 0 : index
    %10 = vector.load %arg2[%c1, %c0_8, %c0_9] : memref<9x128x128xbf16, #tpu.memory_space<vmem>>, vector<1x128x128xbf16>
    %11 = vector.shape_cast %10 : vector<1x128x128xbf16> to vector<128x128xbf16>
    %cst_10 = arith.constant dense<0.000000e+00> : vector<432x128xf32>
    %12 = tpu.matmul %9, %11, %cst_10 {dimension_numbers = #tpu.dot_dimension_numbers<[1], [0], [0], [1], [0, 0, 1, 1], [], []>} : vector<432x128xbf16>, vector<128x128xbf16>, vector<432x128xf32> -> vector<432x128xf32>
    %c0_11 = arith.constant 0 : index
    %c0_12 = arith.constant 0 : index
    %13 = vector.load %arg6[%c0_11, %c0_12] : memref<432x128xf32, #tpu.memory_space<vmem>>, vector<432x128xf32>
    %14 = arith.addf %13, %12 : vector<432x128xf32>
    %c0_13 = arith.constant 0 : index
    %c0_14 = arith.constant 0 : index
    %15 = vector.load %arg6[%c0_13, %c0_14] : memref<432x128xf32, #tpu.memory_space<vmem>>, vector<432x128xf32>
    tpu.vector_store %arg6[%c0_13, %c0_14], %14 {strides = array<i32>} : memref<432x128xf32, #tpu.memory_space<vmem>>, vector<432x128xf32>,
    %c0_15 = arith.constant 0 : index
    %c9 = arith.constant 9 : index
    %c0_16 = arith.constant 0 : index
    %16 = vector.load %arg1[%c0_15, %c9, %c0_16] : memref<1x496x128xf32, #tpu.memory_space<vmem>>, vector<1x432x128xf32>
    %17 = vector.shape_cast %16 : vector<1x432x128xf32> to vector<432x128xf32>
    %18 = arith.truncf %17 : vector<432x128xf32> to vector<432x128xbf16>
    %c2 = arith.constant 2 : index
    %c0_17 = arith.constant 0 : index
    %c0_18 = arith.constant 0 : index
    %19 = vector.load %arg2[%c2, %c0_17, %c0_18] : memref<9x128x128xbf16, #tpu.memory_space<vmem>>, vector<1x128x128xbf16>
    %20 = vector.shape_cast %19 : vector<1x128x128xbf16> to vector<128x128xbf16>
    %cst_19 = arith.constant dense<0.000000e+00> : vector<432x128xf32>
    %21 = tpu.matmul %18, %20, %cst_19 {dimension_numbers = #tpu.dot_dimension_numbers<[1], [0], [0], [1], [0, 0, 1, 1], [], []>} : vector<432x128xbf16>, vector<128x128xbf16>, vector<432x128xf32> -> vector<432x128xf32>
    %c0_20 = arith.constant 0 : index
    %c0_21 = arith.constant 0 : index
    %22 = vector.load %arg6[%c0_20, %c0_21] : memref<432x128xf32, #tpu.memory_space<vmem>>, vector<432x128xf32>
    %23 = arith.addf %22, %21 : vector<432x128xf32>
    %c0_22 = arith.constant 0 : index
    %c0_23 = arith.constant 0 : index
    %24 = vector.load %arg6[%c0_22, %c0_23] : memref<432x128xf32, #tpu.memory_space<vmem>>, vector<432x128xf32>
    tpu.vector_store %arg6[%c0_22, %c0_23], %23 {strides = array<i32>} : memref<432x128xf32, #tpu.memory_space<vmem>>, vector<432x128xf32>,
    %c0_24 = arith.constant 0 : index
    %c31 = arith.constant 31 : index
    %c0_25 = arith.constant 0 : index
    %25 = vector.load %arg1[%c0_24, %c31, %c0_25] : memref<1x496x128xf32, #tpu.memory_space<vmem>>, vector<1x432x128xf32>
    %26 = vector.shape_cast %25 : vector<1x432x128xf32> to vector<432x128xf32>
    %27 = arith.truncf %26 : vector<432x128xf32> to vector<432x128xbf16>
    %c3 = arith.constant 3 : index
    %c0_26 = arith.constant 0 : index
    %c0_27 = arith.constant 0 : index
    %28 = vector.load %arg2[%c3, %c0_26, %c0_27] : memref<9x128x128xbf16, #tpu.memory_space<vmem>>, vector<1x128x128xbf16>
    %29 = vector.shape_cast %28 : vector<1x128x128xbf16> to vector<128x128xbf16>
    %cst_28 = arith.constant dense<0.000000e+00> : vector<432x128xf32>
    %30 = tpu.matmul %27, %29, %cst_28 {dimension_numbers = #tpu.dot_dimension_numbers<[1], [0], [0], [1], [0, 0, 1, 1], [], []>} : vector<432x128xbf16>, vector<128x128xbf16>, vector<432x128xf32> -> vector<432x128xf32>
    %c0_29 = arith.constant 0 : index
    %c0_30 = arith.constant 0 : index
    %31 = vector.load %arg6[%c0_29, %c0_30] : memref<432x128xf32, #tpu.memory_space<vmem>>, vector<432x128xf32>
    %32 = arith.addf %31, %30 : vector<432x128xf32>
    %c0_31 = arith.constant 0 : index
    %c0_32 = arith.constant 0 : index
    %33 = vector.load %arg6[%c0_31, %c0_32] : memref<432x128xf32, #tpu.memory_space<vmem>>, vector<432x128xf32>
    tpu.vector_store %arg6[%c0_31, %c0_32], %32 {strides = array<i32>} : memref<432x128xf32, #tpu.memory_space<vmem>>, vector<432x128xf32>,
    %c0_33 = arith.constant 0 : index
    %c32 = arith.constant 32 : index
    %c0_34 = arith.constant 0 : index
    %34 = vector.load %arg1[%c0_33, %c32, %c0_34] : memref<1x496x128xf32, #tpu.memory_space<vmem>>, vector<1x432x128xf32>
    %35 = vector.shape_cast %34 : vector<1x432x128xf32> to vector<432x128xf32>
    %36 = arith.truncf %35 : vector<432x128xf32> to vector<432x128xbf16>
    %c4 = arith.constant 4 : index
    %c0_35 = arith.constant 0 : index
    %c0_36 = arith.constant 0 : index
    %37 = vector.load %arg2[%c4, %c0_35, %c0_36] : memref<9x128x128xbf16, #tpu.memory_space<vmem>>, vector<1x128x128xbf16>
    %38 = vector.shape_cast %37 : vector<1x128x128xbf16> to vector<128x128xbf16>
    %cst_37 = arith.constant dense<0.000000e+00> : vector<432x128xf32>
    %39 = tpu.matmul %36, %38, %cst_37 {dimension_numbers = #tpu.dot_dimension_numbers<[1], [0], [0], [1], [0, 0, 1, 1], [], []>} : vector<432x128xbf16>, vector<128x128xbf16>, vector<432x128xf32> -> vector<432x128xf32>
    %c0_38 = arith.constant 0 : index
    %c0_39 = arith.constant 0 : index
    %40 = vector.load %arg6[%c0_38, %c0_39] : memref<432x128xf32, #tpu.memory_space<vmem>>, vector<432x128xf32>
    %41 = arith.addf %40, %39 : vector<432x128xf32>
    %c0_40 = arith.constant 0 : index
    %c0_41 = arith.constant 0 : index
    %42 = vector.load %arg6[%c0_40, %c0_41] : memref<432x128xf32, #tpu.memory_space<vmem>>, vector<432x128xf32>
    tpu.vector_store %arg6[%c0_40, %c0_41], %41 {strides = array<i32>} : memref<432x128xf32, #tpu.memory_space<vmem>>, vector<432x128xf32>,
    %c0_42 = arith.constant 0 : index
    %c33 = arith.constant 33 : index
    %c0_43 = arith.constant 0 : index
    %43 = vector.load %arg1[%c0_42, %c33, %c0_43] : memref<1x496x128xf32, #tpu.memory_space<vmem>>, vector<1x432x128xf32>
    %44 = vector.shape_cast %43 : vector<1x432x128xf32> to vector<432x128xf32>
    %45 = arith.truncf %44 : vector<432x128xf32> to vector<432x128xbf16>
    %c5 = arith.constant 5 : index
    %c0_44 = arith.constant 0 : index
    %c0_45 = arith.constant 0 : index
    %46 = vector.load %arg2[%c5, %c0_44, %c0_45] : memref<9x128x128xbf16, #tpu.memory_space<vmem>>, vector<1x128x128xbf16>
    %47 = vector.shape_cast %46 : vector<1x128x128xbf16> to vector<128x128xbf16>
    %cst_46 = arith.constant dense<0.000000e+00> : vector<432x128xf32>
    %48 = tpu.matmul %45, %47, %cst_46 {dimension_numbers = #tpu.dot_dimension_numbers<[1], [0], [0], [1], [0, 0, 1, 1], [], []>} : vector<432x128xbf16>, vector<128x128xbf16>, vector<432x128xf32> -> vector<432x128xf32>
    %c0_47 = arith.constant 0 : index
    %c0_48 = arith.constant 0 : index
    %49 = vector.load %arg6[%c0_47, %c0_48] : memref<432x128xf32, #tpu.memory_space<vmem>>, vector<432x128xf32>
    %50 = arith.addf %49, %48 : vector<432x128xf32>
    %c0_49 = arith.constant 0 : index
    %c0_50 = arith.constant 0 : index
    %51 = vector.load %arg6[%c0_49, %c0_50] : memref<432x128xf32, #tpu.memory_space<vmem>>, vector<432x128xf32>
    tpu.vector_store %arg6[%c0_49, %c0_50], %50 {strides = array<i32>} : memref<432x128xf32, #tpu.memory_space<vmem>>, vector<432x128xf32>,
    %c0_51 = arith.constant 0 : index
    %c55 = arith.constant 55 : index
    %c0_52 = arith.constant 0 : index
    %52 = vector.load %arg1[%c0_51, %c55, %c0_52] : memref<1x496x128xf32, #tpu.memory_space<vmem>>, vector<1x432x128xf32>
    %53 = vector.shape_cast %52 : vector<1x432x128xf32> to vector<432x128xf32>
    %54 = arith.truncf %53 : vector<432x128xf32> to vector<432x128xbf16>
    %c6 = arith.constant 6 : index
    %c0_53 = arith.constant 0 : index
    %c0_54 = arith.constant 0 : index
    %55 = vector.load %arg2[%c6, %c0_53, %c0_54] : memref<9x128x128xbf16, #tpu.memory_space<vmem>>, vector<1x128x128xbf16>
    %56 = vector.shape_cast %55 : vector<1x128x128xbf16> to vector<128x128xbf16>
    %cst_55 = arith.constant dense<0.000000e+00> : vector<432x128xf32>
    %57 = tpu.matmul %54, %56, %cst_55 {dimension_numbers = #tpu.dot_dimension_numbers<[1], [0], [0], [1], [0, 0, 1, 1], [], []>} : vector<432x128xbf16>, vector<128x128xbf16>, vector<432x128xf32> -> vector<432x128xf32>
    %c0_56 = arith.constant 0 : index
    %c0_57 = arith.constant 0 : index
    %58 = vector.load %arg6[%c0_56, %c0_57] : memref<432x128xf32, #tpu.memory_space<vmem>>, vector<432x128xf32>
    %59 = arith.addf %58, %57 : vector<432x128xf32>
    %c0_58 = arith.constant 0 : index
    %c0_59 = arith.constant 0 : index
    %60 = vector.load %arg6[%c0_58, %c0_59] : memref<432x128xf32, #tpu.memory_space<vmem>>, vector<432x128xf32>
    tpu.vector_store %arg6[%c0_58, %c0_59], %59 {strides = array<i32>} : memref<432x128xf32, #tpu.memory_space<vmem>>, vector<432x128xf32>,
    %c0_60 = arith.constant 0 : index
    %c56 = arith.constant 56 : index
    %c0_61 = arith.constant 0 : index
    %61 = vector.load %arg1[%c0_60, %c56, %c0_61] : memref<1x496x128xf32, #tpu.memory_space<vmem>>, vector<1x432x128xf32>
    %62 = vector.shape_cast %61 : vector<1x432x128xf32> to vector<432x128xf32>
    %63 = arith.truncf %62 : vector<432x128xf32> to vector<432x128xbf16>
    %c7_62 = arith.constant 7 : index
    %c0_63 = arith.constant 0 : index
    %c0_64 = arith.constant 0 : index
    %64 = vector.load %arg2[%c7_62, %c0_63, %c0_64] : memref<9x128x128xbf16, #tpu.memory_space<vmem>>, vector<1x128x128xbf16>
    %65 = vector.shape_cast %64 : vector<1x128x128xbf16> to vector<128x128xbf16>
    %cst_65 = arith.constant dense<0.000000e+00> : vector<432x128xf32>
    %66 = tpu.matmul %63, %65, %cst_65 {dimension_numbers = #tpu.dot_dimension_numbers<[1], [0], [0], [1], [0, 0, 1, 1], [], []>} : vector<432x128xbf16>, vector<128x128xbf16>, vector<432x128xf32> -> vector<432x128xf32>
    %c0_66 = arith.constant 0 : index
    %c0_67 = arith.constant 0 : index
    %67 = vector.load %arg6[%c0_66, %c0_67] : memref<432x128xf32, #tpu.memory_space<vmem>>, vector<432x128xf32>
    %68 = arith.addf %67, %66 : vector<432x128xf32>
    %c0_68 = arith.constant 0 : index
    %c0_69 = arith.constant 0 : index
    %69 = vector.load %arg6[%c0_68, %c0_69] : memref<432x128xf32, #tpu.memory_space<vmem>>, vector<432x128xf32>
    tpu.vector_store %arg6[%c0_68, %c0_69], %68 {strides = array<i32>} : memref<432x128xf32, #tpu.memory_space<vmem>>, vector<432x128xf32>,
    %c0_70 = arith.constant 0 : index
    %c57 = arith.constant 57 : index
    %c0_71 = arith.constant 0 : index
    %70 = vector.load %arg1[%c0_70, %c57, %c0_71] : memref<1x496x128xf32, #tpu.memory_space<vmem>>, vector<1x432x128xf32>
    %71 = vector.shape_cast %70 : vector<1x432x128xf32> to vector<432x128xf32>
    %72 = arith.truncf %71 : vector<432x128xf32> to vector<432x128xbf16>
    %c8_72 = arith.constant 8 : index
    %c0_73 = arith.constant 0 : index
    %c0_74 = arith.constant 0 : index
    %73 = vector.load %arg2[%c8_72, %c0_73, %c0_74] : memref<9x128x128xbf16, #tpu.memory_space<vmem>>, vector<1x128x128xbf16>
    %74 = vector.shape_cast %73 : vector<1x128x128xbf16> to vector<128x128xbf16>
    %cst_75 = arith.constant dense<0.000000e+00> : vector<432x128xf32>
    %75 = tpu.matmul %72, %74, %cst_75 {dimension_numbers = #tpu.dot_dimension_numbers<[1], [0], [0], [1], [0, 0, 1, 1], [], []>} : vector<432x128xbf16>, vector<128x128xbf16>, vector<432x128xf32> -> vector<432x128xf32>
    %c0_76 = arith.constant 0 : index
    %c0_77 = arith.constant 0 : index
    %76 = vector.load %arg6[%c0_76, %c0_77] : memref<432x128xf32, #tpu.memory_space<vmem>>, vector<432x128xf32>
    %77 = arith.addf %76, %75 : vector<432x128xf32>
    %c0_78 = arith.constant 0 : index
    %c0_79 = arith.constant 0 : index
    %78 = vector.load %arg6[%c0_78, %c0_79] : memref<432x128xf32, #tpu.memory_space<vmem>>, vector<432x128xf32>
    tpu.vector_store %arg6[%c0_78, %c0_79], %77 {strides = array<i32>} : memref<432x128xf32, #tpu.memory_space<vmem>>, vector<432x128xf32>,
    %c0_80 = arith.constant 0 : index
    %c0_81 = arith.constant 0 : index
    %79 = vector.load %arg6[%c0_80, %c0_81] : memref<432x128xf32, #tpu.memory_space<vmem>>, vector<432x128xf32>
    %c0_82 = arith.constant 0 : index
    %c0_83 = arith.constant 0 : index
    %80 = vector.load %arg3[%c0_82, %c0_83] : memref<432x128xf32, #tpu.memory_space<vmem>>, vector<432x128xf32>
    %81 = arith.mulf %79, %80 : vector<432x128xf32>
    %82 = arith.truncf %81 : vector<432x128xf32> to vector<432x128xbf16>
    %c0_84 = arith.constant 0 : index
    %c0_85 = arith.constant 0 : index
    %c0_86 = arith.constant 0 : index
    %83 = vector.load %arg4[%c0_84, %c0_85, %c0_86] : memref<1x432x128xbf16, #tpu.memory_space<vmem>>, vector<1x432x128xbf16>
    %84 = vector.shape_cast %83 : vector<1x432x128xbf16> to vector<432x128xbf16>
    %85 = vector.shape_cast %82 : vector<432x128xbf16> to vector<1x432x128xbf16>
    tpu.vector_store %arg4[%c0_84, %c0_85, %c0_86], %85 {strides = array<i32>} : memref<1x432x128xbf16, #tpu.memory_space<vmem>>, vector<1x432x128xbf16>,
    %cst_87 = arith.constant dense<0.000000e+00> : vector<128xf32>
    %86 = vector.multi_reduction <add>, %81, %cst_87 [0] : vector<432x128xf32> to vector<128xf32>
    %87 = vector.shape_cast %86 : vector<128xf32> to vector<1x128xf32>
    %c0_88 = arith.constant 0 : index
    %c0_89 = arith.constant 0 : index
    %c0_90 = arith.constant 0 : index
    %88 = vector.load %arg5[%c0_88, %c0_89, %c0_90] : memref<1x2x128xf32, #tpu.memory_space<vmem>>, vector<1x1x128xf32>
    %89 = vector.shape_cast %88 : vector<1x1x128xf32> to vector<1x128xf32>
    %90 = vector.shape_cast %87 : vector<1x128xf32> to vector<1x1x128xf32>
    tpu.vector_store %arg5[%c0_88, %c0_89, %c0_90], %90 {strides = array<i32>} : memref<1x2x128xf32, #tpu.memory_space<vmem>>, vector<1x1x128xf32>,
    %91 = arith.mulf %81, %81 : vector<432x128xf32>
    %cst_91 = arith.constant dense<0.000000e+00> : vector<128xf32>
    %92 = vector.multi_reduction <add>, %91, %cst_91 [0] : vector<432x128xf32> to vector<128xf32>
    %93 = vector.shape_cast %92 : vector<128xf32> to vector<1x128xf32>
    %c0_92 = arith.constant 0 : index
    %c1_93 = arith.constant 1 : index
    %c0_94 = arith.constant 0 : index
    %94 = vector.load %arg5[%c0_92, %c1_93, %c0_94] : memref<1x2x128xf32, #tpu.memory_space<vmem>>, vector<1x1x128xf32>
    %95 = vector.shape_cast %94 : vector<1x1x128xf32> to vector<1x128xf32>
    %96 = vector.shape_cast %93 : vector<1x128xf32> to vector<1x1x128xf32>
    tpu.vector_store %arg5[%c0_92, %c1_93, %c0_94], %96 {strides = array<i32>} : memref<1x2x128xf32, #tpu.memory_space<vmem>>, vector<1x1x128xf32>,
    return
  }
  func.func @transform_0(%arg0: i32) -> (i32, i32, i32) {
    %c0_i32 = arith.constant 0 : i32
    %c0_i32_0 = arith.constant 0 : i32
    %c0_i32_1 = arith.constant 0 : i32
    return %arg0, %c0_i32, %c0_i32_0 : i32, i32, i32
  }
  func.func @transform_1(%arg0: i32) -> (i32, i32, i32) {
    %c0_i32 = arith.constant 0 : i32
    %c0_i32_0 = arith.constant 0 : i32
    %c0_i32_1 = arith.constant 0 : i32
    %c0_i32_2 = arith.constant 0 : i32
    return %c0_i32, %c0_i32_0, %c0_i32_1 : i32, i32, i32
  }
  func.func @transform_2(%arg0: i32) -> (i32, i32) {
    %c0_i32 = arith.constant 0 : i32
    %c0_i32_0 = arith.constant 0 : i32
    %c0_i32_1 = arith.constant 0 : i32
    return %c0_i32, %c0_i32_0 : i32, i32
  }
  func.func @transform_3(%arg0: i32) -> (i32, i32, i32) {
    %c0_i32 = arith.constant 0 : i32
    %c0_i32_0 = arith.constant 0 : i32
    %c0_i32_1 = arith.constant 0 : i32
    return %arg0, %c0_i32, %c0_i32_0 : i32, i32, i32
  }
  func.func @transform_4(%arg0: i32) -> (i32, i32, i32) {
    %c0_i32 = arith.constant 0 : i32
    %c0_i32_0 = arith.constant 0 : i32
    %c0_i32_1 = arith.constant 0 : i32
    return %arg0, %c0_i32, %c0_i32_0 : i32, i32, i32
  }
}

</mosaic_0001>

<llo_original>
// kernel: tpu_custom_call.1
$region0: #{tpu_custom_call.1}
  #allocation0 [shape = 'u32[]', space=smem, size = 0x4, offset = 0x4, fixed_abs, tag = 'smem constant byte address 0x4 - core index']
  #allocation1 [shape = 'u32[72,128]{1,0:T(1,128)}', space=vmem, size = 0x9000, scoped, tag = 'internal scratch']
  #allocation2 [shape = 'f32[432,128]{1,0:T(8,128)}', space=vmem, size = 0x36000, scoped, tag = 'scratch operand']
  %s0 = inlined_call_operand.hbm [shape: f32[2,496,128], index: 0, kind: input, shape index: {}]
  %s1 = inlined_call_operand.hbm [shape: bf16[9,128,128], index: 1, kind: input, shape index: {}]
  %s2 = inlined_call_operand.hbm [shape: f32[432,128], index: 2, kind: input, shape index: {}]
  %s3 = inlined_call_operand.hbm [shape: bf16[2,432,128], index: 3, kind: output, shape index: {0}]
  %s4 = inlined_call_operand.hbm [shape: f32[2,2,128], index: 4, kind: output, shape index: {1}]
  %5 = xla_tuple %s3, %s4
  %s6 = sld [smem:[#allocation0]]
  $region65: #{tpu_custom_call.1} parent=0
    _
  %s8 = ssub.s32 1, %s6
  %s9 = scalar_select 0, %s8, %s6
  $region1: #{tpu_custom_call.1} parent=0
    #allocation3 [shape = 'u8[507904]{0}', space=vmem, size = 0x7c000, scoped, tag = 'input window, operand 0']
    #allocation4 [shape = 's32[2]{0}', space=sflag, size = 0x8, scoped, tag = 'scoped memory for tpu_custom_call.1']
    #allocation5 [shape = 's32[2]{0}', space=sflag, size = 0x8, scoped, tag = 'scoped memory for tpu_custom_call.1']
    #allocation6 [shape = 'u8[294912]{0}', space=vmem, size = 0x48000, scoped, tag = 'input window, operand 1, single buffered']
    #allocation7 [shape = 's32[1]{0}', space=sflag, size = 0x4, scoped, tag = 'scoped memory for tpu_custom_call.1']
    #allocation8 [shape = 'u8[221184]{0}', space=vmem, size = 0x36000, scoped, tag = 'input window, operand 2, single buffered']
    #allocation9 [shape = 'u8[221184]{0}', space=vmem, size = 0x36000, scoped, tag = 'output window, operand 0']
    #allocation10 [shape = 'u8[2048]{0}', space=vmem, size = 0x800, scoped, tag = 'output window, operand 1']
    #allocation11 [shape = 's32[2]{0}', space=sflag, size = 0x8, scoped, tag = 'scoped memory for tpu_custom_call.1']
    %10 = vsyncpa [#allocation4], 0
    %s11 = scalar_lea.sflag [#allocation4], 1
    %12 = vsyncpa %s11, 0
    %13 = vsyncpa [#allocation7], 0
    %14 = vsyncpa [#allocation5], 0
    %s15 = scalar_lea.sflag [#allocation5], 1
    %16 = vsyncpa %s15, 0
    %17 = vsyncpa [#allocation11], 0
    %s18 = scalar_lea.sflag [#allocation11], 1
    %19 = vsyncpa %s18, 0
    loop: start=0, step=1, limit=4
    $region2: #{tpu_custom_call.1} parent=1 // loop_pre_header
      _
    $region3: #{tpu_custom_call.1} parent=1 // loop_header
      %s21 = sphi 0, %s25
      %p22 = scmp.ge.s32.totalorder %s21, 4
      %s31 = sphi 0, %s33
      %s34 = sphi 0, %s31
      %s35 = sphi 0, %s34
      %s51 = sphi 0, %s35
      %s55 = sphi 0, %s55
      %s57 = sphi 0, %s55
      %s58 = sphi 0, %s57
      %s72 = sphi 0, %s58
      %s76 = sphi 0, %s76
      %s78 = sphi 0, %s76
      %s79 = sphi 0, %s78
      %s93 = sphi 0, %s79
      %s99 = sphi 0, %s101
      %s102 = sphi 0, %s99
      %s103 = sphi 0, %s102
      %s119 = sphi 0, %s103
      %s125 = sphi 0, %s127
      %s128 = sphi 0, %s125
      %s129 = sphi 0, %s128
      %s145 = sphi 0, %s129
    $region4: #{tpu_custom_call.1} parent=1 // loop_header_branch
      %24 = sbr.rel (%p22) target = $region8
    $region5: #{tpu_custom_call.1} parent=1 // loop_body
      %s26 = ssub.s32 %s21, 1
      %s27 = ssub.s32 %s21, 2
      %s28 = sadd.s32 %s21, 1
      %s29 = ssub.s32 %s21, %s28
      %p30 = scmp.eq.s32.totalorder %s29, 0
      %s32 = sadd.s32 %s31, 1
      %s33 = scalar_select %p30, %s31, %s32
      %p36 = pneg %p30
      %p37 = scmp.eq.s32.totalorder %s21, 1
      %p38 = por %p36, %p37
      %p39 = scmp.ne.s32.totalorder %s31, %s34
      %p40 = scmp.eq.s32.totalorder %s21, 0
      %p41 = por %p39, %p40
      %p42 = scmp.ne.s32.totalorder %s31, %s34
      %p43 = scmp.eq.s32.totalorder %s26, 1
      %p44 = por %p42, %p43
      %p45 = scmp.ne.s32.totalorder %s34, %s35
      %p46 = scmp.eq.s32.totalorder %s26, 0
      %p47 = por %p45, %p46
      %p48 = scmp.ne.s32.totalorder %s34, %s35
      %p49 = scmp.eq.s32.totalorder %s27, 1
      %p50 = por %p48, %p49
      %p52 = scmp.ne.s32.totalorder %s35, %s51
      %p53 = scmp.eq.s32.totalorder %s27, 0
      %p54 = por %p52, %p53
      %s56 = sadd.s32 %s55, 1
      %p59 = scmp.eq.s32.totalorder %s21, 1
      %p60 = scmp.ne.s32.totalorder %s55, %s57
      %p61 = scmp.eq.s32.totalorder %s21, 0
      %p62 = por %p60, %p61
      %p63 = scmp.ne.s32.totalorder %s55, %s57
      %p64 = scmp.eq.s32.totalorder %s26, 1
      %p65 = por %p63, %p64
      %p66 = scmp.ne.s32.totalorder %s57, %s58
      %p67 = scmp.eq.s32.totalorder %s26, 0
      %p68 = por %p66, %p67
      %p69 = scmp.ne.s32.totalorder %s57, %s58
      %p70 = scmp.eq.s32.totalorder %s27, 1
      %p71 = por %p69, %p70
      %p73 = scmp.ne.s32.totalorder %s58, %s72
      %p74 = scmp.eq.s32.totalorder %s27, 0
      %p75 = por %p73, %p74
      %s77 = sadd.s32 %s76, 1
      %p80 = scmp.eq.s32.totalorder %s21, 1
      %p81 = scmp.ne.s32.totalorder %s76, %s78
      %p82 = scmp.eq.s32.totalorder %s21, 0
      %p83 = por %p81, %p82
      %p84 = scmp.ne.s32.totalorder %s76, %s78
      %p85 = scmp.eq.s32.totalorder %s26, 1
      %p86 = por %p84, %p85
      %p87 = scmp.ne.s32.totalorder %s78, %s79
      %p88 = scmp.eq.s32.totalorder %s26, 0
      %p89 = por %p87, %p88
      %p90 = scmp.ne.s32.totalorder %s78, %s79
      %p91 = scmp.eq.s32.totalorder %s27, 1
      %p92 = por %p90, %p91
      %p94 = scmp.ne.s32.totalorder %s79, %s93
      %p95 = scmp.eq.s32.totalorder %s27, 0
      %p96 = por %p94, %p95
      %s97 = ssub.s32 %s21, %s28
      %p98 = scmp.eq.s32.totalorder %s97, 0
      %s100 = sadd.s32 %s99, 1
      %s101 = scalar_select %p98, %s99, %s100
      %p104 = pneg %p98
      %p105 = scmp.eq.s32.totalorder %s21, 1
      %p106 = por %p104, %p105
      %p107 = scmp.ne.s32.totalorder %s99, %s102
      %p108 = scmp.eq.s32.totalorder %s21, 0
      %p109 = por %p107, %p108
      %p110 = scmp.ne.s32.totalorder %s99, %s102
      %p111 = scmp.eq.s32.totalorder %s26, 1
      %p112 = por %p110, %p111
      %p113 = scmp.ne.s32.totalorder %s102, %s103
      %p114 = scmp.eq.s32.totalorder %s26, 0
      %p115 = por %p113, %p114
      %p116 = scmp.ne.s32.totalorder %s102, %s103
      %p117 = scmp.eq.s32.totalorder %s27, 1
      %p118 = por %p116, %p117
      %p120 = scmp.ne.s32.totalorder %s103, %s119
      %p121 = scmp.eq.s32.totalorder %s27, 0
      %p122 = por %p120, %p121
      %s123 = ssub.s32 %s21, %s28
      %p124 = scmp.eq.s32.totalorder %s123, 0
      %s126 = sadd.s32 %s125, 1
      %s127 = scalar_select %p124, %s125, %s126
      %p130 = pneg %p124
      %p131 = scmp.eq.s32.totalorder %s21, 1
      %p132 = por %p130, %p131
      %p133 = scmp.ne.s32.totalorder %s125, %s128
      %p134 = scmp.eq.s32.totalorder %s21, 0
      %p135 = por %p133, %p134
      %p136 = scmp.ne.s32.totalorder %s125, %s128
      %p137 = scmp.eq.s32.totalorder %s26, 1
      %p138 = por %p136, %p137
      %p139 = scmp.ne.s32.totalorder %s128, %s129
      %p140 = scmp.eq.s32.totalorder %s26, 0
      %p141 = por %p139, %p140
      %p142 = scmp.ne.s32.totalorder %s128, %s129
      %p143 = scmp.eq.s32.totalorder %s27, 1
      %p144 = por %p142, %p143
      %p146 = scmp.ne.s32.totalorder %s129, %s145
      %p147 = scmp.eq.s32.totalorder %s27, 0
      %p148 = por %p146, %p147
      %p149 = scmp.le.s32.totalorder 1, %s21
      %p150 = scmp.lt.s32.totalorder %s21, 3
      %p151 = pnand %p149, %p150
      %p152 = pneg %p151
      // Predicated region
      $region9: #{tpu_custom_call.1} parent=5 // pred_check
        _
      $region10: #{tpu_custom_call.1} parent=5 // pred_check_branch
        %154 = sbr.rel (%p151) target = $region12
      $region11: #{tpu_custom_call.1} parent=5 // pred_region
        %s155 = ssub.s32 %s21, 1
        // Predicated region
        $region13: #{tpu_custom_call.1} parent=11 // pred_check
          %p156 = pneg %p68
        $region14: #{tpu_custom_call.1} parent=11 // pred_check_branch
          %158 = sbr.rel (%p156) target = $region16
        $region15: #{tpu_custom_call.1} parent=11 // pred_region
          %160 = vsyncadd [#allocation7], 0
          %s161 = sshll.u32 %s1, 4
          %s162 = int_to_ptr.hbm [resolvable:$true] %s161
          %s163 = sshll.u32 [#allocation6], 4
          %s164 = int_to_ptr.vmem [resolvable:$true] %s163
          %169 = dma.hbm_to_vmem [thread:$0]  %s162, 9216, %s164, [#allocation7], 64, 64, 4
        $region16: #{tpu_custom_call.1} parent=11 // pred_fallthru
          _
        // Predicated region
        $region17: #{tpu_custom_call.1} parent=11 // pred_check
          %p170 = pneg %p89
        $region18: #{tpu_custom_call.1} parent=11 // pred_check_branch
          %172 = sbr.rel (%p170) target = $region20
        $region19: #{tpu_custom_call.1} parent=11 // pred_region
          %174 = vsyncadd [#allocation7], 0
          %s175 = sshll.u32 %s2, 4
          %s176 = int_to_ptr.hbm [resolvable:$true] %s175
          %s177 = sshll.u32 [#allocation8], 4
          %s178 = int_to_ptr.vmem [resolvable:$true] %s177
          %183 = dma.hbm_to_vmem [thread:$0]  %s176, 6912, %s178, [#allocation7], 128, 128, 8
        $region20: #{tpu_custom_call.1} parent=11 // pred_fallthru
          _
      $region12: #{tpu_custom_call.1} parent=5 // pred_fallthru
        _
      %p184 = scmp.lt.s32.totalorder %s21, 2
      // Predicated region
      $region21: #{tpu_custom_call.1} parent=5 // pred_check
        %p185 = pneg %p184
      $region22: #{tpu_custom_call.1} parent=5 // pred_check_branch
        %187 = sbr.rel (%p185) target = $region24
      $region23: #{tpu_custom_call.1} parent=5 // pred_region
        // Predicated region
        $region25: #{tpu_custom_call.1} parent=23 // pred_check
          %p188 = pneg %p41
        $region26: #{tpu_custom_call.1} parent=23 // pred_check_branch
          %190 = sbr.rel (%p188) target = $region28
        $region27: #{tpu_custom_call.1} parent=23 // pred_region
          %s191 = sand.u32 %s31, 1
          %s192 = scalar_lea.sflag [#allocation4], %s191
          %s193 = sand.u32 %s31, 1
          %s194 = smul.addr %s193, 496
          %s195 = scalar_lea.vmem [#allocation3], %s194
          %197 = vsyncadd %s192, 0
          %s198 = smul.addr %s21, 62
          %s199 = smul.addr %s198, 8
          %s200 = scalar_lea.hbm %s0, %s199
          %s201 = sshll.u32 %s200, 4
          %s202 = int_to_ptr.hbm [resolvable:$true] %s201
          %s203 = sshll.u32 %s195, 4
          %s204 = int_to_ptr.vmem [resolvable:$true] %s203
          %209 = dma.hbm_to_vmem [thread:$0]  %s202, 7936, %s204, %s192, 128, 128, 8
        $region28: #{tpu_custom_call.1} parent=23 // pred_fallthru
          _
      $region24: #{tpu_custom_call.1} parent=5 // pred_fallthru
        _
      %p210 = scmp.le.s32.totalorder 1, %s21
      %p211 = scmp.lt.s32.totalorder %s21, 3
      %p212 = pnand %p210, %p211
      %p213 = pneg %p212
      // Predicated region
      $region29: #{tpu_custom_call.1} parent=5 // pred_check
        _
      $region30: #{tpu_custom_call.1} parent=5 // pred_check_branch
        %215 = sbr.rel (%p212) target = $region32
      $region31: #{tpu_custom_call.1} parent=5 // pred_region
        %s216 = ssub.s32 %s21, 1
        %s217 = sand.u32 %s34, 1
        %s218 = scalar_lea.sflag [#allocation4], %s217
        %s219 = sand.u32 %s34, 1
        %s220 = smul.addr %s219, 496
        %s221 = scalar_lea.vmem [#allocation3], %s220
        // Predicated region
        $region33: #{tpu_custom_call.1} parent=31 // pred_check
          %p222 = pneg %p47
        $region34: #{tpu_custom_call.1} parent=31 // pred_check_branch
          %224 = sbr.rel (%p222) target = $region36
        $region35: #{tpu_custom_call.1} parent=31 // pred_region
          %226 = dma.done %s218, 7936
        $region36: #{tpu_custom_call.1} parent=31 // pred_fallthru
          _
        // Predicated region
        $region37: #{tpu_custom_call.1} parent=31 // pred_check
          %p227 = pneg %p68
        $region38: #{tpu_custom_call.1} parent=31 // pred_check_branch
          %229 = sbr.rel (%p227) target = $region40
        $region39: #{tpu_custom_call.1} parent=31 // pred_region
          %231 = dma.done [#allocation7], 9216
        $region40: #{tpu_custom_call.1} parent=31 // pred_fallthru
          _
        // Predicated region
        $region41: #{tpu_custom_call.1} parent=31 // pred_check
          %p232 = pneg %p89
        $region42: #{tpu_custom_call.1} parent=31 // pred_check_branch
          %234 = sbr.rel (%p232) target = $region44
        $region43: #{tpu_custom_call.1} parent=31 // pred_region
          %236 = dma.done [#allocation7], 6912
        $region44: #{tpu_custom_call.1} parent=31 // pred_fallthru
          _
        %s237 = sand.u32 %s34, 1
        %s238 = scalar_lea.sflag [#allocation4], %s237
        %s239 = sand.u32 %s34, 1
        %s240 = smul.addr %s239, 496
        %s241 = scalar_lea.vmem [#allocation3], %s240
        %p242 = pneg %p47
        %p243 = pneg %p44
        %p244 = pneg %p68
        %p245 = pneg %p65
        %p246 = pneg %p89
        %p247 = pneg %p86
        %p248 = pneg %p115
        %p249 = pneg %p112
        %s250 = sand.u32 %s102, 1
        %s251 = scalar_lea.sflag [#allocation5], %s250
        %s252 = sand.u32 %s102, 1
        %s253 = smul.addr %s252, 216
        %s254 = scalar_lea.vmem [#allocation9], %s253
        %p255 = pneg %p141
        %p256 = pneg %p138
        %s257 = sand.u32 %s128, 1
        %s258 = scalar_lea.sflag [#allocation11], %s257
        %s259 = sand.u32 %s128, 1
        %s260 = smul.addr %s259, 2
        %s261 = scalar_lea.vmem [#allocation10], %s260
        %v262 = vld [vmem:[%s221 + $0x7] sm:$0xff]
        %v263 = vld [vmem:[%s221 + $0xf] sm:$0xff]
        %v264 = vld [vmem:[%s221 + $0x17] sm:$0xff]
        %v265 = vld [vmem:[%s221 + $0x1f] sm:$0xff]
        %v266 = vld [vmem:[%s221 + $0x27] sm:$0xff]
        %v267 = vld [vmem:[%s221 + $0x2f] sm:$0xff]
        %v268 = vld [vmem:[%s221 + $0x37] sm:$0xff]
        %v269 = vld [vmem:[%s221 + $0x3f] sm:$0xff]
        %v270 = vld [vmem:[%s221 + $0x47] sm:$0xff]
        %v271 = vld [vmem:[%s221 + $0x4f] sm:$0xff]
        %v272 = vld [vmem:[%s221 + $0x57] sm:$0xff]
        %v273 = vld [vmem:[%s221 + $0x5f] sm:$0xff]
        %v274 = vld [vmem:[%s221 + $0x67] sm:$0xff]
        %v275 = vld [vmem:[%s221 + $0x6f] sm:$0xff]
        %v276 = vld [vmem:[%s221 + $0x77] sm:$0xff]
        %v277 = vld [vmem:[%s221 + $0x7f] sm:$0xff]
        %v278 = vld [vmem:[%s221 + $0x87] sm:$0xff]
        %v279 = vld [vmem:[%s221 + $0x8f] sm:$0xff]
        %v280 = vld [vmem:[%s221 + $0x97] sm:$0xff]
        %v281 = vld [vmem:[%s221 + $0x9f] sm:$0xff]
        %v282 = vld [vmem:[%s221 + $0xa7] sm:$0xff]
        %v283 = vld [vmem:[%s221 + $0xaf] sm:$0xff]
        %v284 = vld [vmem:[%s221 + $0xb7] sm:$0xff]
        %v285 = vld [vmem:[%s221 + $0xbf] sm:$0xff]
        %v286 = vld [vmem:[%s221 + $0xc7] sm:$0xff]
        %v287 = vld [vmem:[%s221 + $0xcf] sm:$0xff]
        %v288 = vld [vmem:[%s221 + $0xd7] sm:$0xff]
        %v289 = vld [vmem:[%s221 + $0xdf] sm:$0xff]
        %v290 = vld [vmem:[%s221 + $0xe7] sm:$0xff]
        %v291 = vld [vmem:[%s221 + $0xef] sm:$0xff]
        %v292 = vld [vmem:[%s221 + $0xf7] sm:$0xff]
        %v293 = vld [vmem:[%s221 + $0xff] sm:$0xff]
        %v294 = vld [vmem:[%s221 + $0x107] sm:$0xff]
        %v295 = vld [vmem:[%s221 + $0x10f] sm:$0xff]
        %v296 = vld [vmem:[%s221 + $0x117] sm:$0xff]
        %v297 = vld [vmem:[%s221 + $0x11f] sm:$0xff]
        %v298 = vld [vmem:[%s221 + $0x127] sm:$0xff]
        %v299 = vld [vmem:[%s221 + $0x12f] sm:$0xff]
        %v300 = vld [vmem:[%s221 + $0x137] sm:$0xff]
        %v301 = vld [vmem:[%s221 + $0x13f] sm:$0xff]
        %v302 = vld [vmem:[%s221 + $0x147] sm:$0xff]
        %v303 = vld [vmem:[%s221 + $0x14f] sm:$0xff]
        %v304 = vld [vmem:[%s221 + $0x157] sm:$0xff]
        %v305 = vld [vmem:[%s221 + $0x15f] sm:$0xff]
        %v306 = vld [vmem:[%s221 + $0x167] sm:$0xff]
        %v307 = vld [vmem:[%s221 + $0x16f] sm:$0xff]
        %v308 = vld [vmem:[%s221 + $0x177] sm:$0xff]
        %v309 = vld [vmem:[%s221 + $0x17f] sm:$0xff]
        %v310 = vld [vmem:[%s221 + $0x187] sm:$0xff]
        %v311 = vld [vmem:[%s221 + $0x18f] sm:$0xff]
        %v312 = vld [vmem:[%s221 + $0x197] sm:$0xff]
        %v313 = vld [vmem:[%s221 + $0x19f] sm:$0xff]
        %v314 = vld [vmem:[%s221 + $0x1a7] sm:$0xff]
        %v315 = vld [vmem:[%s221 + $0x1af] sm:$0xff]
        %v316 = vpack.c.bf16 %v263, %v262
        %v317 = vpack.c.bf16 %v265, %v264
        %v318 = vpack.c.bf16 %v267, %v266
        %v319 = vpack.c.bf16 %v269, %v268
        %v320 = vpack.c.bf16 %v271, %v270
        %v321 = vpack.c.bf16 %v273, %v272
        %v322 = vpack.c.bf16 %v275, %v274
        %v323 = vpack.c.bf16 %v277, %v276
        %v324 = vpack.c.bf16 %v279, %v278
        %v325 = vpack.c.bf16 %v281, %v280
        %v326 = vpack.c.bf16 %v283, %v282
        %v327 = vpack.c.bf16 %v285, %v284
        %v328 = vpack.c.bf16 %v287, %v286
        %v329 = vpack.c.bf16 %v289, %v288
        %v330 = vpack.c.bf16 %v291, %v290
        %v331 = vpack.c.bf16 %v293, %v292
        %v332 = vpack.c.bf16 %v295, %v294
        %v333 = vpack.c.bf16 %v297, %v296
        %v334 = vpack.c.bf16 %v299, %v298
        %v335 = vpack.c.bf16 %v301, %v300
        %v336 = vpack.c.bf16 %v303, %v302
        %v337 = vpack.c.bf16 %v305, %v304
        %v338 = vpack.c.bf16 %v307, %v306
        %v339 = vpack.c.bf16 %v309, %v308
        %v340 = vpack.c.bf16 %v311, %v310
        %v341 = vpack.c.bf16 %v313, %v312
        %v342 = vpack.c.bf16 %v315, %v314
        %v343 = vld [vmem:[#allocation6] sm:$0xf]
        %v344 = vld [vmem:[#allocation6 + $0x4] sm:$0xf]
        %v345 = vld [vmem:[#allocation6 + $0x8] sm:$0xf]
        %v346 = vld [vmem:[#allocation6 + $0xc] sm:$0xf]
        %v347 = vld [vmem:[#allocation6 + $0x10] sm:$0xf]
        %v348 = vld [vmem:[#allocation6 + $0x14] sm:$0xf]
        %v349 = vld [vmem:[#allocation6 + $0x18] sm:$0xf]
        %v350 = vld [vmem:[#allocation6 + $0x1c] sm:$0xf]
        %v351 = vld [vmem:[#allocation6 + $0x20] sm:$0xf]
        %v352 = vld [vmem:[#allocation6 + $0x24] sm:$0xf]
        %v353 = vld [vmem:[#allocation6 + $0x28] sm:$0xf]
        %v354 = vld [vmem:[#allocation6 + $0x2c] sm:$0xf]
        %v355 = vld [vmem:[#allocation6 + $0x30] sm:$0xf]
        %v356 = vld [vmem:[#allocation6 + $0x34] sm:$0xf]
        %v357 = vld [vmem:[#allocation6 + $0x38] sm:$0xf]
        %v358 = vld [vmem:[#allocation6 + $0x3c] sm:$0xf]
        %v375 = vunpack.c.l.b16 %v343
        %v376 = vunpack.c.l.b16 %v344
        %v377 = vunpack.c.l.b16 %v345
        %v378 = vunpack.c.l.b16 %v346
        %v379 = vunpack.c.l.b16 %v347
        %v380 = vunpack.c.l.b16 %v348
        %v381 = vunpack.c.l.b16 %v349
        %v382 = vunpack.c.l.b16 %v350
        %v383 = vunpack.c.l.b16 %v351
        %v384 = vunpack.c.l.b16 %v352
        %v385 = vunpack.c.l.b16 %v353
        %v386 = vunpack.c.l.b16 %v354
        %v387 = vunpack.c.l.b16 %v355
        %v388 = vunpack.c.l.b16 %v356
        %v389 = vunpack.c.l.b16 %v357
        %v390 = vunpack.c.l.b16 %v358
        %v391 = vpack.c.b16 %v376, %v375
        %v392 = vpack.c.b16 %v378, %v377
        %v393 = vpack.c.b16 %v380, %v379
        %v394 = vpack.c.b16 %v382, %v381
        %v395 = vpack.c.b16 %v384, %v383
        %v396 = vpack.c.b16 %v386, %v385
        %v397 = vpack.c.b16 %v388, %v387
        %v398 = vpack.c.b16 %v390, %v389
        %407 = vmatpush.bf16.msra.mxu0 %v398
        %408 = vmatpush.bf16.msra.mxu0 %v397
        %409 = vmatpush.bf16.msra.mxu0 %v396
        %410 = vmatpush.bf16.msra.mxu0 %v395
        %411 = vmatpush.bf16.msra.mxu0 %v394
        %412 = vmatpush.bf16.msra.mxu0 %v393
        %413 = vmatpush.bf16.msra.mxu0 %v392
        %414 = vmatpush.bf16.msra.mxu0 %v391
        %415 = vmatmul.bf16.gmra.mxu0 %v316
        %v416 = vpop.f32.mrf.mxu0
        %v417 = vadd.f32 0.0, %v416
        %v418 = vpop.f32.mrf.mxu0
        %v419 = vadd.f32 0.0, %v418
        %420 = vmatmul.bf16.gmra.mxu0 %v317
        %v421 = vpop.f32.mrf.mxu0
        %v422 = vadd.f32 0.0, %v421
        %v423 = vpop.f32.mrf.mxu0
        %v424 = vadd.f32 0.0, %v423
        %425 = vmatmul.bf16.gmra.mxu0 %v318
        %v426 = vpop.f32.mrf.mxu0
        %v427 = vadd.f32 0.0, %v426
        %v428 = vpop.f32.mrf.mxu0
        %v429 = vadd.f32 0.0, %v428
        %430 = vmatmul.bf16.gmra.mxu0 %v319
        %v431 = vpop.f32.mrf.mxu0
        %v432 = vadd.f32 0.0, %v431
        %v433 = vpop.f32.mrf.mxu0
        %v434 = vadd.f32 0.0, %v433
        %435 = vmatmul.bf16.gmra.mxu0 %v320
        %v436 = vpop.f32.mrf.mxu0
        %v437 = vadd.f32 0.0, %v436
        %v438 = vpop.f32.mrf.mxu0
        %v439 = vadd.f32 0.0, %v438
        %440 = vmatmul.bf16.gmra.mxu0 %v321
        %v441 = vpop.f32.mrf.mxu0
        %v442 = vadd.f32 0.0, %v441
        %v443 = vpop.f32.mrf.mxu0
        %v444 = vadd.f32 0.0, %v443
        %445 = vmatmul.bf16.gmra.mxu0 %v322
        %v446 = vpop.f32.mrf.mxu0
        %v447 = vadd.f32 0.0, %v446
        %v448 = vpop.f32.mrf.mxu0
        %v449 = vadd.f32 0.0, %v448
        %450 = vmatmul.bf16.gmra.mxu0 %v323
        %v451 = vpop.f32.mrf.mxu0
        %v452 = vadd.f32 0.0, %v451
        %v453 = vpop.f32.mrf.mxu0
        %v454 = vadd.f32 0.0, %v453
        %455 = vmatmul.bf16.gmra.mxu0 %v324
        %v456 = vpop.f32.mrf.mxu0
        %v457 = vadd.f32 0.0, %v456
        %v458 = vpop.f32.mrf.mxu0
        %v459 = vadd.f32 0.0, %v458
        %460 = vmatmul.bf16.gmra.mxu0 %v325
        %v461 = vpop.f32.mrf.mxu0
        %v462 = vadd.f32 0.0, %v461
        %v463 = vpop.f32.mrf.mxu0
        %v464 = vadd.f32 0.0, %v463
        %465 = vmatmul.bf16.gmra.mxu0 %v326
        %v466 = vpop.f32.mrf.mxu0
        %v467 = vadd.f32 0.0, %v466
        %v468 = vpop.f32.mrf.mxu0
        %v469 = vadd.f32 0.0, %v468
        %470 = vmatmul.bf16.gmra.mxu0 %v327
        %v471 = vpop.f32.mrf.mxu0
        %v472 = vadd.f32 0.0, %v471
        %v473 = vpop.f32.mrf.mxu0
        %v474 = vadd.f32 0.0, %v473
        %475 = vmatmul.bf16.gmra.mxu0 %v328
        %v476 = vpop.f32.mrf.mxu0
        %v477 = vadd.f32 0.0, %v476
        %v478 = vpop.f32.mrf.mxu0
        %v479 = vadd.f32 0.0, %v478
        %480 = vmatmul.bf16.gmra.mxu0 %v329
        %v481 = vpop.f32.mrf.mxu0
        %v482 = vadd.f32 0.0, %v481
        %v483 = vpop.f32.mrf.mxu0
        %v484 = vadd.f32 0.0, %v483
        %485 = vmatmul.bf16.gmra.mxu0 %v330
        %v486 = vpop.f32.mrf.mxu0
        %v487 = vadd.f32 0.0, %v486
        %v488 = vpop.f32.mrf.mxu0
        %v489 = vadd.f32 0.0, %v488
        %490 = vmatmul.bf16.gmra.mxu0 %v331
        %v491 = vpop.f32.mrf.mxu0
        %v492 = vadd.f32 0.0, %v491
        %v493 = vpop.f32.mrf.mxu0
        %v494 = vadd.f32 0.0, %v493
        %495 = vmatmul.bf16.gmra.mxu0 %v332
        %v496 = vpop.f32.mrf.mxu0
        %v497 = vadd.f32 0.0, %v496
        %v498 = vpop.f32.mrf.mxu0
        %v499 = vadd.f32 0.0, %v498
        %500 = vmatmul.bf16.gmra.mxu0 %v333
        %v501 = vpop.f32.mrf.mxu0
        %v502 = vadd.f32 0.0, %v501
        %v503 = vpop.f32.mrf.mxu0
        %v504 = vadd.f32 0.0, %v503
        %505 = vmatmul.bf16.gmra.mxu0 %v334
        %v506 = vpop.f32.mrf.mxu0
        %v507 = vadd.f32 0.0, %v506
        %v508 = vpop.f32.mrf.mxu0
        %v509 = vadd.f32 0.0, %v508
        %510 = vmatmul.bf16.gmra.mxu0 %v335
        %v511 = vpop.f32.mrf.mxu0
        %v512 = vadd.f32 0.0, %v511
        %v513 = vpop.f32.mrf.mxu0
        %v514 = vadd.f32 0.0, %v513
        %515 = vmatmul.bf16.gmra.mxu0 %v336
        %v516 = vpop.f32.mrf.mxu0
        %v517 = vadd.f32 0.0, %v516
        %v518 = vpop.f32.mrf.mxu0
        %v519 = vadd.f32 0.0, %v518
        %520 = vmatmul.bf16.gmra.mxu0 %v337
        %v521 = vpop.f32.mrf.mxu0
        %v522 = vadd.f32 0.0, %v521
        %v523 = vpop.f32.mrf.mxu0
        %v524 = vadd.f32 0.0, %v523
        %525 = vmatmul.bf16.gmra.mxu0 %v338
        %v526 = vpop.f32.mrf.mxu0
        %v527 = vadd.f32 0.0, %v526
        %v528 = vpop.f32.mrf.mxu0
        %v529 = vadd.f32 0.0, %v528
        %530 = vmatmul.bf16.gmra.mxu0 %v339
        %v531 = vpop.f32.mrf.mxu0
        %v532 = vadd.f32 0.0, %v531
        %v533 = vpop.f32.mrf.mxu0
        %v534 = vadd.f32 0.0, %v533
        %535 = vmatmul.bf16.gmra.mxu0 %v340
        %v536 = vpop.f32.mrf.mxu0
        %v537 = vadd.f32 0.0, %v536
        %v538 = vpop.f32.mrf.mxu0
        %v539 = vadd.f32 0.0, %v538
        %540 = vmatmul.bf16.gmra.mxu0 %v341
        %v541 = vpop.f32.mrf.mxu0
        %v542 = vadd.f32 0.0, %v541
        %v543 = vpop.f32.mrf.mxu0
        %v544 = vadd.f32 0.0, %v543
        %545 = vmatmul.bf16.gmra.mxu0 %v342
        %v546 = vpop.f32.mrf.mxu0
        %v547 = vadd.f32 0.0, %v546
        %v548 = vpop.f32.mrf.mxu0
        %v549 = vadd.f32 0.0, %v548
        %550 = vdwg.mxu0
        %551 = vst [vmem:[#allocation2] sm:$0xff] %v417
        %552 = vst [vmem:[#allocation2 + $0x8] sm:$0xff] %v419
        %553 = vst [vmem:[#allocation2 + $0x10] sm:$0xff] %v422
        %554 = vst [vmem:[#allocation2 + $0x18] sm:$0xff] %v424
        %555 = vst [vmem:[#allocation2 + $0x20] sm:$0xff] %v427
        %556 = vst [vmem:[#allocation2 + $0x28] sm:$0xff] %v429
        %557 = vst [vmem:[#allocation2 + $0x30] sm:$0xff] %v432
        %558 = vst [vmem:[#allocation2 + $0x38] sm:$0xff] %v434
        %559 = vst [vmem:[#allocation2 + $0x40] sm:$0xff] %v437
        %560 = vst [vmem:[#allocation2 + $0x48] sm:$0xff] %v439
        %561 = vst [vmem:[#allocation2 + $0x50] sm:$0xff] %v442
        %562 = vst [vmem:[#allocation2 + $0x58] sm:$0xff] %v444
        %563 = vst [vmem:[#allocation2 + $0x60] sm:$0xff] %v447
        %564 = vst [vmem:[#allocation2 + $0x68] sm:$0xff] %v449
        %565 = vst [vmem:[#allocation2 + $0x70] sm:$0xff] %v452
        %566 = vst [vmem:[#allocation2 + $0x78] sm:$0xff] %v454
        %567 = vst [vmem:[#allocation2 + $0x80] sm:$0xff] %v457
        %568 = vst [vmem:[#allocation2 + $0x88] sm:$0xff] %v459
        %569 = vst [vmem:[#allocation2 + $0x90] sm:$0xff] %v462
        %570 = vst [vmem:[#allocation2 + $0x98] sm:$0xff] %v464
        %571 = vst [vmem:[#allocation2 + $0xa0] sm:$0xff] %v467
        %572 = vst [vmem:[#allocation2 + $0xa8] sm:$0xff] %v469
        %573 = vst [vmem:[#allocation2 + $0xb0] sm:$0xff] %v472
        %574 = vst [vmem:[#allocation2 + $0xb8] sm:$0xff] %v474
        %575 = vst [vmem:[#allocation2 + $0xc0] sm:$0xff] %v477
        %576 = vst [vmem:[#allocation2 + $0xc8] sm:$0xff] %v479
        %577 = vst [vmem:[#allocation2 + $0xd0] sm:$0xff] %v482
        %578 = vst [vmem:[#allocation2 + $0xd8] sm:$0xff] %v484
        %579 = vst [vmem:[#allocation2 + $0xe0] sm:$0xff] %v487
        %580 = vst [vmem:[#allocation2 + $0xe8] sm:$0xff] %v489
        %581 = vst [vmem:[#allocation2 + $0xf0] sm:$0xff] %v492
        %582 = vst [vmem:[#allocation2 + $0xf8] sm:$0xff] %v494
        %583 = vst [vmem:[#allocation2 + $0x100] sm:$0xff] %v497
        %584 = vst [vmem:[#allocation2 + $0x108] sm:$0xff] %v499
        %585 = vst [vmem:[#allocation2 + $0x110] sm:$0xff] %v502
        %586 = vst [vmem:[#allocation2 + $0x118] sm:$0xff] %v504
        %587 = vst [vmem:[#allocation2 + $0x120] sm:$0xff] %v507
        %588 = vst [vmem:[#allocation2 + $0x128] sm:$0xff] %v509
        %589 = vst [vmem:[#allocation2 + $0x130] sm:$0xff] %v512
        %590 = vst [vmem:[#allocation2 + $0x138] sm:$0xff] %v514
        %591 = vst [vmem:[#allocation2 + $0x140] sm:$0xff] %v517
        %592 = vst [vmem:[#allocation2 + $0x148] sm:$0xff] %v519
        %593 = vst [vmem:[#allocation2 + $0x150] sm:$0xff] %v522
        %594 = vst [vmem:[#allocation2 + $0x158] sm:$0xff] %v524
        %595 = vst [vmem:[#allocation2 + $0x160] sm:$0xff] %v527
        %596 = vst [vmem:[#allocation2 + $0x168] sm:$0xff] %v529
        %597 = vst [vmem:[#allocation2 + $0x170] sm:$0xff] %v532
        %598 = vst [vmem:[#allocation2 + $0x178] sm:$0xff] %v534
        %599 = vst [vmem:[#allocation2 + $0x180] sm:$0xff] %v537
        %600 = vst [vmem:[#allocation2 + $0x188] sm:$0xff] %v539
        %601 = vst [vmem:[#allocation2 + $0x190] sm:$0xff] %v542
        %602 = vst [vmem:[#allocation2 + $0x198] sm:$0xff] %v544
        %603 = vst [vmem:[#allocation2 + $0x1a0] sm:$0xff] %v547
        %604 = vst [vmem:[#allocation2 + $0x1a8] sm:$0xff] %v549
        %v605 = vld [vmem:[%s221 + $0x8] sm:$0xff]
        %v606 = vld [vmem:[%s221 + $0x10] sm:$0xff]
        %v607 = vld [vmem:[%s221 + $0x18] sm:$0xff]
        %v608 = vld [vmem:[%s221 + $0x20] sm:$0xff]
        %v609 = vld [vmem:[%s221 + $0x28] sm:$0xff]
        %v610 = vld [vmem:[%s221 + $0x30] sm:$0xff]
        %v611 = vld [vmem:[%s221 + $0x38] sm:$0xff]
        %v612 = vld [vmem:[%s221 + $0x40] sm:$0xff]
        %v613 = vld [vmem:[%s221 + $0x48] sm:$0xff]
        %v614 = vld [vmem:[%s221 + $0x50] sm:$0xff]
        %v615 = vld [vmem:[%s221 + $0x58] sm:$0xff]
        %v616 = vld [vmem:[%s221 + $0x60] sm:$0xff]
        %v617 = vld [vmem:[%s221 + $0x68] sm:$0xff]
        %v618 = vld [vmem:[%s221 + $0x70] sm:$0xff]
        %v619 = vld [vmem:[%s221 + $0x78] sm:$0xff]
        %v620 = vld [vmem:[%s221 + $0x80] sm:$0xff]
        %v621 = vld [vmem:[%s221 + $0x88] sm:$0xff]
        %v622 = vld [vmem:[%s221 + $0x90] sm:$0xff]
        %v623 = vld [vmem:[%s221 + $0x98] sm:$0xff]
        %v624 = vld [vmem:[%s221 + $0xa0] sm:$0xff]
        %v625 = vld [vmem:[%s221 + $0xa8] sm:$0xff]
        %v626 = vld [vmem:[%s221 + $0xb0] sm:$0xff]
        %v627 = vld [vmem:[%s221 + $0xb8] sm:$0xff]
        %v628 = vld [vmem:[%s221 + $0xc0] sm:$0xff]
        %v629 = vld [vmem:[%s221 + $0xc8] sm:$0xff]
        %v630 = vld [vmem:[%s221 + $0xd0] sm:$0xff]
        %v631 = vld [vmem:[%s221 + $0xd8] sm:$0xff]
        %v632 = vld [vmem:[%s221 + $0xe0] sm:$0xff]
        %v633 = vld [vmem:[%s221 + $0xe8] sm:$0xff]
        %v634 = vld [vmem:[%s221 + $0xf0] sm:$0xff]
        %v635 = vld [vmem:[%s221 + $0xf8] sm:$0xff]
        %v636 = vld [vmem:[%s221 + $0x100] sm:$0xff]
        %v637 = vld [vmem:[%s221 + $0x108] sm:$0xff]
        %v638 = vld [vmem:[%s221 + $0x110] sm:$0xff]
        %v639 = vld [vmem:[%s221 + $0x118] sm:$0xff]
        %v640 = vld [vmem:[%s221 + $0x120] sm:$0xff]
        %v641 = vld [vmem:[%s221 + $0x128] sm:$0xff]
        %v642 = vld [vmem:[%s221 + $0x130] sm:$0xff]
        %v643 = vld [vmem:[%s221 + $0x138] sm:$0xff]
        %v644 = vld [vmem:[%s221 + $0x140] sm:$0xff]
        %v645 = vld [vmem:[%s221 + $0x148] sm:$0xff]
        %v646 = vld [vmem:[%s221 + $0x150] sm:$0xff]
        %v647 = vld [vmem:[%s221 + $0x158] sm:$0xff]
        %v648 = vld [vmem:[%s221 + $0x160] sm:$0xff]
        %v649 = vld [vmem:[%s221 + $0x168] sm:$0xff]
        %v650 = vld [vmem:[%s221 + $0x170] sm:$0xff]
        %v651 = vld [vmem:[%s221 + $0x178] sm:$0xff]
        %v652 = vld [vmem:[%s221 + $0x180] sm:$0xff]
        %v653 = vld [vmem:[%s221 + $0x188] sm:$0xff]
        %v654 = vld [vmem:[%s221 + $0x190] sm:$0xff]
        %v655 = vld [vmem:[%s221 + $0x198] sm:$0xff]
        %v656 = vld [vmem:[%s221 + $0x1a0] sm:$0xff]
        %v657 = vld [vmem:[%s221 + $0x1a8] sm:$0xff]
        %v658 = vld [vmem:[%s221 + $0x1b0] sm:$0xff]
        %v659 = vpack.c.bf16 %v606, %v605
        %v660 = vpack.c.bf16 %v608, %v607
        %v661 = vpack.c.bf16 %v610, %v609
        %v662 = vpack.c.bf16 %v612, %v611
        %v663 = vpack.c.bf16 %v614, %v613
        %v664 = vpack.c.bf16 %v616, %v615
        %v665 = vpack.c.bf16 %v618, %v617
        %v666 = vpack.c.bf16 %v620, %v619
        %v667 = vpack.c.bf16 %v622, %v621
        %v668 = vpack.c.bf16 %v624, %v623
        %v669 = vpack.c.bf16 %v626, %v625
        %v670 = vpack.c.bf16 %v628, %v627
        %v671 = vpack.c.bf16 %v630, %v629
        %v672 = vpack.c.bf16 %v632, %v631
        %v673 = vpack.c.bf16 %v634, %v633
        %v674 = vpack.c.bf16 %v636, %v635
        %v675 = vpack.c.bf16 %v638, %v637
        %v676 = vpack.c.bf16 %v640, %v639
        %v677 = vpack.c.bf16 %v642, %v641
        %v678 = vpack.c.bf16 %v644, %v643
        %v679 = vpack.c.bf16 %v646, %v645
        %v680 = vpack.c.bf16 %v648, %v647
        %v681 = vpack.c.bf16 %v650, %v649
        %v682 = vpack.c.bf16 %v652, %v651
        %v683 = vpack.c.bf16 %v654, %v653
        %v684 = vpack.c.bf16 %v656, %v655
        %v685 = vpack.c.bf16 %v658, %v657
        %s686 = scalar_lea.vmem [#allocation6], 64
        %v687 = vld [vmem:[%s686] sm:$0xf]
        %v688 = vld [vmem:[%s686 + $0x4] sm:$0xf]
        %v689 = vld [vmem:[%s686 + $0x8] sm:$0xf]
        %v690 = vld [vmem:[%s686 + $0xc] sm:$0xf]
        %v691 = vld [vmem:[%s686 + $0x10] sm:$0xf]
        %v692 = vld [vmem:[%s686 + $0x14] sm:$0xf]
        %v693 = vld [vmem:[%s686 + $0x18] sm:$0xf]
        %v694 = vld [vmem:[%s686 + $0x1c] sm:$0xf]
        %v695 = vld [vmem:[%s686 + $0x20] sm:$0xf]
        %v696 = vld [vmem:[%s686 + $0x24] sm:$0xf]
        %v697 = vld [vmem:[%s686 + $0x28] sm:$0xf]
        %v698 = vld [vmem:[%s686 + $0x2c] sm:$0xf]
        %v699 = vld [vmem:[%s686 + $0x30] sm:$0xf]
        %v700 = vld [vmem:[%s686 + $0x34] sm:$0xf]
        %v701 = vld [vmem:[%s686 + $0x38] sm:$0xf]
        %v702 = vld [vmem:[%s686 + $0x3c] sm:$0xf]
        %v719 = vunpack.c.l.b16 %v687
        %v720 = vunpack.c.l.b16 %v688
        %v721 = vunpack.c.l.b16 %v689
        %v722 = vunpack.c.l.b16 %v690
        %v723 = vunpack.c.l.b16 %v691
        %v724 = vunpack.c.l.b16 %v692
        %v725 = vunpack.c.l.b16 %v693
        %v726 = vunpack.c.l.b16 %v694
        %v727 = vunpack.c.l.b16 %v695
        %v728 = vunpack.c.l.b16 %v696
        %v729 = vunpack.c.l.b16 %v697
        %v730 = vunpack.c.l.b16 %v698
        %v731 = vunpack.c.l.b16 %v699
        %v732 = vunpack.c.l.b16 %v700
        %v733 = vunpack.c.l.b16 %v701
        %v734 = vunpack.c.l.b16 %v702
        %v735 = vpack.c.b16 %v720, %v719
        %v736 = vpack.c.b16 %v722, %v721
        %v737 = vpack.c.b16 %v724, %v723
        %v738 = vpack.c.b16 %v726, %v725
        %v739 = vpack.c.b16 %v728, %v727
        %v740 = vpack.c.b16 %v730, %v729
        %v741 = vpack.c.b16 %v732, %v731
        %v742 = vpack.c.b16 %v734, %v733
        %751 = vmatpush.bf16.msra.mxu0 %v742
        %752 = vmatpush.bf16.msra.mxu0 %v741
        %753 = vmatpush.bf16.msra.mxu0 %v740
        %754 = vmatpush.bf16.msra.mxu0 %v739
        %755 = vmatpush.bf16.msra.mxu0 %v738
        %756 = vmatpush.bf16.msra.mxu0 %v737
        %757 = vmatpush.bf16.msra.mxu0 %v736
        %758 = vmatpush.bf16.msra.mxu0 %v735
        %759 = vmatmul.bf16.gmra.mxu0 %v659
        %v760 = vpop.f32.mrf.mxu0
        %v761 = vadd.f32 0.0, %v760
        %v762 = vpop.f32.mrf.mxu0
        %v763 = vadd.f32 0.0, %v762
        %764 = vmatmul.bf16.gmra.mxu0 %v660
        %v765 = vpop.f32.mrf.mxu0
        %v766 = vadd.f32 0.0, %v765
        %v767 = vpop.f32.mrf.mxu0
        %v768 = vadd.f32 0.0, %v767
        %769 = vmatmul.bf16.gmra.mxu0 %v661
        %v770 = vpop.f32.mrf.mxu0
        %v771 = vadd.f32 0.0, %v770
        %v772 = vpop.f32.mrf.mxu0
        %v773 = vadd.f32 0.0, %v772
        %774 = vmatmul.bf16.gmra.mxu0 %v662
        %v775 = vpop.f32.mrf.mxu0
        %v776 = vadd.f32 0.0, %v775
        %v777 = vpop.f32.mrf.mxu0
        %v778 = vadd.f32 0.0, %v777
        %779 = vmatmul.bf16.gmra.mxu0 %v663
        %v780 = vpop.f32.mrf.mxu0
        %v781 = vadd.f32 0.0, %v780
        %v782 = vpop.f32.mrf.mxu0
        %v783 = vadd.f32 0.0, %v782
        %784 = vmatmul.bf16.gmra.mxu0 %v664
        %v785 = vpop.f32.mrf.mxu0
        %v786 = vadd.f32 0.0, %v785
        %v787 = vpop.f32.mrf.mxu0
        %v788 = vadd.f32 0.0, %v787
        %789 = vmatmul.bf16.gmra.mxu0 %v665
        %v790 = vpop.f32.mrf.mxu0
        %v791 = vadd.f32 0.0, %v790
        %v792 = vpop.f32.mrf.mxu0
        %v793 = vadd.f32 0.0, %v792
        %794 = vmatmul.bf16.gmra.mxu0 %v666
        %v795 = vpop.f32.mrf.mxu0
        %v796 = vadd.f32 0.0, %v795
        %v797 = vpop.f32.mrf.mxu0
        %v798 = vadd.f32 0.0, %v797
        %799 = vmatmul.bf16.gmra.mxu0 %v667
        %v800 = vpop.f32.mrf.mxu0
        %v801 = vadd.f32 0.0, %v800
        %v802 = vpop.f32.mrf.mxu0
        %v803 = vadd.f32 0.0, %v802
        %804 = vmatmul.bf16.gmra.mxu0 %v668
        %v805 = vpop.f32.mrf.mxu0
        %v806 = vadd.f32 0.0, %v805
        %v807 = vpop.f32.mrf.mxu0
        %v808 = vadd.f32 0.0, %v807
        %809 = vmatmul.bf16.gmra.mxu0 %v669
        %v810 = vpop.f32.mrf.mxu0
        %v811 = vadd.f32 0.0, %v810
        %v812 = vpop.f32.mrf.mxu0
        %v813 = vadd.f32 0.0, %v812
        %814 = vmatmul.bf16.gmra.mxu0 %v670
        %v815 = vpop.f32.mrf.mxu0
        %v816 = vadd.f32 0.0, %v815
        %v817 = vpop.f32.mrf.mxu0
        %v818 = vadd.f32 0.0, %v817
        %819 = vmatmul.bf16.gmra.mxu0 %v671
        %v820 = vpop.f32.mrf.mxu0
        %v821 = vadd.f32 0.0, %v820
        %v822 = vpop.f32.mrf.mxu0
        %v823 = vadd.f32 0.0, %v822
        %824 = vmatmul.bf16.gmra.mxu0 %v672
        %v825 = vpop.f32.mrf.mxu0
        %v826 = vadd.f32 0.0, %v825
        %v827 = vpop.f32.mrf.mxu0
        %v828 = vadd.f32 0.0, %v827
        %829 = vmatmul.bf16.gmra.mxu0 %v673
        %v830 = vpop.f32.mrf.mxu0
        %v831 = vadd.f32 0.0, %v830
        %v832 = vpop.f32.mrf.mxu0
        %v833 = vadd.f32 0.0, %v832
        %834 = vmatmul.bf16.gmra.mxu0 %v674
        %v835 = vpop.f32.mrf.mxu0
        %v836 = vadd.f32 0.0, %v835
        %v837 = vpop.f32.mrf.mxu0
        %v838 = vadd.f32 0.0, %v837
        %839 = vmatmul.bf16.gmra.mxu0 %v675
        %v840 = vpop.f32.mrf.mxu0
        %v841 = vadd.f32 0.0, %v840
        %v842 = vpop.f32.mrf.mxu0
        %v843 = vadd.f32 0.0, %v842
        %844 = vmatmul.bf16.gmra.mxu0 %v676
        %v845 = vpop.f32.mrf.mxu0
        %v846 = vadd.f32 0.0, %v845
        %v847 = vpop.f32.mrf.mxu0
        %v848 = vadd.f32 0.0, %v847
        %849 = vmatmul.bf16.gmra.mxu0 %v677
        %v850 = vpop.f32.mrf.mxu0
        %v851 = vadd.f32 0.0, %v850
        %v852 = vpop.f32.mrf.mxu0
        %v853 = vadd.f32 0.0, %v852
        %854 = vmatmul.bf16.gmra.mxu0 %v678
        %v855 = vpop.f32.mrf.mxu0
        %v856 = vadd.f32 0.0, %v855
        %v857 = vpop.f32.mrf.mxu0
        %v858 = vadd.f32 0.0, %v857
        %859 = vmatmul.bf16.gmra.mxu0 %v679
        %v860 = vpop.f32.mrf.mxu0
        %v861 = vadd.f32 0.0, %v860
        %v862 = vpop.f32.mrf.mxu0
        %v863 = vadd.f32 0.0, %v862
        %864 = vmatmul.bf16.gmra.mxu0 %v680
        %v865 = vpop.f32.mrf.mxu0
        %v866 = vadd.f32 0.0, %v865
        %v867 = vpop.f32.mrf.mxu0
        %v868 = vadd.f32 0.0, %v867
        %869 = vmatmul.bf16.gmra.mxu0 %v681
        %v870 = vpop.f32.mrf.mxu0
        %v871 = vadd.f32 0.0, %v870
        %v872 = vpop.f32.mrf.mxu0
        %v873 = vadd.f32 0.0, %v872
        %874 = vmatmul.bf16.gmra.mxu0 %v682
        %v875 = vpop.f32.mrf.mxu0
        %v876 = vadd.f32 0.0, %v875
        %v877 = vpop.f32.mrf.mxu0
        %v878 = vadd.f32 0.0, %v877
        %879 = vmatmul.bf16.gmra.mxu0 %v683
        %v880 = vpop.f32.mrf.mxu0
        %v881 = vadd.f32 0.0, %v880
        %v882 = vpop.f32.mrf.mxu0
        %v883 = vadd.f32 0.0, %v882
        %884 = vmatmul.bf16.gmra.mxu0 %v684
        %v885 = vpop.f32.mrf.mxu0
        %v886 = vadd.f32 0.0, %v885
        %v887 = vpop.f32.mrf.mxu0
        %v888 = vadd.f32 0.0, %v887
        %889 = vmatmul.bf16.gmra.mxu0 %v685
        %v890 = vpop.f32.mrf.mxu0
        %v891 = vadd.f32 0.0, %v890
        %v892 = vpop.f32.mrf.mxu0
        %v893 = vadd.f32 0.0, %v892
        %894 = vdwg.mxu0
        %v895 = vld [vmem:[#allocation2] sm:$0xff]
        %v896 = vld [vmem:[#allocation2 + $0x8] sm:$0xff]
        %v897 = vld [vmem:[#allocation2 + $0x10] sm:$0xff]
        %v898 = vld [vmem:[#allocation2 + $0x18] sm:$0xff]
        %v899 = vld [vmem:[#allocation2 + $0x20] sm:$0xff]
        %v900 = vld [vmem:[#allocation2 + $0x28] sm:$0xff]
        %v901 = vld [vmem:[#allocation2 + $0x30] sm:$0xff]
        %v902 = vld [vmem:[#allocation2 + $0x38] sm:$0xff]
        %v903 = vld [vmem:[#allocation2 + $0x40] sm:$0xff]
        %v904 = vld [vmem:[#allocation2 + $0x48] sm:$0xff]
        %v905 = vld [vmem:[#allocation2 + $0x50] sm:$0xff]
        %v906 = vld [vmem:[#allocation2 + $0x58] sm:$0xff]
        %v907 = vld [vmem:[#allocation2 + $0x60] sm:$0xff]
        %v908 = vld [vmem:[#allocation2 + $0x68] sm:$0xff]
        %v909 = vld [vmem:[#allocation2 + $0x70] sm:$0xff]
        %v910 = vld [vmem:[#allocation2 + $0x78] sm:$0xff]
        %v911 = vld [vmem:[#allocation2 + $0x80] sm:$0xff]
        %v912 = vld [vmem:[#allocation2 + $0x88] sm:$0xff]
        %v913 = vld [vmem:[#allocation2 + $0x90] sm:$0xff]
        %v914 = vld [vmem:[#allocation2 + $0x98] sm:$0xff]
        %v915 = vld [vmem:[#allocation2 + $0xa0] sm:$0xff]
        %v916 = vld [vmem:[#allocation2 + $0xa8] sm:$0xff]
        %v917 = vld [vmem:[#allocation2 + $0xb0] sm:$0xff]
        %v918 = vld [vmem:[#allocation2 + $0xb8] sm:$0xff]
        %v919 = vld [vmem:[#allocation2 + $0xc0] sm:$0xff]
        %v920 = vld [vmem:[#allocation2 + $0xc8] sm:$0xff]
        %v921 = vld [vmem:[#allocation2 + $0xd0] sm:$0xff]
        %v922 = vld [vmem:[#allocation2 + $0xd8] sm:$0xff]
        %v923 = vld [vmem:[#allocation2 + $0xe0] sm:$0xff]
        %v924 = vld [vmem:[#allocation2 + $0xe8] sm:$0xff]
        %v925 = vld [vmem:[#allocation2 + $0xf0] sm:$0xff]
        %v926 = vld [vmem:[#allocation2 + $0xf8] sm:$0xff]
        %v927 = vld [vmem:[#allocation2 + $0x100] sm:$0xff]
        %v928 = vld [vmem:[#allocation2 + $0x108] sm:$0xff]
        %v929 = vld [vmem:[#allocation2 + $0x110] sm:$0xff]
        %v930 = vld [vmem:[#allocation2 + $0x118] sm:$0xff]
        %v931 = vld [vmem:[#allocation2 + $0x120] sm:$0xff]
        %v932 = vld [vmem:[#allocation2 + $0x128] sm:$0xff]
        %v933 = vld [vmem:[#allocation2 + $0x130] sm:$0xff]
        %v934 = vld [vmem:[#allocation2 + $0x138] sm:$0xff]
        %v935 = vld [vmem:[#allocation2 + $0x140] sm:$0xff]
        %v936 = vld [vmem:[#allocation2 + $0x148] sm:$0xff]
        %v937 = vld [vmem:[#allocation2 + $0x150] sm:$0xff]
        %v938 = vld [vmem:[#allocation2 + $0x158] sm:$0xff]
        %v939 = vld [vmem:[#allocation2 + $0x160] sm:$0xff]
        %v940 = vld [vmem:[#allocation2 + $0x168] sm:$0xff]
        %v941 = vld [vmem:[#allocation2 + $0x170] sm:$0xff]
        %v942 = vld [vmem:[#allocation2 + $0x178] sm:$0xff]
        %v943 = vld [vmem:[#allocation2 + $0x180] sm:$0xff]
        %v944 = vld [vmem:[#allocation2 + $0x188] sm:$0xff]
        %v945 = vld [vmem:[#allocation2 + $0x190] sm:$0xff]
        %v946 = vld [vmem:[#allocation2 + $0x198] sm:$0xff]
        %v947 = vld [vmem:[#allocation2 + $0x1a0] sm:$0xff]
        %v948 = vld [vmem:[#allocation2 + $0x1a8] sm:$0xff]
        %v949 = vadd.f32 %v895, %v761
        %v950 = vadd.f32 %v896, %v763
        %v951 = vadd.f32 %v897, %v766
        %v952 = vadd.f32 %v898, %v768
        %v953 = vadd.f32 %v899, %v771
        %v954 = vadd.f32 %v900, %v773
        %v955 = vadd.f32 %v901, %v776
        %v956 = vadd.f32 %v902, %v778
        %v957 = vadd.f32 %v903, %v781
        %v958 = vadd.f32 %v904, %v783
        %v959 = vadd.f32 %v905, %v786
        %v960 = vadd.f32 %v906, %v788
        %v961 = vadd.f32 %v907, %v791
        %v962 = vadd.f32 %v908, %v793
        %v963 = vadd.f32 %v909, %v796
        %v964 = vadd.f32 %v910, %v798
        %v965 = vadd.f32 %v911, %v801
        %v966 = vadd.f32 %v912, %v803
        %v967 = vadd.f32 %v913, %v806
        %v968 = vadd.f32 %v914, %v808
        %v969 = vadd.f32 %v915, %v811
        %v970 = vadd.f32 %v916, %v813
        %v971 = vadd.f32 %v917, %v816
        %v972 = vadd.f32 %v918, %v818
        %v973 = vadd.f32 %v919, %v821
        %v974 = vadd.f32 %v920, %v823
        %v975 = vadd.f32 %v921, %v826
        %v976 = vadd.f32 %v922, %v828
        %v977 = vadd.f32 %v923, %v831
        %v978 = vadd.f32 %v924, %v833
        %v979 = vadd.f32 %v925, %v836
        %v980 = vadd.f32 %v926, %v838
        %v981 = vadd.f32 %v927, %v841
        %v982 = vadd.f32 %v928, %v843
        %v983 = vadd.f32 %v929, %v846
        %v984 = vadd.f32 %v930, %v848
        %v985 = vadd.f32 %v931, %v851
        %v986 = vadd.f32 %v932, %v853
        %v987 = vadd.f32 %v933, %v856
        %v988 = vadd.f32 %v934, %v858
        %v989 = vadd.f32 %v935, %v861
        %v990 = vadd.f32 %v936, %v863
        %v991 = vadd.f32 %v937, %v866
        %v992 = vadd.f32 %v938, %v868
        %v993 = vadd.f32 %v939, %v871
        %v994 = vadd.f32 %v940, %v873
        %v995 = vadd.f32 %v941, %v876
        %v996 = vadd.f32 %v942, %v878
        %v997 = vadd.f32 %v943, %v881
        %v998 = vadd.f32 %v944, %v883
        %v999 = vadd.f32 %v945, %v886
        %v1000 = vadd.f32 %v946, %v888
        %v1001 = vadd.f32 %v947, %v891
        %v1002 = vadd.f32 %v948, %v893
        %1003 = vst [vmem:[#allocation2] sm:$0xff] %v949
        %1004 = vst [vmem:[#allocation2 + $0x8] sm:$0xff] %v950
        %1005 = vst [vmem:[#allocation2 + $0x10] sm:$0xff] %v951
        %1006 = vst [vmem:[#allocation2 + $0x18] sm:$0xff] %v952
        %1007 = vst [vmem:[#allocation2 + $0x20] sm:$0xff] %v953
        %1008 = vst [vmem:[#allocation2 + $0x28] sm:$0xff] %v954
        %1009 = vst [vmem:[#allocation2 + $0x30] sm:$0xff] %v955
        %1010 = vst [vmem:[#allocation2 + $0x38] sm:$0xff] %v956
        %1011 = vst [vmem:[#allocation2 + $0x40] sm:$0xff] %v957
        %1012 = vst [vmem:[#allocation2 + $0x48] sm:$0xff] %v958
        %1013 = vst [vmem:[#allocation2 + $0x50] sm:$0xff] %v959
        %1014 = vst [vmem:[#allocation2 + $0x58] sm:$0xff] %v960
        %1015 = vst [vmem:[#allocation2 + $0x60] sm:$0xff] %v961
        %1016 = vst [vmem:[#allocation2 + $0x68] sm:$0xff] %v962
        %1017 = vst [vmem:[#allocation2 + $0x70] sm:$0xff] %v963
        %1018 = vst [vmem:[#allocation2 + $0x78] sm:$0xff] %v964
        %1019 = vst [vmem:[#allocation2 + $0x80] sm:$0xff] %v965
        %1020 = vst [vmem:[#allocation2 + $0x88] sm:$0xff] %v966
        %1021 = vst [vmem:[#allocation2 + $0x90] sm:$0xff] %v967
        %1022 = vst [vmem:[#allocation2 + $0x98] sm:$0xff] %v968
        %1023 = vst [vmem:[#allocation2 + $0xa0] sm:$0xff] %v969
        %1024 = vst [vmem:[#allocation2 + $0xa8] sm:$0xff] %v970
        %1025 = vst [vmem:[#allocation2 + $0xb0] sm:$0xff] %v971
        %1026 = vst [vmem:[#allocation2 + $0xb8] sm:$0xff] %v972
        %1027 = vst [vmem:[#allocation2 + $0xc0] sm:$0xff] %v973
        %1028 = vst [vmem:[#allocation2 + $0xc8] sm:$0xff] %v974
        %1029 = vst [vmem:[#allocation2 + $0xd0] sm:$0xff] %v975
        %1030 = vst [vmem:[#allocation2 + $0xd8] sm:$0xff] %v976
        %1031 = vst [vmem:[#allocation2 + $0xe0] sm:$0xff] %v977
        %1032 = vst [vmem:[#allocation2 + $0xe8] sm:$0xff] %v978
        %1033 = vst [vmem:[#allocation2 + $0xf0] sm:$0xff] %v979
        %1034 = vst [vmem:[#allocation2 + $0xf8] sm:$0xff] %v980
        %1035 = vst [vmem:[#allocation2 + $0x100] sm:$0xff] %v981
        %1036 = vst [vmem:[#allocation2 + $0x108] sm:$0xff] %v982
        %1037 = vst [vmem:[#allocation2 + $0x110] sm:$0xff] %v983
        %1038 = vst [vmem:[#allocation2 + $0x118] sm:$0xff] %v984
        %1039 = vst [vmem:[#allocation2 + $0x120] sm:$0xff] %v985
        %1040 = vst [vmem:[#allocation2 + $0x128] sm:$0xff] %v986
        %1041 = vst [vmem:[#allocation2 + $0x130] sm:$0xff] %v987
        %1042 = vst [vmem:[#allocation2 + $0x138] sm:$0xff] %v988
        %1043 = vst [vmem:[#allocation2 + $0x140] sm:$0xff] %v989
        %1044 = vst [vmem:[#allocation2 + $0x148] sm:$0xff] %v990
        %1045 = vst [vmem:[#allocation2 + $0x150] sm:$0xff] %v991
        %1046 = vst [vmem:[#allocation2 + $0x158] sm:$0xff] %v992
        %1047 = vst [vmem:[#allocation2 + $0x160] sm:$0xff] %v993
        %1048 = vst [vmem:[#allocation2 + $0x168] sm:$0xff] %v994
        %1049 = vst [vmem:[#allocation2 + $0x170] sm:$0xff] %v995
        %1050 = vst [vmem:[#allocation2 + $0x178] sm:$0xff] %v996
        %1051 = vst [vmem:[#allocation2 + $0x180] sm:$0xff] %v997
        %1052 = vst [vmem:[#allocation2 + $0x188] sm:$0xff] %v998
        %1053 = vst [vmem:[#allocation2 + $0x190] sm:$0xff] %v999
        %1054 = vst [vmem:[#allocation2 + $0x198] sm:$0xff] %v1000
        %1055 = vst [vmem:[#allocation2 + $0x1a0] sm:$0xff] %v1001
        %1056 = vst [vmem:[#allocation2 + $0x1a8] sm:$0xff] %v1002
        %v1057 = vld [vmem:[%s221 + $0x9] sm:$0xff]
        %v1058 = vld [vmem:[%s221 + $0x11] sm:$0xff]
        %v1059 = vld [vmem:[%s221 + $0x19] sm:$0xff]
        %v1060 = vld [vmem:[%s221 + $0x21] sm:$0xff]
        %v1061 = vld [vmem:[%s221 + $0x29] sm:$0xff]
        %v1062 = vld [vmem:[%s221 + $0x31] sm:$0xff]
        %v1063 = vld [vmem:[%s221 + $0x39] sm:$0xff]
        %v1064 = vld [vmem:[%s221 + $0x41] sm:$0xff]
        %v1065 = vld [vmem:[%s221 + $0x49] sm:$0xff]
        %v1066 = vld [vmem:[%s221 + $0x51] sm:$0xff]
        %v1067 = vld [vmem:[%s221 + $0x59] sm:$0xff]
        %v1068 = vld [vmem:[%s221 + $0x61] sm:$0xff]
        %v1069 = vld [vmem:[%s221 + $0x69] sm:$0xff]
        %v1070 = vld [vmem:[%s221 + $0x71] sm:$0xff]
        %v1071 = vld [vmem:[%s221 + $0x79] sm:$0xff]
        %v1072 = vld [vmem:[%s221 + $0x81] sm:$0xff]
        %v1073 = vld [vmem:[%s221 + $0x89] sm:$0xff]
        %v1074 = vld [vmem:[%s221 + $0x91] sm:$0xff]
        %v1075 = vld [vmem:[%s221 + $0x99] sm:$0xff]
        %v1076 = vld [vmem:[%s221 + $0xa1] sm:$0xff]
        %v1077 = vld [vmem:[%s221 + $0xa9] sm:$0xff]
        %v1078 = vld [vmem:[%s221 + $0xb1] sm:$0xff]
        %v1079 = vld [vmem:[%s221 + $0xb9] sm:$0xff]
        %v1080 = vld [vmem:[%s221 + $0xc1] sm:$0xff]
        %v1081 = vld [vmem:[%s221 + $0xc9] sm:$0xff]
        %v1082 = vld [vmem:[%s221 + $0xd1] sm:$0xff]
        %v1083 = vld [vmem:[%s221 + $0xd9] sm:$0xff]
        %v1084 = vld [vmem:[%s221 + $0xe1] sm:$0xff]
        %v1085 = vld [vmem:[%s221 + $0xe9] sm:$0xff]
        %v1086 = vld [vmem:[%s221 + $0xf1] sm:$0xff]
        %v1087 = vld [vmem:[%s221 + $0xf9] sm:$0xff]
        %v1088 = vld [vmem:[%s221 + $0x101] sm:$0xff]
        %v1089 = vld [vmem:[%s221 + $0x109] sm:$0xff]
        %v1090 = vld [vmem:[%s221 + $0x111] sm:$0xff]
        %v1091 = vld [vmem:[%s221 + $0x119] sm:$0xff]
        %v1092 = vld [vmem:[%s221 + $0x121] sm:$0xff]
        %v1093 = vld [vmem:[%s221 + $0x129] sm:$0xff]
        %v1094 = vld [vmem:[%s221 + $0x131] sm:$0xff]
        %v1095 = vld [vmem:[%s221 + $0x139] sm:$0xff]
        %v1096 = vld [vmem:[%s221 + $0x141] sm:$0xff]
        %v1097 = vld [vmem:[%s221 + $0x149] sm:$0xff]
        %v1098 = vld [vmem:[%s221 + $0x151] sm:$0xff]
        %v1099 = vld [vmem:[%s221 + $0x159] sm:$0xff]
        %v1100 = vld [vmem:[%s221 + $0x161] sm:$0xff]
        %v1101 = vld [vmem:[%s221 + $0x169] sm:$0xff]
        %v1102 = vld [vmem:[%s221 + $0x171] sm:$0xff]
        %v1103 = vld [vmem:[%s221 + $0x179] sm:$0xff]
        %v1104 = vld [vmem:[%s221 + $0x181] sm:$0xff]
        %v1105 = vld [vmem:[%s221 + $0x189] sm:$0xff]
        %v1106 = vld [vmem:[%s221 + $0x191] sm:$0xff]
        %v1107 = vld [vmem:[%s221 + $0x199] sm:$0xff]
        %v1108 = vld [vmem:[%s221 + $0x1a1] sm:$0xff]
        %v1109 = vld [vmem:[%s221 + $0x1a9] sm:$0xff]
        %v1110 = vld [vmem:[%s221 + $0x1b1] sm:$0xff]
        %v1111 = vpack.c.bf16 %v1058, %v1057
        %v1112 = vpack.c.bf16 %v1060, %v1059
        %v1113 = vpack.c.bf16 %v1062, %v1061
        %v1114 = vpack.c.bf16 %v1064, %v1063
        %v1115 = vpack.c.bf16 %v1066, %v1065
        %v1116 = vpack.c.bf16 %v1068, %v1067
        %v1117 = vpack.c.bf16 %v1070, %v1069
        %v1118 = vpack.c.bf16 %v1072, %v1071
        %v1119 = vpack.c.bf16 %v1074, %v1073
        %v1120 = vpack.c.bf16 %v1076, %v1075
        %v1121 = vpack.c.bf16 %v1078, %v1077
        %v1122 = vpack.c.bf16 %v1080, %v1079
        %v1123 = vpack.c.bf16 %v1082, %v1081
        %v1124 = vpack.c.bf16 %v1084, %v1083
        %v1125 = vpack.c.bf16 %v1086, %v1085
        %v1126 = vpack.c.bf16 %v1088, %v1087
        %v1127 = vpack.c.bf16 %v1090, %v1089
        %v1128 = vpack.c.bf16 %v1092, %v1091
        %v1129 = vpack.c.bf16 %v1094, %v1093
        %v1130 = vpack.c.bf16 %v1096, %v1095
        %v1131 = vpack.c.bf16 %v1098, %v1097
        %v1132 = vpack.c.bf16 %v1100, %v1099
        %v1133 = vpack.c.bf16 %v1102, %v1101
        %v1134 = vpack.c.bf16 %v1104, %v1103
        %v1135 = vpack.c.bf16 %v1106, %v1105
        %v1136 = vpack.c.bf16 %v1108, %v1107
        %v1137 = vpack.c.bf16 %v1110, %v1109
        %s1138 = scalar_lea.vmem [#allocation6], 128
        %v1139 = vld [vmem:[%s1138] sm:$0xf]
        %v1140 = vld [vmem:[%s1138 + $0x4] sm:$0xf]
        %v1141 = vld [vmem:[%s1138 + $0x8] sm:$0xf]
        %v1142 = vld [vmem:[%s1138 + $0xc] sm:$0xf]
        %v1143 = vld [vmem:[%s1138 + $0x10] sm:$0xf]
        %v1144 = vld [vmem:[%s1138 + $0x14] sm:$0xf]
        %v1145 = vld [vmem:[%s1138 + $0x18] sm:$0xf]
        %v1146 = vld [vmem:[%s1138 + $0x1c] sm:$0xf]
        %v1147 = vld [vmem:[%s1138 + $0x20] sm:$0xf]
        %v1148 = vld [vmem:[%s1138 + $0x24] sm:$0xf]
        %v1149 = vld [vmem:[%s1138 + $0x28] sm:$0xf]
        %v1150 = vld [vmem:[%s1138 + $0x2c] sm:$0xf]
        %v1151 = vld [vmem:[%s1138 + $0x30] sm:$0xf]
        %v1152 = vld [vmem:[%s1138 + $0x34] sm:$0xf]
        %v1153 = vld [vmem:[%s1138 + $0x38] sm:$0xf]
        %v1154 = vld [vmem:[%s1138 + $0x3c] sm:$0xf]
        %v1171 = vunpack.c.l.b16 %v1139
        %v1172 = vunpack.c.l.b16 %v1140
        %v1173 = vunpack.c.l.b16 %v1141
        %v1174 = vunpack.c.l.b16 %v1142
        %v1175 = vunpack.c.l.b16 %v1143
        %v1176 = vunpack.c.l.b16 %v1144
        %v1177 = vunpack.c.l.b16 %v1145
        %v1178 = vunpack.c.l.b16 %v1146
        %v1179 = vunpack.c.l.b16 %v1147
        %v1180 = vunpack.c.l.b16 %v1148
        %v1181 = vunpack.c.l.b16 %v1149
        %v1182 = vunpack.c.l.b16 %v1150
        %v1183 = vunpack.c.l.b16 %v1151
        %v1184 = vunpack.c.l.b16 %v1152
        %v1185 = vunpack.c.l.b16 %v1153
        %v1186 = vunpack.c.l.b16 %v1154
        %v1187 = vpack.c.b16 %v1172, %v1171
        %v1188 = vpack.c.b16 %v1174, %v1173
        %v1189 = vpack.c.b16 %v1176, %v1175
        %v1190 = vpack.c.b16 %v1178, %v1177
        %v1191 = vpack.c.b16 %v1180, %v1179
        %v1192 = vpack.c.b16 %v1182, %v1181
        %v1193 = vpack.c.b16 %v1184, %v1183
        %v1194 = vpack.c.b16 %v1186, %v1185
        %1203 = vmatpush.bf16.msra.mxu0 %v1194
        %1204 = vmatpush.bf16.msra.mxu0 %v1193
        %1205 = vmatpush.bf16.msra.mxu0 %v1192
        %1206 = vmatpush.bf16.msra.mxu0 %v1191
        %1207 = vmatpush.bf16.msra.mxu0 %v1190
        %1208 = vmatpush.bf16.msra.mxu0 %v1189
        %1209 = vmatpush.bf16.msra.mxu0 %v1188
        %1210 = vmatpush.bf16.msra.mxu0 %v1187
        %1211 = vmatmul.bf16.gmra.mxu0 %v1111
        %v1212 = vpop.f32.mrf.mxu0
        %v1213 = vadd.f32 0.0, %v1212
        %v1214 = vpop.f32.mrf.mxu0
        %v1215 = vadd.f32 0.0, %v1214
        %1216 = vmatmul.bf16.gmra.mxu0 %v1112
        %v1217 = vpop.f32.mrf.mxu0
        %v1218 = vadd.f32 0.0, %v1217
        %v1219 = vpop.f32.mrf.mxu0
        %v1220 = vadd.f32 0.0, %v1219
        %1221 = vmatmul.bf16.gmra.mxu0 %v1113
        %v1222 = vpop.f32.mrf.mxu0
        %v1223 = vadd.f32 0.0, %v1222
        %v1224 = vpop.f32.mrf.mxu0
        %v1225 = vadd.f32 0.0, %v1224
        %1226 = vmatmul.bf16.gmra.mxu0 %v1114
        %v1227 = vpop.f32.mrf.mxu0
        %v1228 = vadd.f32 0.0, %v1227
        %v1229 = vpop.f32.mrf.mxu0
        %v1230 = vadd.f32 0.0, %v1229
        %1231 = vmatmul.bf16.gmra.mxu0 %v1115
        %v1232 = vpop.f32.mrf.mxu0
        %v1233 = vadd.f32 0.0, %v1232
        %v1234 = vpop.f32.mrf.mxu0
        %v1235 = vadd.f32 0.0, %v1234
        %1236 = vmatmul.bf16.gmra.mxu0 %v1116
        %v1237 = vpop.f32.mrf.mxu0
        %v1238 = vadd.f32 0.0, %v1237
        %v1239 = vpop.f32.mrf.mxu0
        %v1240 = vadd.f32 0.0, %v1239
        %1241 = vmatmul.bf16.gmra.mxu0 %v1117
        %v1242 = vpop.f32.mrf.mxu0
        %v1243 = vadd.f32 0.0, %v1242
        %v1244 = vpop.f32.mrf.mxu0
        %v1245 = vadd.f32 0.0, %v1244
        %1246 = vmatmul.bf16.gmra.mxu0 %v1118
        %v1247 = vpop.f32.mrf.mxu0
        %v1248 = vadd.f32 0.0, %v1247
        %v1249 = vpop.f32.mrf.mxu0
        %v1250 = vadd.f32 0.0, %v1249
        %1251 = vmatmul.bf16.gmra.mxu0 %v1119
        %v1252 = vpop.f32.mrf.mxu0
        %v1253 = vadd.f32 0.0, %v1252
        %v1254 = vpop.f32.mrf.mxu0
        %v1255 = vadd.f32 0.0, %v1254
        %1256 = vmatmul.bf16.gmra.mxu0 %v1120
        %v1257 = vpop.f32.mrf.mxu0
        %v1258 = vadd.f32 0.0, %v1257
        %v1259 = vpop.f32.mrf.mxu0
        %v1260 = vadd.f32 0.0, %v1259
        %1261 = vmatmul.bf16.gmra.mxu0 %v1121
        %v1262 = vpop.f32.mrf.mxu0
        %v1263 = vadd.f32 0.0, %v1262
        %v1264 = vpop.f32.mrf.mxu0
        %v1265 = vadd.f32 0.0, %v1264
        %1266 = vmatmul.bf16.gmra.mxu0 %v1122
        %v1267 = vpop.f32.mrf.mxu0
        %v1268 = vadd.f32 0.0, %v1267
        %v1269 = vpop.f32.mrf.mxu0
        %v1270 = vadd.f32 0.0, %v1269
        %1271 = vmatmul.bf16.gmra.mxu0 %v1123
        %v1272 = vpop.f32.mrf.mxu0
        %v1273 = vadd.f32 0.0, %v1272
        %v1274 = vpop.f32.mrf.mxu0
        %v1275 = vadd.f32 0.0, %v1274
        %1276 = vmatmul.bf16.gmra.mxu0 %v1124
        %v1277 = vpop.f32.mrf.mxu0
        %v1278 = vadd.f32 0.0, %v1277
        %v1279 = vpop.f32.mrf.mxu0
        %v1280 = vadd.f32 0.0, %v1279
        %1281 = vmatmul.bf16.gmra.mxu0 %v1125
        %v1282 = vpop.f32.mrf.mxu0
        %v1283 = vadd.f32 0.0, %v1282
        %v1284 = vpop.f32.mrf.mxu0
        %v1285 = vadd.f32 0.0, %v1284
        %1286 = vmatmul.bf16.gmra.mxu0 %v1126
        %v1287 = vpop.f32.mrf.mxu0
        %v1288 = vadd.f32 0.0, %v1287
        %v1289 = vpop.f32.mrf.mxu0
        %v1290 = vadd.f32 0.0, %v1289
        %1291 = vmatmul.bf16.gmra.mxu0 %v1127
        %v1292 = vpop.f32.mrf.mxu0
        %v1293 = vadd.f32 0.0, %v1292
        %v1294 = vpop.f32.mrf.mxu0
        %v1295 = vadd.f32 0.0, %v1294
        %1296 = vmatmul.bf16.gmra.mxu0 %v1128
        %v1297 = vpop.f32.mrf.mxu0
        %v1298 = vadd.f32 0.0, %v1297
        %v1299 = vpop.f32.mrf.mxu0
        %v1300 = vadd.f32 0.0, %v1299
        %1301 = vmatmul.bf16.gmra.mxu0 %v1129
        %v1302 = vpop.f32.mrf.mxu0
        %v1303 = vadd.f32 0.0, %v1302
        %v1304 = vpop.f32.mrf.mxu0
        %v1305 = vadd.f32 0.0, %v1304
        %1306 = vmatmul.bf16.gmra.mxu0 %v1130
        %v1307 = vpop.f32.mrf.mxu0
        %v1308 = vadd.f32 0.0, %v1307
        %v1309 = vpop.f32.mrf.mxu0
        %v1310 = vadd.f32 0.0, %v1309
        %1311 = vmatmul.bf16.gmra.mxu0 %v1131
        %v1312 = vpop.f32.mrf.mxu0
        %v1313 = vadd.f32 0.0, %v1312
        %v1314 = vpop.f32.mrf.mxu0
        %v1315 = vadd.f32 0.0, %v1314
        %1316 = vmatmul.bf16.gmra.mxu0 %v1132
        %v1317 = vpop.f32.mrf.mxu0
        %v1318 = vadd.f32 0.0, %v1317
        %v1319 = vpop.f32.mrf.mxu0
        %v1320 = vadd.f32 0.0, %v1319
        %1321 = vmatmul.bf16.gmra.mxu0 %v1133
        %v1322 = vpop.f32.mrf.mxu0
        %v1323 = vadd.f32 0.0, %v1322
        %v1324 = vpop.f32.mrf.mxu0
        %v1325 = vadd.f32 0.0, %v1324
        %1326 = vmatmul.bf16.gmra.mxu0 %v1134
        %v1327 = vpop.f32.mrf.mxu0
        %v1328 = vadd.f32 0.0, %v1327
        %v1329 = vpop.f32.mrf.mxu0
        %v1330 = vadd.f32 0.0, %v1329
        %1331 = vmatmul.bf16.gmra.mxu0 %v1135
        %v1332 = vpop.f32.mrf.mxu0
        %v1333 = vadd.f32 0.0, %v1332
        %v1334 = vpop.f32.mrf.mxu0
        %v1335 = vadd.f32 0.0, %v1334
        %1336 = vmatmul.bf16.gmra.mxu0 %v1136
        %v1337 = vpop.f32.mrf.mxu0
        %v1338 = vadd.f32 0.0, %v1337
        %v1339 = vpop.f32.mrf.mxu0
        %v1340 = vadd.f32 0.0, %v1339
        %1341 = vmatmul.bf16.gmra.mxu0 %v1137
        %v1342 = vpop.f32.mrf.mxu0
        %v1343 = vadd.f32 0.0, %v1342
        %v1344 = vpop.f32.mrf.mxu0
        %v1345 = vadd.f32 0.0, %v1344
        %1346 = vdwg.mxu0
        %v1347 = vld [vmem:[#allocation2] sm:$0xff]
        %v1348 = vld [vmem:[#allocation2 + $0x8] sm:$0xff]
        %v1349 = vld [vmem:[#allocation2 + $0x10] sm:$0xff]
        %v1350 = vld [vmem:[#allocation2 + $0x18] sm:$0xff]
        %v1351 = vld [vmem:[#allocation2 + $0x20] sm:$0xff]
        %v1352 = vld [vmem:[#allocation2 + $0x28] sm:$0xff]
        %v1353 = vld [vmem:[#allocation2 + $0x30] sm:$0xff]
        %v1354 = vld [vmem:[#allocation2 + $0x38] sm:$0xff]
        %v1355 = vld [vmem:[#allocation2 + $0x40] sm:$0xff]
        %v1356 = vld [vmem:[#allocation2 + $0x48] sm:$0xff]
        %v1357 = vld [vmem:[#allocation2 + $0x50] sm:$0xff]
        %v1358 = vld [vmem:[#allocation2 + $0x58] sm:$0xff]
        %v1359 = vld [vmem:[#allocation2 + $0x60] sm:$0xff]
        %v1360 = vld [vmem:[#allocation2 + $0x68] sm:$0xff]
        %v1361 = vld [vmem:[#allocation2 + $0x70] sm:$0xff]
        %v1362 = vld [vmem:[#allocation2 + $0x78] sm:$0xff]
        %v1363 = vld [vmem:[#allocation2 + $0x80] sm:$0xff]
        %v1364 = vld [vmem:[#allocation2 + $0x88] sm:$0xff]
        %v1365 = vld [vmem:[#allocation2 + $0x90] sm:$0xff]
        %v1366 = vld [vmem:[#allocation2 + $0x98] sm:$0xff]
        %v1367 = vld [vmem:[#allocation2 + $0xa0] sm:$0xff]
        %v1368 = vld [vmem:[#allocation2 + $0xa8] sm:$0xff]
        %v1369 = vld [vmem:[#allocation2 + $0xb0] sm:$0xff]
        %v1370 = vld [vmem:[#allocation2 + $0xb8] sm:$0xff]
        %v1371 = vld [vmem:[#allocation2 + $0xc0] sm:$0xff]
        %v1372 = vld [vmem:[#allocation2 + $0xc8] sm:$0xff]
        %v1373 = vld [vmem:[#allocation2 + $0xd0] sm:$0xff]
        %v1374 = vld [vmem:[#allocation2 + $0xd8] sm:$0xff]
        %v1375 = vld [vmem:[#allocation2 + $0xe0] sm:$0xff]
        %v1376 = vld [vmem:[#allocation2 + $0xe8] sm:$0xff]
        %v1377 = vld [vmem:[#allocation2 + $0xf0] sm:$0xff]
        %v1378 = vld [vmem:[#allocation2 + $0xf8] sm:$0xff]
        %v1379 = vld [vmem:[#allocation2 + $0x100] sm:$0xff]
        %v1380 = vld [vmem:[#allocation2 + $0x108] sm:$0xff]
        %v1381 = vld [vmem:[#allocation2 + $0x110] sm:$0xff]
        %v1382 = vld [vmem:[#allocation2 + $0x118] sm:$0xff]
        %v1383 = vld [vmem:[#allocation2 + $0x120] sm:$0xff]
        %v1384 = vld [vmem:[#allocation2 + $0x128] sm:$0xff]
        %v1385 = vld [vmem:[#allocation2 + $0x130] sm:$0xff]
        %v1386 = vld [vmem:[#allocation2 + $0x138] sm:$0xff]
        %v1387 = vld [vmem:[#allocation2 + $0x140] sm:$0xff]
        %v1388 = vld [vmem:[#allocation2 + $0x148] sm:$0xff]
        %v1389 = vld [vmem:[#allocation2 + $0x150] sm:$0xff]
        %v1390 = vld [vmem:[#allocation2 + $0x158] sm:$0xff]
        %v1391 = vld [vmem:[#allocation2 + $0x160] sm:$0xff]
        %v1392 = vld [vmem:[#allocation2 + $0x168] sm:$0xff]
        %v1393 = vld [vmem:[#allocation2 + $0x170] sm:$0xff]
        %v1394 = vld [vmem:[#allocation2 + $0x178] sm:$0xff]
        %v1395 = vld [vmem:[#allocation2 + $0x180] sm:$0xff]
        %v1396 = vld [vmem:[#allocation2 + $0x188] sm:$0xff]
        %v1397 = vld [vmem:[#allocation2 + $0x190] sm:$0xff]
        %v1398 = vld [vmem:[#allocation2 + $0x198] sm:$0xff]
        %v1399 = vld [vmem:[#allocation2 + $0x1a0] sm:$0xff]
        %v1400 = vld [vmem:[#allocation2 + $0x1a8] sm:$0xff]
        %v1401 = vadd.f32 %v1347, %v1213
        %v1402 = vadd.f32 %v1348, %v1215
        %v1403 = vadd.f32 %v1349, %v1218
        %v1404 = vadd.f32 %v1350, %v1220
        %v1405 = vadd.f32 %v1351, %v1223
        %v1406 = vadd.f32 %v1352, %v1225
        %v1407 = vadd.f32 %v1353, %v1228
        %v1408 = vadd.f32 %v1354, %v1230
        %v1409 = vadd.f32 %v1355, %v1233
        %v1410 = vadd.f32 %v1356, %v1235
        %v1411 = vadd.f32 %v1357, %v1238
        %v1412 = vadd.f32 %v1358, %v1240
        %v1413 = vadd.f32 %v1359, %v1243
        %v1414 = vadd.f32 %v1360, %v1245
        %v1415 = vadd.f32 %v1361, %v1248
        %v1416 = vadd.f32 %v1362, %v1250
        %v1417 = vadd.f32 %v1363, %v1253
        %v1418 = vadd.f32 %v1364, %v1255
        %v1419 = vadd.f32 %v1365, %v1258
        %v1420 = vadd.f32 %v1366, %v1260
        %v1421 = vadd.f32 %v1367, %v1263
        %v1422 = vadd.f32 %v1368, %v1265
        %v1423 = vadd.f32 %v1369, %v1268
        %v1424 = vadd.f32 %v1370, %v1270
        %v1425 = vadd.f32 %v1371, %v1273
        %v1426 = vadd.f32 %v1372, %v1275
        %v1427 = vadd.f32 %v1373, %v1278
        %v1428 = vadd.f32 %v1374, %v1280
        %v1429 = vadd.f32 %v1375, %v1283
        %v1430 = vadd.f32 %v1376, %v1285
        %v1431 = vadd.f32 %v1377, %v1288
        %v1432 = vadd.f32 %v1378, %v1290
        %v1433 = vadd.f32 %v1379, %v1293
        %v1434 = vadd.f32 %v1380, %v1295
        %v1435 = vadd.f32 %v1381, %v1298
        %v1436 = vadd.f32 %v1382, %v1300
        %v1437 = vadd.f32 %v1383, %v1303
        %v1438 = vadd.f32 %v1384, %v1305
        %v1439 = vadd.f32 %v1385, %v1308
        %v1440 = vadd.f32 %v1386, %v1310
        %v1441 = vadd.f32 %v1387, %v1313
        %v1442 = vadd.f32 %v1388, %v1315
        %v1443 = vadd.f32 %v1389, %v1318
        %v1444 = vadd.f32 %v1390, %v1320
        %v1445 = vadd.f32 %v1391, %v1323
        %v1446 = vadd.f32 %v1392, %v1325
        %v1447 = vadd.f32 %v1393, %v1328
        %v1448 = vadd.f32 %v1394, %v1330
        %v1449 = vadd.f32 %v1395, %v1333
        %v1450 = vadd.f32 %v1396, %v1335
        %v1451 = vadd.f32 %v1397, %v1338
        %v1452 = vadd.f32 %v1398, %v1340
        %v1453 = vadd.f32 %v1399, %v1343
        %v1454 = vadd.f32 %v1400, %v1345
        %1455 = vst [vmem:[#allocation2] sm:$0xff] %v1401
        %1456 = vst [vmem:[#allocation2 + $0x8] sm:$0xff] %v1402
        %1457 = vst [vmem:[#allocation2 + $0x10] sm:$0xff] %v1403
        %1458 = vst [vmem:[#allocation2 + $0x18] sm:$0xff] %v1404
        %1459 = vst [vmem:[#allocation2 + $0x20] sm:$0xff] %v1405
        %1460 = vst [vmem:[#allocation2 + $0x28] sm:$0xff] %v1406
        %1461 = vst [vmem:[#allocation2 + $0x30] sm:$0xff] %v1407
        %1462 = vst [vmem:[#allocation2 + $0x38] sm:$0xff] %v1408
        %1463 = vst [vmem:[#allocation2 + $0x40] sm:$0xff] %v1409
        %1464 = vst [vmem:[#allocation2 + $0x48] sm:$0xff] %v1410
        %1465 = vst [vmem:[#allocation2 + $0x50] sm:$0xff] %v1411
        %1466 = vst [vmem:[#allocation2 + $0x58] sm:$0xff] %v1412
        %1467 = vst [vmem:[#allocation2 + $0x60] sm:$0xff] %v1413
        %1468 = vst [vmem:[#allocation2 + $0x68] sm:$0xff] %v1414
        %1469 = vst [vmem:[#allocation2 + $0x70] sm:$0xff] %v1415
        %1470 = vst [vmem:[#allocation2 + $0x78] sm:$0xff] %v1416
        %1471 = vst [vmem:[#allocation2 + $0x80] sm:$0xff] %v1417
        %1472 = vst [vmem:[#allocation2 + $0x88] sm:$0xff] %v1418
        %1473 = vst [vmem:[#allocation2 + $0x90] sm:$0xff] %v1419
        %1474 = vst [vmem:[#allocation2 + $0x98] sm:$0xff] %v1420
        %1475 = vst [vmem:[#allocation2 + $0xa0] sm:$0xff] %v1421
        %1476 = vst [vmem:[#allocation2 + $0xa8] sm:$0xff] %v1422
        %1477 = vst [vmem:[#allocation2 + $0xb0] sm:$0xff] %v1423
        %1478 = vst [vmem:[#allocation2 + $0xb8] sm:$0xff] %v1424
        %1479 = vst [vmem:[#allocation2 + $0xc0] sm:$0xff] %v1425
        %1480 = vst [vmem:[#allocation2 + $0xc8] sm:$0xff] %v1426
        %1481 = vst [vmem:[#allocation2 + $0xd0] sm:$0xff] %v1427
        %1482 = vst [vmem:[#allocation2 + $0xd8] sm:$0xff] %v1428
        %1483 = vst [vmem:[#allocation2 + $0xe0] sm:$0xff] %v1429
        %1484 = vst [vmem:[#allocation2 + $0xe8] sm:$0xff] %v1430
        %1485 = vst [vmem:[#allocation2 + $0xf0] sm:$0xff] %v1431
        %1486 = vst [vmem:[#allocation2 + $0xf8] sm:$0xff] %v1432
        %1487 = vst [vmem:[#allocation2 + $0x100] sm:$0xff] %v1433
        %1488 = vst [vmem:[#allocation2 + $0x108] sm:$0xff] %v1434
        %1489 = vst [vmem:[#allocation2 + $0x110] sm:$0xff] %v1435
        %1490 = vst [vmem:[#allocation2 + $0x118] sm:$0xff] %v1436
        %1491 = vst [vmem:[#allocation2 + $0x120] sm:$0xff] %v1437
        %1492 = vst [vmem:[#allocation2 + $0x128] sm:$0xff] %v1438
        %1493 = vst [vmem:[#allocation2 + $0x130] sm:$0xff] %v1439
        %1494 = vst [vmem:[#allocation2 + $0x138] sm:$0xff] %v1440
        %1495 = vst [vmem:[#allocation2 + $0x140] sm:$0xff] %v1441
        %1496 = vst [vmem:[#allocation2 + $0x148] sm:$0xff] %v1442
        %1497 = vst [vmem:[#allocation2 + $0x150] sm:$0xff] %v1443
        %1498 = vst [vmem:[#allocation2 + $0x158] sm:$0xff] %v1444
        %1499 = vst [vmem:[#allocation2 + $0x160] sm:$0xff] %v1445
        %1500 = vst [vmem:[#allocation2 + $0x168] sm:$0xff] %v1446
        %1501 = vst [vmem:[#allocation2 + $0x170] sm:$0xff] %v1447
        %1502 = vst [vmem:[#allocation2 + $0x178] sm:$0xff] %v1448
        %1503 = vst [vmem:[#allocation2 + $0x180] sm:$0xff] %v1449
        %1504 = vst [vmem:[#allocation2 + $0x188] sm:$0xff] %v1450
        %1505 = vst [vmem:[#allocation2 + $0x190] sm:$0xff] %v1451
        %1506 = vst [vmem:[#allocation2 + $0x198] sm:$0xff] %v1452
        %1507 = vst [vmem:[#allocation2 + $0x1a0] sm:$0xff] %v1453
        %1508 = vst [vmem:[#allocation2 + $0x1a8] sm:$0xff] %v1454
        %v1509 = vld [vmem:[%s221 + $0x1f] sm:$0xff]
        %v1510 = vld [vmem:[%s221 + $0x27] sm:$0xff]
        %v1511 = vld [vmem:[%s221 + $0x2f] sm:$0xff]
        %v1512 = vld [vmem:[%s221 + $0x37] sm:$0xff]
        %v1513 = vld [vmem:[%s221 + $0x3f] sm:$0xff]
        %v1514 = vld [vmem:[%s221 + $0x47] sm:$0xff]
        %v1515 = vld [vmem:[%s221 + $0x4f] sm:$0xff]
        %v1516 = vld [vmem:[%s221 + $0x57] sm:$0xff]
        %v1517 = vld [vmem:[%s221 + $0x5f] sm:$0xff]
        %v1518 = vld [vmem:[%s221 + $0x67] sm:$0xff]
        %v1519 = vld [vmem:[%s221 + $0x6f] sm:$0xff]
        %v1520 = vld [vmem:[%s221 + $0x77] sm:$0xff]
        %v1521 = vld [vmem:[%s221 + $0x7f] sm:$0xff]
        %v1522 = vld [vmem:[%s221 + $0x87] sm:$0xff]
        %v1523 = vld [vmem:[%s221 + $0x8f] sm:$0xff]
        %v1524 = vld [vmem:[%s221 + $0x97] sm:$0xff]
        %v1525 = vld [vmem:[%s221 + $0x9f] sm:$0xff]
        %v1526 = vld [vmem:[%s221 + $0xa7] sm:$0xff]
        %v1527 = vld [vmem:[%s221 + $0xaf] sm:$0xff]
        %v1528 = vld [vmem:[%s221 + $0xb7] sm:$0xff]
        %v1529 = vld [vmem:[%s221 + $0xbf] sm:$0xff]
        %v1530 = vld [vmem:[%s221 + $0xc7] sm:$0xff]
        %v1531 = vld [vmem:[%s221 + $0xcf] sm:$0xff]
        %v1532 = vld [vmem:[%s221 + $0xd7] sm:$0xff]
        %v1533 = vld [vmem:[%s221 + $0xdf] sm:$0xff]
        %v1534 = vld [vmem:[%s221 + $0xe7] sm:$0xff]
        %v1535 = vld [vmem:[%s221 + $0xef] sm:$0xff]
        %v1536 = vld [vmem:[%s221 + $0xf7] sm:$0xff]
        %v1537 = vld [vmem:[%s221 + $0xff] sm:$0xff]
        %v1538 = vld [vmem:[%s221 + $0x107] sm:$0xff]
        %v1539 = vld [vmem:[%s221 + $0x10f] sm:$0xff]
        %v1540 = vld [vmem:[%s221 + $0x117] sm:$0xff]
        %v1541 = vld [vmem:[%s221 + $0x11f] sm:$0xff]
        %v1542 = vld [vmem:[%s221 + $0x127] sm:$0xff]
        %v1543 = vld [vmem:[%s221 + $0x12f] sm:$0xff]
        %v1544 = vld [vmem:[%s221 + $0x137] sm:$0xff]
        %v1545 = vld [vmem:[%s221 + $0x13f] sm:$0xff]
        %v1546 = vld [vmem:[%s221 + $0x147] sm:$0xff]
        %v1547 = vld [vmem:[%s221 + $0x14f] sm:$0xff]
        %v1548 = vld [vmem:[%s221 + $0x157] sm:$0xff]
        %v1549 = vld [vmem:[%s221 + $0x15f] sm:$0xff]
        %v1550 = vld [vmem:[%s221 + $0x167] sm:$0xff]
        %v1551 = vld [vmem:[%s221 + $0x16f] sm:$0xff]
        %v1552 = vld [vmem:[%s221 + $0x177] sm:$0xff]
        %v1553 = vld [vmem:[%s221 + $0x17f] sm:$0xff]
        %v1554 = vld [vmem:[%s221 + $0x187] sm:$0xff]
        %v1555 = vld [vmem:[%s221 + $0x18f] sm:$0xff]
        %v1556 = vld [vmem:[%s221 + $0x197] sm:$0xff]
        %v1557 = vld [vmem:[%s221 + $0x19f] sm:$0xff]
        %v1558 = vld [vmem:[%s221 + $0x1a7] sm:$0xff]
        %v1559 = vld [vmem:[%s221 + $0x1af] sm:$0xff]
        %v1560 = vld [vmem:[%s221 + $0x1b7] sm:$0xff]
        %v1561 = vld [vmem:[%s221 + $0x1bf] sm:$0xff]
        %v1562 = vld [vmem:[%s221 + $0x1c7] sm:$0xff]
        %v1563 = vpack.c.bf16 %v1510, %v1509
        %v1564 = vpack.c.bf16 %v1512, %v1511
        %v1565 = vpack.c.bf16 %v1514, %v1513
        %v1566 = vpack.c.bf16 %v1516, %v1515
        %v1567 = vpack.c.bf16 %v1518, %v1517
        %v1568 = vpack.c.bf16 %v1520, %v1519
        %v1569 = vpack.c.bf16 %v1522, %v1521
        %v1570 = vpack.c.bf16 %v1524, %v1523
        %v1571 = vpack.c.bf16 %v1526, %v1525
        %v1572 = vpack.c.bf16 %v1528, %v1527
        %v1573 = vpack.c.bf16 %v1530, %v1529
        %v1574 = vpack.c.bf16 %v1532, %v1531
        %v1575 = vpack.c.bf16 %v1534, %v1533
        %v1576 = vpack.c.bf16 %v1536, %v1535
        %v1577 = vpack.c.bf16 %v1538, %v1537
        %v1578 = vpack.c.bf16 %v1540, %v1539
        %v1579 = vpack.c.bf16 %v1542, %v1541
        %v1580 = vpack.c.bf16 %v1544, %v1543
        %v1581 = vpack.c.bf16 %v1546, %v1545
        %v1582 = vpack.c.bf16 %v1548, %v1547
        %v1583 = vpack.c.bf16 %v1550, %v1549
        %v1584 = vpack.c.bf16 %v1552, %v1551
        %v1585 = vpack.c.bf16 %v1554, %v1553
        %v1586 = vpack.c.bf16 %v1556, %v1555
        %v1587 = vpack.c.bf16 %v1558, %v1557
        %v1588 = vpack.c.bf16 %v1560, %v1559
        %v1589 = vpack.c.bf16 %v1562, %v1561
        %s1590 = scalar_lea.vmem [#allocation6], 192
        %v1591 = vld [vmem:[%s1590] sm:$0xf]
        %v1592 = vld [vmem:[%s1590 + $0x4] sm:$0xf]
        %v1593 = vld [vmem:[%s1590 + $0x8] sm:$0xf]
        %v1594 = vld [vmem:[%s1590 + $0xc] sm:$0xf]
        %v1595 = vld [vmem:[%s1590 + $0x10] sm:$0xf]
        %v1596 = vld [vmem:[%s1590 + $0x14] sm:$0xf]
        %v1597 = vld [vmem:[%s1590 + $0x18] sm:$0xf]
        %v1598 = vld [vmem:[%s1590 + $0x1c] sm:$0xf]
        %v1599 = vld [vmem:[%s1590 + $0x20] sm:$0xf]
        %v1600 = vld [vmem:[%s1590 + $0x24] sm:$0xf]
        %v1601 = vld [vmem:[%s1590 + $0x28] sm:$0xf]
        %v1602 = vld [vmem:[%s1590 + $0x2c] sm:$0xf]
        %v1603 = vld [vmem:[%s1590 + $0x30] sm:$0xf]
        %v1604 = vld [vmem:[%s1590 + $0x34] sm:$0xf]
        %v1605 = vld [vmem:[%s1590 + $0x38] sm:$0xf]
        %v1606 = vld [vmem:[%s1590 + $0x3c] sm:$0xf]
        %v1623 = vunpack.c.l.b16 %v1591
        %v1624 = vunpack.c.l.b16 %v1592
        %v1625 = vunpack.c.l.b16 %v1593
        %v1626 = vunpack.c.l.b16 %v1594
        %v1627 = vunpack.c.l.b16 %v1595
        %v1628 = vunpack.c.l.b16 %v1596
        %v1629 = vunpack.c.l.b16 %v1597
        %v1630 = vunpack.c.l.b16 %v1598
        %v1631 = vunpack.c.l.b16 %v1599
        %v1632 = vunpack.c.l.b16 %v1600
        %v1633 = vunpack.c.l.b16 %v1601
        %v1634 = vunpack.c.l.b16 %v1602
        %v1635 = vunpack.c.l.b16 %v1603
        %v1636 = vunpack.c.l.b16 %v1604
        %v1637 = vunpack.c.l.b16 %v1605
        %v1638 = vunpack.c.l.b16 %v1606
        %v1639 = vpack.c.b16 %v1624, %v1623
        %v1640 = vpack.c.b16 %v1626, %v1625
        %v1641 = vpack.c.b16 %v1628, %v1627
        %v1642 = vpack.c.b16 %v1630, %v1629
        %v1643 = vpack.c.b16 %v1632, %v1631
        %v1644 = vpack.c.b16 %v1634, %v1633
        %v1645 = vpack.c.b16 %v1636, %v1635
        %v1646 = vpack.c.b16 %v1638, %v1637
        %1655 = vmatpush.bf16.msra.mxu0 %v1646
        %1656 = vmatpush.bf16.msra.mxu0 %v1645
        %1657 = vmatpush.bf16.msra.mxu0 %v1644
        %1658 = vmatpush.bf16.msra.mxu0 %v1643
        %1659 = vmatpush.bf16.msra.mxu0 %v1642
        %1660 = vmatpush.bf16.msra.mxu0 %v1641
        %1661 = vmatpush.bf16.msra.mxu0 %v1640
        %1662 = vmatpush.bf16.msra.mxu0 %v1639
        %1663 = vmatmul.bf16.gmra.mxu0 %v1563
        %v1664 = vpop.f32.mrf.mxu0
        %v1665 = vadd.f32 0.0, %v1664
        %v1666 = vpop.f32.mrf.mxu0
        %v1667 = vadd.f32 0.0, %v1666
        %1668 = vmatmul.bf16.gmra.mxu0 %v1564
        %v1669 = vpop.f32.mrf.mxu0
        %v1670 = vadd.f32 0.0, %v1669
        %v1671 = vpop.f32.mrf.mxu0
        %v1672 = vadd.f32 0.0, %v1671
        %1673 = vmatmul.bf16.gmra.mxu0 %v1565
        %v1674 = vpop.f32.mrf.mxu0
        %v1675 = vadd.f32 0.0, %v1674
        %v1676 = vpop.f32.mrf.mxu0
        %v1677 = vadd.f32 0.0, %v1676
        %1678 = vmatmul.bf16.gmra.mxu0 %v1566
        %v1679 = vpop.f32.mrf.mxu0
        %v1680 = vadd.f32 0.0, %v1679
        %v1681 = vpop.f32.mrf.mxu0
        %v1682 = vadd.f32 0.0, %v1681
        %1683 = vmatmul.bf16.gmra.mxu0 %v1567
        %v1684 = vpop.f32.mrf.mxu0
        %v1685 = vadd.f32 0.0, %v1684
        %v1686 = vpop.f32.mrf.mxu0
        %v1687 = vadd.f32 0.0, %v1686
        %1688 = vmatmul.bf16.gmra.mxu0 %v1568
        %v1689 = vpop.f32.mrf.mxu0
        %v1690 = vadd.f32 0.0, %v1689
        %v1691 = vpop.f32.mrf.mxu0
        %v1692 = vadd.f32 0.0, %v1691
        %1693 = vmatmul.bf16.gmra.mxu0 %v1569
        %v1694 = vpop.f32.mrf.mxu0
        %v1695 = vadd.f32 0.0, %v1694
        %v1696 = vpop.f32.mrf.mxu0
        %v1697 = vadd.f32 0.0, %v1696
        %1698 = vmatmul.bf16.gmra.mxu0 %v1570
        %v1699 = vpop.f32.mrf.mxu0
        %v1700 = vadd.f32 0.0, %v1699
        %v1701 = vpop.f32.mrf.mxu0
        %v1702 = vadd.f32 0.0, %v1701
        %1703 = vmatmul.bf16.gmra.mxu0 %v1571
        %v1704 = vpop.f32.mrf.mxu0
        %v1705 = vadd.f32 0.0, %v1704
        %v1706 = vpop.f32.mrf.mxu0
        %v1707 = vadd.f32 0.0, %v1706
        %1708 = vmatmul.bf16.gmra.mxu0 %v1572
        %v1709 = vpop.f32.mrf.mxu0
        %v1710 = vadd.f32 0.0, %v1709
        %v1711 = vpop.f32.mrf.mxu0
        %v1712 = vadd.f32 0.0, %v1711
        %1713 = vmatmul.bf16.gmra.mxu0 %v1573
        %v1714 = vpop.f32.mrf.mxu0
        %v1715 = vadd.f32 0.0, %v1714
        %v1716 = vpop.f32.mrf.mxu0
        %v1717 = vadd.f32 0.0, %v1716
        %1718 = vmatmul.bf16.gmra.mxu0 %v1574
        %v1719 = vpop.f32.mrf.mxu0
        %v1720 = vadd.f32 0.0, %v1719
        %v1721 = vpop.f32.mrf.mxu0
        %v1722 = vadd.f32 0.0, %v1721
        %1723 = vmatmul.bf16.gmra.mxu0 %v1575
        %v1724 = vpop.f32.mrf.mxu0
        %v1725 = vadd.f32 0.0, %v1724
        %v1726 = vpop.f32.mrf.mxu0
        %v1727 = vadd.f32 0.0, %v1726
        %1728 = vmatmul.bf16.gmra.mxu0 %v1576
        %v1729 = vpop.f32.mrf.mxu0
        %v1730 = vadd.f32 0.0, %v1729
        %v1731 = vpop.f32.mrf.mxu0
        %v1732 = vadd.f32 0.0, %v1731
        %1733 = vmatmul.bf16.gmra.mxu0 %v1577
        %v1734 = vpop.f32.mrf.mxu0
        %v1735 = vadd.f32 0.0, %v1734
        %v1736 = vpop.f32.mrf.mxu0
        %v1737 = vadd.f32 0.0, %v1736
        %1738 = vmatmul.bf16.gmra.mxu0 %v1578
        %v1739 = vpop.f32.mrf.mxu0
        %v1740 = vadd.f32 0.0, %v1739
        %v1741 = vpop.f32.mrf.mxu0
        %v1742 = vadd.f32 0.0, %v1741
        %1743 = vmatmul.bf16.gmra.mxu0 %v1579
        %v1744 = vpop.f32.mrf.mxu0
        %v1745 = vadd.f32 0.0, %v1744
        %v1746 = vpop.f32.mrf.mxu0
        %v1747 = vadd.f32 0.0, %v1746
        %1748 = vmatmul.bf16.gmra.mxu0 %v1580
        %v1749 = vpop.f32.mrf.mxu0
        %v1750 = vadd.f32 0.0, %v1749
        %v1751 = vpop.f32.mrf.mxu0
        %v1752 = vadd.f32 0.0, %v1751
        %1753 = vmatmul.bf16.gmra.mxu0 %v1581
        %v1754 = vpop.f32.mrf.mxu0
        %v1755 = vadd.f32 0.0, %v1754
        %v1756 = vpop.f32.mrf.mxu0
        %v1757 = vadd.f32 0.0, %v1756
        %1758 = vmatmul.bf16.gmra.mxu0 %v1582
        %v1759 = vpop.f32.mrf.mxu0
        %v1760 = vadd.f32 0.0, %v1759
        %v1761 = vpop.f32.mrf.mxu0
        %v1762 = vadd.f32 0.0, %v1761
        %1763 = vmatmul.bf16.gmra.mxu0 %v1583
        %v1764 = vpop.f32.mrf.mxu0
        %v1765 = vadd.f32 0.0, %v1764
        %v1766 = vpop.f32.mrf.mxu0
        %v1767 = vadd.f32 0.0, %v1766
        %1768 = vmatmul.bf16.gmra.mxu0 %v1584
        %v1769 = vpop.f32.mrf.mxu0
        %v1770 = vadd.f32 0.0, %v1769
        %v1771 = vpop.f32.mrf.mxu0
        %v1772 = vadd.f32 0.0, %v1771
        %1773 = vmatmul.bf16.gmra.mxu0 %v1585
        %v1774 = vpop.f32.mrf.mxu0
        %v1775 = vadd.f32 0.0, %v1774
        %v1776 = vpop.f32.mrf.mxu0
        %v1777 = vadd.f32 0.0, %v1776
        %1778 = vmatmul.bf16.gmra.mxu0 %v1586
        %v1779 = vpop.f32.mrf.mxu0
        %v1780 = vadd.f32 0.0, %v1779
        %v1781 = vpop.f32.mrf.mxu0
        %v1782 = vadd.f32 0.0, %v1781
        %1783 = vmatmul.bf16.gmra.mxu0 %v1587
        %v1784 = vpop.f32.mrf.mxu0
        %v1785 = vadd.f32 0.0, %v1784
        %v1786 = vpop.f32.mrf.mxu0
        %v1787 = vadd.f32 0.0, %v1786
        %1788 = vmatmul.bf16.gmra.mxu0 %v1588
        %v1789 = vpop.f32.mrf.mxu0
        %v1790 = vadd.f32 0.0, %v1789
        %v1791 = vpop.f32.mrf.mxu0
        %v1792 = vadd.f32 0.0, %v1791
        %1793 = vmatmul.bf16.gmra.mxu0 %v1589
        %v1794 = vpop.f32.mrf.mxu0
        %v1795 = vadd.f32 0.0, %v1794
        %v1796 = vpop.f32.mrf.mxu0
        %v1797 = vadd.f32 0.0, %v1796
        %1798 = vdwg.mxu0
        %v1799 = vld [vmem:[#allocation2] sm:$0xff]
        %v1800 = vld [vmem:[#allocation2 + $0x8] sm:$0xff]
        %v1801 = vld [vmem:[#allocation2 + $0x10] sm:$0xff]
        %v1802 = vld [vmem:[#allocation2 + $0x18] sm:$0xff]
        %v1803 = vld [vmem:[#allocation2 + $0x20] sm:$0xff]
        %v1804 = vld [vmem:[#allocation2 + $0x28] sm:$0xff]
        %v1805 = vld [vmem:[#allocation2 + $0x30] sm:$0xff]
        %v1806 = vld [vmem:[#allocation2 + $0x38] sm:$0xff]
        %v1807 = vld [vmem:[#allocation2 + $0x40] sm:$0xff]
        %v1808 = vld [vmem:[#allocation2 + $0x48] sm:$0xff]
        %v1809 = vld [vmem:[#allocation2 + $0x50] sm:$0xff]
        %v1810 = vld [vmem:[#allocation2 + $0x58] sm:$0xff]
        %v1811 = vld [vmem:[#allocation2 + $0x60] sm:$0xff]
        %v1812 = vld [vmem:[#allocation2 + $0x68] sm:$0xff]
        %v1813 = vld [vmem:[#allocation2 + $0x70] sm:$0xff]
        %v1814 = vld [vmem:[#allocation2 + $0x78] sm:$0xff]
        %v1815 = vld [vmem:[#allocation2 + $0x80] sm:$0xff]
        %v1816 = vld [vmem:[#allocation2 + $0x88] sm:$0xff]
        %v1817 = vld [vmem:[#allocation2 + $0x90] sm:$0xff]
        %v1818 = vld [vmem:[#allocation2 + $0x98] sm:$0xff]
        %v1819 = vld [vmem:[#allocation2 + $0xa0] sm:$0xff]
        %v1820 = vld [vmem:[#allocation2 + $0xa8] sm:$0xff]
        %v1821 = vld [vmem:[#allocation2 + $0xb0] sm:$0xff]
        %v1822 = vld [vmem:[#allocation2 + $0xb8] sm:$0xff]
        %v1823 = vld [vmem:[#allocation2 + $0xc0] sm:$0xff]
        %v1824 = vld [vmem:[#allocation2 + $0xc8] sm:$0xff]
        %v1825 = vld [vmem:[#allocation2 + $0xd0] sm:$0xff]
        %v1826 = vld [vmem:[#allocation2 + $0xd8] sm:$0xff]
        %v1827 = vld [vmem:[#allocation2 + $0xe0] sm:$0xff]
        %v1828 = vld [vmem:[#allocation2 + $0xe8] sm:$0xff]
        %v1829 = vld [vmem:[#allocation2 + $0xf0] sm:$0xff]
        %v1830 = vld [vmem:[#allocation2 + $0xf8] sm:$0xff]
        %v1831 = vld [vmem:[#allocation2 + $0x100] sm:$0xff]
        %v1832 = vld [vmem:[#allocation2 + $0x108] sm:$0xff]
        %v1833 = vld [vmem:[#allocation2 + $0x110] sm:$0xff]
        %v1834 = vld [vmem:[#allocation2 + $0x118] sm:$0xff]
        %v1835 = vld [vmem:[#allocation2 + $0x120] sm:$0xff]
        %v1836 = vld [vmem:[#allocation2 + $0x128] sm:$0xff]
        %v1837 = vld [vmem:[#allocation2 + $0x130] sm:$0xff]
        %v1838 = vld [vmem:[#allocation2 + $0x138] sm:$0xff]
        %v1839 = vld [vmem:[#allocation2 + $0x140] sm:$0xff]
        %v1840 = vld [vmem:[#allocation2 + $0x148] sm:$0xff]
        %v1841 = vld [vmem:[#allocation2 + $0x150] sm:$0xff]
        %v1842 = vld [vmem:[#allocation2 + $0x158] sm:$0xff]
        %v1843 = vld [vmem:[#allocation2 + $0x160] sm:$0xff]
        %v1844 = vld [vmem:[#allocation2 + $0x168] sm:$0xff]
        %v1845 = vld [vmem:[#allocation2 + $0x170] sm:$0xff]
        %v1846 = vld [vmem:[#allocation2 + $0x178] sm:$0xff]
        %v1847 = vld [vmem:[#allocation2 + $0x180] sm:$0xff]
        %v1848 = vld [vmem:[#allocation2 + $0x188] sm:$0xff]
        %v1849 = vld [vmem:[#allocation2 + $0x190] sm:$0xff]
        %v1850 = vld [vmem:[#allocation2 + $0x198] sm:$0xff]
        %v1851 = vld [vmem:[#allocation2 + $0x1a0] sm:$0xff]
        %v1852 = vld [vmem:[#allocation2 + $0x1a8] sm:$0xff]
        %v1853 = vadd.f32 %v1799, %v1665
        %v1854 = vadd.f32 %v1800, %v1667
        %v1855 = vadd.f32 %v1801, %v1670
        %v1856 = vadd.f32 %v1802, %v1672
        %v1857 = vadd.f32 %v1803, %v1675
        %v1858 = vadd.f32 %v1804, %v1677
        %v1859 = vadd.f32 %v1805, %v1680
        %v1860 = vadd.f32 %v1806, %v1682
        %v1861 = vadd.f32 %v1807, %v1685
        %v1862 = vadd.f32 %v1808, %v1687
        %v1863 = vadd.f32 %v1809, %v1690
        %v1864 = vadd.f32 %v1810, %v1692
        %v1865 = vadd.f32 %v1811, %v1695
        %v1866 = vadd.f32 %v1812, %v1697
        %v1867 = vadd.f32 %v1813, %v1700
        %v1868 = vadd.f32 %v1814, %v1702
        %v1869 = vadd.f32 %v1815, %v1705
        %v1870 = vadd.f32 %v1816, %v1707
        %v1871 = vadd.f32 %v1817, %v1710
        %v1872 = vadd.f32 %v1818, %v1712
        %v1873 = vadd.f32 %v1819, %v1715
        %v1874 = vadd.f32 %v1820, %v1717
        %v1875 = vadd.f32 %v1821, %v1720
        %v1876 = vadd.f32 %v1822, %v1722
        %v1877 = vadd.f32 %v1823, %v1725
        %v1878 = vadd.f32 %v1824, %v1727
        %v1879 = vadd.f32 %v1825, %v1730
        %v1880 = vadd.f32 %v1826, %v1732
        %v1881 = vadd.f32 %v1827, %v1735
        %v1882 = vadd.f32 %v1828, %v1737
        %v1883 = vadd.f32 %v1829, %v1740
        %v1884 = vadd.f32 %v1830, %v1742
        %v1885 = vadd.f32 %v1831, %v1745
        %v1886 = vadd.f32 %v1832, %v1747
        %v1887 = vadd.f32 %v1833, %v1750
        %v1888 = vadd.f32 %v1834, %v1752
        %v1889 = vadd.f32 %v1835, %v1755
        %v1890 = vadd.f32 %v1836, %v1757
        %v1891 = vadd.f32 %v1837, %v1760
        %v1892 = vadd.f32 %v1838, %v1762
        %v1893 = vadd.f32 %v1839, %v1765
        %v1894 = vadd.f32 %v1840, %v1767
        %v1895 = vadd.f32 %v1841, %v1770
        %v1896 = vadd.f32 %v1842, %v1772
        %v1897 = vadd.f32 %v1843, %v1775
        %v1898 = vadd.f32 %v1844, %v1777
        %v1899 = vadd.f32 %v1845, %v1780
        %v1900 = vadd.f32 %v1846, %v1782
        %v1901 = vadd.f32 %v1847, %v1785
        %v1902 = vadd.f32 %v1848, %v1787
        %v1903 = vadd.f32 %v1849, %v1790
        %v1904 = vadd.f32 %v1850, %v1792
        %v1905 = vadd.f32 %v1851, %v1795
        %v1906 = vadd.f32 %v1852, %v1797
        %1907 = vst [vmem:[#allocation2] sm:$0xff] %v1853
        %1908 = vst [vmem:[#allocation2 + $0x8] sm:$0xff] %v1854
        %1909 = vst [vmem:[#allocation2 + $0x10] sm:$0xff] %v1855
        %1910 = vst [vmem:[#allocation2 + $0x18] sm:$0xff] %v1856
        %1911 = vst [vmem:[#allocation2 + $0x20] sm:$0xff] %v1857
        %1912 = vst [vmem:[#allocation2 + $0x28] sm:$0xff] %v1858
        %1913 = vst [vmem:[#allocation2 + $0x30] sm:$0xff] %v1859
        %1914 = vst [vmem:[#allocation2 + $0x38] sm:$0xff] %v1860
        %1915 = vst [vmem:[#allocation2 + $0x40] sm:$0xff] %v1861
        %1916 = vst [vmem:[#allocation2 + $0x48] sm:$0xff] %v1862
        %1917 = vst [vmem:[#allocation2 + $0x50] sm:$0xff] %v1863
        %1918 = vst [vmem:[#allocation2 + $0x58] sm:$0xff] %v1864
        %1919 = vst [vmem:[#allocation2 + $0x60] sm:$0xff] %v1865
        %1920 = vst [vmem:[#allocation2 + $0x68] sm:$0xff] %v1866
        %1921 = vst [vmem:[#allocation2 + $0x70] sm:$0xff] %v1867
        %1922 = vst [vmem:[#allocation2 + $0x78] sm:$0xff] %v1868
        %1923 = vst [vmem:[#allocation2 + $0x80] sm:$0xff] %v1869
        %1924 = vst [vmem:[#allocation2 + $0x88] sm:$0xff] %v1870
        %1925 = vst [vmem:[#allocation2 + $0x90] sm:$0xff] %v1871
        %1926 = vst [vmem:[#allocation2 + $0x98] sm:$0xff] %v1872
        %1927 = vst [vmem:[#allocation2 + $0xa0] sm:$0xff] %v1873
        %1928 = vst [vmem:[#allocation2 + $0xa8] sm:$0xff] %v1874
        %1929 = vst [vmem:[#allocation2 + $0xb0] sm:$0xff] %v1875
        %1930 = vst [vmem:[#allocation2 + $0xb8] sm:$0xff] %v1876
        %1931 = vst [vmem:[#allocation2 + $0xc0] sm:$0xff] %v1877
        %1932 = vst [vmem:[#allocation2 + $0xc8] sm:$0xff] %v1878
        %1933 = vst [vmem:[#allocation2 + $0xd0] sm:$0xff] %v1879
        %1934 = vst [vmem:[#allocation2 + $0xd8] sm:$0xff] %v1880
        %1935 = vst [vmem:[#allocation2 + $0xe0] sm:$0xff] %v1881
        %1936 = vst [vmem:[#allocation2 + $0xe8] sm:$0xff] %v1882
        %1937 = vst [vmem:[#allocation2 + $0xf0] sm:$0xff] %v1883
        %1938 = vst [vmem:[#allocation2 + $0xf8] sm:$0xff] %v1884
        %1939 = vst [vmem:[#allocation2 + $0x100] sm:$0xff] %v1885
        %1940 = vst [vmem:[#allocation2 + $0x108] sm:$0xff] %v1886
        %1941 = vst [vmem:[#allocation2 + $0x110] sm:$0xff] %v1887
        %1942 = vst [vmem:[#allocation2 + $0x118] sm:$0xff] %v1888
        %1943 = vst [vmem:[#allocation2 + $0x120] sm:$0xff] %v1889
        %1944 = vst [vmem:[#allocation2 + $0x128] sm:$0xff] %v1890
        %1945 = vst [vmem:[#allocation2 + $0x130] sm:$0xff] %v1891
        %1946 = vst [vmem:[#allocation2 + $0x138] sm:$0xff] %v1892
        %1947 = vst [vmem:[#allocation2 + $0x140] sm:$0xff] %v1893
        %1948 = vst [vmem:[#allocation2 + $0x148] sm:$0xff] %v1894
        %1949 = vst [vmem:[#allocation2 + $0x150] sm:$0xff] %v1895
        %1950 = vst [vmem:[#allocation2 + $0x158] sm:$0xff] %v1896
        %1951 = vst [vmem:[#allocation2 + $0x160] sm:$0xff] %v1897
        %1952 = vst [vmem:[#allocation2 + $0x168] sm:$0xff] %v1898
        %1953 = vst [vmem:[#allocation2 + $0x170] sm:$0xff] %v1899
        %1954 = vst [vmem:[#allocation2 + $0x178] sm:$0xff] %v1900
        %1955 = vst [vmem:[#allocation2 + $0x180] sm:$0xff] %v1901
        %1956 = vst [vmem:[#allocation2 + $0x188] sm:$0xff] %v1902
        %1957 = vst [vmem:[#allocation2 + $0x190] sm:$0xff] %v1903
        %1958 = vst [vmem:[#allocation2 + $0x198] sm:$0xff] %v1904
        %1959 = vst [vmem:[#allocation2 + $0x1a0] sm:$0xff] %v1905
        %1960 = vst [vmem:[#allocation2 + $0x1a8] sm:$0xff] %v1906
        %v1961 = vld [vmem:[%s221 + $0x20] sm:$0xff]
        %v1962 = vld [vmem:[%s221 + $0x28] sm:$0xff]
        %v1963 = vld [vmem:[%s221 + $0x30] sm:$0xff]
        %v1964 = vld [vmem:[%s221 + $0x38] sm:$0xff]
        %v1965 = vld [vmem:[%s221 + $0x40] sm:$0xff]
        %v1966 = vld [vmem:[%s221 + $0x48] sm:$0xff]
        %v1967 = vld [vmem:[%s221 + $0x50] sm:$0xff]
        %v1968 = vld [vmem:[%s221 + $0x58] sm:$0xff]
        %v1969 = vld [vmem:[%s221 + $0x60] sm:$0xff]
        %v1970 = vld [vmem:[%s221 + $0x68] sm:$0xff]
        %v1971 = vld [vmem:[%s221 + $0x70] sm:$0xff]
        %v1972 = vld [vmem:[%s221 + $0x78] sm:$0xff]
        %v1973 = vld [vmem:[%s221 + $0x80] sm:$0xff]
        %v1974 = vld [vmem:[%s221 + $0x88] sm:$0xff]
        %v1975 = vld [vmem:[%s221 + $0x90] sm:$0xff]
        %v1976 = vld [vmem:[%s221 + $0x98] sm:$0xff]
        %v1977 = vld [vmem:[%s221 + $0xa0] sm:$0xff]
        %v1978 = vld [vmem:[%s221 + $0xa8] sm:$0xff]
        %v1979 = vld [vmem:[%s221 + $0xb0] sm:$0xff]
        %v1980 = vld [vmem:[%s221 + $0xb8] sm:$0xff]
        %v1981 = vld [vmem:[%s221 + $0xc0] sm:$0xff]
        %v1982 = vld [vmem:[%s221 + $0xc8] sm:$0xff]
        %v1983 = vld [vmem:[%s221 + $0xd0] sm:$0xff]
        %v1984 = vld [vmem:[%s221 + $0xd8] sm:$0xff]
        %v1985 = vld [vmem:[%s221 + $0xe0] sm:$0xff]
        %v1986 = vld [vmem:[%s221 + $0xe8] sm:$0xff]
        %v1987 = vld [vmem:[%s221 + $0xf0] sm:$0xff]
        %v1988 = vld [vmem:[%s221 + $0xf8] sm:$0xff]
        %v1989 = vld [vmem:[%s221 + $0x100] sm:$0xff]
        %v1990 = vld [vmem:[%s221 + $0x108] sm:$0xff]
        %v1991 = vld [vmem:[%s221 + $0x110] sm:$0xff]
        %v1992 = vld [vmem:[%s221 + $0x118] sm:$0xff]
        %v1993 = vld [vmem:[%s221 + $0x120] sm:$0xff]
        %v1994 = vld [vmem:[%s221 + $0x128] sm:$0xff]
        %v1995 = vld [vmem:[%s221 + $0x130] sm:$0xff]
        %v1996 = vld [vmem:[%s221 + $0x138] sm:$0xff]
        %v1997 = vld [vmem:[%s221 + $0x140] sm:$0xff]
        %v1998 = vld [vmem:[%s221 + $0x148] sm:$0xff]
        %v1999 = vld [vmem:[%s221 + $0x150] sm:$0xff]
        %v2000 = vld [vmem:[%s221 + $0x158] sm:$0xff]
        %v2001 = vld [vmem:[%s221 + $0x160] sm:$0xff]
        %v2002 = vld [vmem:[%s221 + $0x168] sm:$0xff]
        %v2003 = vld [vmem:[%s221 + $0x170] sm:$0xff]
        %v2004 = vld [vmem:[%s221 + $0x178] sm:$0xff]
        %v2005 = vld [vmem:[%s221 + $0x180] sm:$0xff]
        %v2006 = vld [vmem:[%s221 + $0x188] sm:$0xff]
        %v2007 = vld [vmem:[%s221 + $0x190] sm:$0xff]
        %v2008 = vld [vmem:[%s221 + $0x198] sm:$0xff]
        %v2009 = vld [vmem:[%s221 + $0x1a0] sm:$0xff]
        %v2010 = vld [vmem:[%s221 + $0x1a8] sm:$0xff]
        %v2011 = vld [vmem:[%s221 + $0x1b0] sm:$0xff]
        %v2012 = vld [vmem:[%s221 + $0x1b8] sm:$0xff]
        %v2013 = vld [vmem:[%s221 + $0x1c0] sm:$0xff]
        %v2014 = vld [vmem:[%s221 + $0x1c8] sm:$0xff]
        %v2015 = vpack.c.bf16 %v1962, %v1961
        %v2016 = vpack.c.bf16 %v1964, %v1963
        %v2017 = vpack.c.bf16 %v1966, %v1965
        %v2018 = vpack.c.bf16 %v1968, %v1967
        %v2019 = vpack.c.bf16 %v1970, %v1969
        %v2020 = vpack.c.bf16 %v1972, %v1971
        %v2021 = vpack.c.bf16 %v1974, %v1973
        %v2022 = vpack.c.bf16 %v1976, %v1975
        %v2023 = vpack.c.bf16 %v1978, %v1977
        %v2024 = vpack.c.bf16 %v1980, %v1979
        %v2025 = vpack.c.bf16 %v1982, %v1981
        %v2026 = vpack.c.bf16 %v1984, %v1983
        %v2027 = vpack.c.bf16 %v1986, %v1985
        %v2028 = vpack.c.bf16 %v1988, %v1987
        %v2029 = vpack.c.bf16 %v1990, %v1989
        %v2030 = vpack.c.bf16 %v1992, %v1991
        %v2031 = vpack.c.bf16 %v1994, %v1993
        %v2032 = vpack.c.bf16 %v1996, %v1995
        %v2033 = vpack.c.bf16 %v1998, %v1997
        %v2034 = vpack.c.bf16 %v2000, %v1999
        %v2035 = vpack.c.bf16 %v2002, %v2001
        %v2036 = vpack.c.bf16 %v2004, %v2003
        %v2037 = vpack.c.bf16 %v2006, %v2005
        %v2038 = vpack.c.bf16 %v2008, %v2007
        %v2039 = vpack.c.bf16 %v2010, %v2009
        %v2040 = vpack.c.bf16 %v2012, %v2011
        %v2041 = vpack.c.bf16 %v2014, %v2013
        %s2042 = scalar_lea.vmem [#allocation6], 256
        %v2043 = vld [vmem:[%s2042] sm:$0xf]
        %v2044 = vld [vmem:[%s2042 + $0x4] sm:$0xf]
        %v2045 = vld [vmem:[%s2042 + $0x8] sm:$0xf]
        %v2046 = vld [vmem:[%s2042 + $0xc] sm:$0xf]
        %v2047 = vld [vmem:[%s2042 + $0x10] sm:$0xf]
        %v2048 = vld [vmem:[%s2042 + $0x14] sm:$0xf]
        %v2049 = vld [vmem:[%s2042 + $0x18] sm:$0xf]
        %v2050 = vld [vmem:[%s2042 + $0x1c] sm:$0xf]
        %v2051 = vld [vmem:[%s2042 + $0x20] sm:$0xf]
        %v2052 = vld [vmem:[%s2042 + $0x24] sm:$0xf]
        %v2053 = vld [vmem:[%s2042 + $0x28] sm:$0xf]
        %v2054 = vld [vmem:[%s2042 + $0x2c] sm:$0xf]
        %v2055 = vld [vmem:[%s2042 + $0x30] sm:$0xf]
        %v2056 = vld [vmem:[%s2042 + $0x34] sm:$0xf]
        %v2057 = vld [vmem:[%s2042 + $0x38] sm:$0xf]
        %v2058 = vld [vmem:[%s2042 + $0x3c] sm:$0xf]
        %v2075 = vunpack.c.l.b16 %v2043
        %v2076 = vunpack.c.l.b16 %v2044
        %v2077 = vunpack.c.l.b16 %v2045
        %v2078 = vunpack.c.l.b16 %v2046
        %v2079 = vunpack.c.l.b16 %v2047
        %v2080 = vunpack.c.l.b16 %v2048
        %v2081 = vunpack.c.l.b16 %v2049
        %v2082 = vunpack.c.l.b16 %v2050
        %v2083 = vunpack.c.l.b16 %v2051
        %v2084 = vunpack.c.l.b16 %v2052
        %v2085 = vunpack.c.l.b16 %v2053
        %v2086 = vunpack.c.l.b16 %v2054
        %v2087 = vunpack.c.l.b16 %v2055
        %v2088 = vunpack.c.l.b16 %v2056
        %v2089 = vunpack.c.l.b16 %v2057
        %v2090 = vunpack.c.l.b16 %v2058
        %v2091 = vpack.c.b16 %v2076, %v2075
        %v2092 = vpack.c.b16 %v2078, %v2077
        %v2093 = vpack.c.b16 %v2080, %v2079
        %v2094 = vpack.c.b16 %v2082, %v2081
        %v2095 = vpack.c.b16 %v2084, %v2083
        %v2096 = vpack.c.b16 %v2086, %v2085
        %v2097 = vpack.c.b16 %v2088, %v2087
        %v2098 = vpack.c.b16 %v2090, %v2089
        %2107 = vmatpush.bf16.msra.mxu0 %v2098
        %2108 = vmatpush.bf16.msra.mxu0 %v2097
        %2109 = vmatpush.bf16.msra.mxu0 %v2096
        %2110 = vmatpush.bf16.msra.mxu0 %v2095
        %2111 = vmatpush.bf16.msra.mxu0 %v2094
        %2112 = vmatpush.bf16.msra.mxu0 %v2093
        %2113 = vmatpush.bf16.msra.mxu0 %v2092
        %2114 = vmatpush.bf16.msra.mxu0 %v2091
        %2115 = vmatmul.bf16.gmra.mxu0 %v2015
        %v2116 = vpop.f32.mrf.mxu0
        %v2117 = vadd.f32 0.0, %v2116
        %v2118 = vpop.f32.mrf.mxu0
        %v2119 = vadd.f32 0.0, %v2118
        %2120 = vmatmul.bf16.gmra.mxu0 %v2016
        %v2121 = vpop.f32.mrf.mxu0
        %v2122 = vadd.f32 0.0, %v2121
        %v2123 = vpop.f32.mrf.mxu0
        %v2124 = vadd.f32 0.0, %v2123
        %2125 = vmatmul.bf16.gmra.mxu0 %v2017
        %v2126 = vpop.f32.mrf.mxu0
        %v2127 = vadd.f32 0.0, %v2126
        %v2128 = vpop.f32.mrf.mxu0
        %v2129 = vadd.f32 0.0, %v2128
        %2130 = vmatmul.bf16.gmra.mxu0 %v2018
        %v2131 = vpop.f32.mrf.mxu0
        %v2132 = vadd.f32 0.0, %v2131
        %v2133 = vpop.f32.mrf.mxu0
        %v2134 = vadd.f32 0.0, %v2133
        %2135 = vmatmul.bf16.gmra.mxu0 %v2019
        %v2136 = vpop.f32.mrf.mxu0
        %v2137 = vadd.f32 0.0, %v2136
        %v2138 = vpop.f32.mrf.mxu0
        %v2139 = vadd.f32 0.0, %v2138
        %2140 = vmatmul.bf16.gmra.mxu0 %v2020
        %v2141 = vpop.f32.mrf.mxu0
        %v2142 = vadd.f32 0.0, %v2141
        %v2143 = vpop.f32.mrf.mxu0
        %v2144 = vadd.f32 0.0, %v2143
        %2145 = vmatmul.bf16.gmra.mxu0 %v2021
        %v2146 = vpop.f32.mrf.mxu0
        %v2147 = vadd.f32 0.0, %v2146
        %v2148 = vpop.f32.mrf.mxu0
        %v2149 = vadd.f32 0.0, %v2148
        %2150 = vmatmul.bf16.gmra.mxu0 %v2022
        %v2151 = vpop.f32.mrf.mxu0
        %v2152 = vadd.f32 0.0, %v2151
        %v2153 = vpop.f32.mrf.mxu0
        %v2154 = vadd.f32 0.0, %v2153
        %2155 = vmatmul.bf16.gmra.mxu0 %v2023
        %v2156 = vpop.f32.mrf.mxu0
        %v2157 = vadd.f32 0.0, %v2156
        %v2158 = vpop.f32.mrf.mxu0
        %v2159 = vadd.f32 0.0, %v2158
        %2160 = vmatmul.bf16.gmra.mxu0 %v2024
        %v2161 = vpop.f32.mrf.mxu0
        %v2162 = vadd.f32 0.0, %v2161
        %v2163 = vpop.f32.mrf.mxu0
        %v2164 = vadd.f32 0.0, %v2163
        %2165 = vmatmul.bf16.gmra.mxu0 %v2025
        %v2166 = vpop.f32.mrf.mxu0
        %v2167 = vadd.f32 0.0, %v2166
        %v2168 = vpop.f32.mrf.mxu0
        %v2169 = vadd.f32 0.0, %v2168
        %2170 = vmatmul.bf16.gmra.mxu0 %v2026
        %v2171 = vpop.f32.mrf.mxu0
        %v2172 = vadd.f32 0.0, %v2171
        %v2173 = vpop.f32.mrf.mxu0
        %v2174 = vadd.f32 0.0, %v2173
        %2175 = vmatmul.bf16.gmra.mxu0 %v2027
        %v2176 = vpop.f32.mrf.mxu0
        %v2177 = vadd.f32 0.0, %v2176
        %v2178 = vpop.f32.mrf.mxu0
        %v2179 = vadd.f32 0.0, %v2178
        %2180 = vmatmul.bf16.gmra.mxu0 %v2028
        %v2181 = vpop.f32.mrf.mxu0
        %v2182 = vadd.f32 0.0, %v2181
        %v2183 = vpop.f32.mrf.mxu0
        %v2184 = vadd.f32 0.0, %v2183
        %2185 = vmatmul.bf16.gmra.mxu0 %v2029
        %v2186 = vpop.f32.mrf.mxu0
        %v2187 = vadd.f32 0.0, %v2186
        %v2188 = vpop.f32.mrf.mxu0
        %v2189 = vadd.f32 0.0, %v2188
        %2190 = vmatmul.bf16.gmra.mxu0 %v2030
        %v2191 = vpop.f32.mrf.mxu0
        %v2192 = vadd.f32 0.0, %v2191
        %v2193 = vpop.f32.mrf.mxu0
        %v2194 = vadd.f32 0.0, %v2193
        %2195 = vmatmul.bf16.gmra.mxu0 %v2031
        %v2196 = vpop.f32.mrf.mxu0
        %v2197 = vadd.f32 0.0, %v2196
        %v2198 = vpop.f32.mrf.mxu0
        %v2199 = vadd.f32 0.0, %v2198
        %2200 = vmatmul.bf16.gmra.mxu0 %v2032
        %v2201 = vpop.f32.mrf.mxu0
        %v2202 = vadd.f32 0.0, %v2201
        %v2203 = vpop.f32.mrf.mxu0
        %v2204 = vadd.f32 0.0, %v2203
        %2205 = vmatmul.bf16.gmra.mxu0 %v2033
        %v2206 = vpop.f32.mrf.mxu0
        %v2207 = vadd.f32 0.0, %v2206
        %v2208 = vpop.f32.mrf.mxu0
        %v2209 = vadd.f32 0.0, %v2208
        %2210 = vmatmul.bf16.gmra.mxu0 %v2034
        %v2211 = vpop.f32.mrf.mxu0
        %v2212 = vadd.f32 0.0, %v2211
        %v2213 = vpop.f32.mrf.mxu0
        %v2214 = vadd.f32 0.0, %v2213
        %2215 = vmatmul.bf16.gmra.mxu0 %v2035
        %v2216 = vpop.f32.mrf.mxu0
        %v2217 = vadd.f32 0.0, %v2216
        %v2218 = vpop.f32.mrf.mxu0
        %v2219 = vadd.f32 0.0, %v2218
        %2220 = vmatmul.bf16.gmra.mxu0 %v2036
        %v2221 = vpop.f32.mrf.mxu0
        %v2222 = vadd.f32 0.0, %v2221
        %v2223 = vpop.f32.mrf.mxu0
        %v2224 = vadd.f32 0.0, %v2223
        %2225 = vmatmul.bf16.gmra.mxu0 %v2037
        %v2226 = vpop.f32.mrf.mxu0
        %v2227 = vadd.f32 0.0, %v2226
        %v2228 = vpop.f32.mrf.mxu0
        %v2229 = vadd.f32 0.0, %v2228
        %2230 = vmatmul.bf16.gmra.mxu0 %v2038
        %v2231 = vpop.f32.mrf.mxu0
        %v2232 = vadd.f32 0.0, %v2231
        %v2233 = vpop.f32.mrf.mxu0
        %v2234 = vadd.f32 0.0, %v2233
        %2235 = vmatmul.bf16.gmra.mxu0 %v2039
        %v2236 = vpop.f32.mrf.mxu0
        %v2237 = vadd.f32 0.0, %v2236
        %v2238 = vpop.f32.mrf.mxu0
        %v2239 = vadd.f32 0.0, %v2238
        %2240 = vmatmul.bf16.gmra.mxu0 %v2040
        %v2241 = vpop.f32.mrf.mxu0
        %v2242 = vadd.f32 0.0, %v2241
        %v2243 = vpop.f32.mrf.mxu0
        %v2244 = vadd.f32 0.0, %v2243
        %2245 = vmatmul.bf16.gmra.mxu0 %v2041
        %v2246 = vpop.f32.mrf.mxu0
        %v2247 = vadd.f32 0.0, %v2246
        %v2248 = vpop.f32.mrf.mxu0
        %v2249 = vadd.f32 0.0, %v2248
        %2250 = vdwg.mxu0
        %v2251 = vld [vmem:[#allocation2] sm:$0xff]
        %v2252 = vld [vmem:[#allocation2 + $0x8] sm:$0xff]
        %v2253 = vld [vmem:[#allocation2 + $0x10] sm:$0xff]
        %v2254 = vld [vmem:[#allocation2 + $0x18] sm:$0xff]
        %v2255 = vld [vmem:[#allocation2 + $0x20] sm:$0xff]
        %v2256 = vld [vmem:[#allocation2 + $0x28] sm:$0xff]
        %v2257 = vld [vmem:[#allocation2 + $0x30] sm:$0xff]
        %v2258 = vld [vmem:[#allocation2 + $0x38] sm:$0xff]
        %v2259 = vld [vmem:[#allocation2 + $0x40] sm:$0xff]
        %v2260 = vld [vmem:[#allocation2 + $0x48] sm:$0xff]
        %v2261 = vld [vmem:[#allocation2 + $0x50] sm:$0xff]
        %v2262 = vld [vmem:[#allocation2 + $0x58] sm:$0xff]
        %v2263 = vld [vmem:[#allocation2 + $0x60] sm:$0xff]
        %v2264 = vld [vmem:[#allocation2 + $0x68] sm:$0xff]
        %v2265 = vld [vmem:[#allocation2 + $0x70] sm:$0xff]
        %v2266 = vld [vmem:[#allocation2 + $0x78] sm:$0xff]
        %v2267 = vld [vmem:[#allocation2 + $0x80] sm:$0xff]
        %v2268 = vld [vmem:[#allocation2 + $0x88] sm:$0xff]
        %v2269 = vld [vmem:[#allocation2 + $0x90] sm:$0xff]
        %v2270 = vld [vmem:[#allocation2 + $0x98] sm:$0xff]
        %v2271 = vld [vmem:[#allocation2 + $0xa0] sm:$0xff]
        %v2272 = vld [vmem:[#allocation2 + $0xa8] sm:$0xff]
        %v2273 = vld [vmem:[#allocation2 + $0xb0] sm:$0xff]
        %v2274 = vld [vmem:[#allocation2 + $0xb8] sm:$0xff]
        %v2275 = vld [vmem:[#allocation2 + $0xc0] sm:$0xff]
        %v2276 = vld [vmem:[#allocation2 + $0xc8] sm:$0xff]
        %v2277 = vld [vmem:[#allocation2 + $0xd0] sm:$0xff]
        %v2278 = vld [vmem:[#allocation2 + $0xd8] sm:$0xff]
        %v2279 = vld [vmem:[#allocation2 + $0xe0] sm:$0xff]
        %v2280 = vld [vmem:[#allocation2 + $0xe8] sm:$0xff]
        %v2281 = vld [vmem:[#allocation2 + $0xf0] sm:$0xff]
        %v2282 = vld [vmem:[#allocation2 + $0xf8] sm:$0xff]
        %v2283 = vld [vmem:[#allocation2 + $0x100] sm:$0xff]
        %v2284 = vld [vmem:[#allocation2 + $0x108] sm:$0xff]
        %v2285 = vld [vmem:[#allocation2 + $0x110] sm:$0xff]
        %v2286 = vld [vmem:[#allocation2 + $0x118] sm:$0xff]
        %v2287 = vld [vmem:[#allocation2 + $0x120] sm:$0xff]
        %v2288 = vld [vmem:[#allocation2 + $0x128] sm:$0xff]
        %v2289 = vld [vmem:[#allocation2 + $0x130] sm:$0xff]
        %v2290 = vld [vmem:[#allocation2 + $0x138] sm:$0xff]
        %v2291 = vld [vmem:[#allocation2 + $0x140] sm:$0xff]
        %v2292 = vld [vmem:[#allocation2 + $0x148] sm:$0xff]
        %v2293 = vld [vmem:[#allocation2 + $0x150] sm:$0xff]
        %v2294 = vld [vmem:[#allocation2 + $0x158] sm:$0xff]
        %v2295 = vld [vmem:[#allocation2 + $0x160] sm:$0xff]
        %v2296 = vld [vmem:[#allocation2 + $0x168] sm:$0xff]
        %v2297 = vld [vmem:[#allocation2 + $0x170] sm:$0xff]
        %v2298 = vld [vmem:[#allocation2 + $0x178] sm:$0xff]
        %v2299 = vld [vmem:[#allocation2 + $0x180] sm:$0xff]
        %v2300 = vld [vmem:[#allocation2 + $0x188] sm:$0xff]
        %v2301 = vld [vmem:[#allocation2 + $0x190] sm:$0xff]
        %v2302 = vld [vmem:[#allocation2 + $0x198] sm:$0xff]
        %v2303 = vld [vmem:[#allocation2 + $0x1a0] sm:$0xff]
        %v2304 = vld [vmem:[#allocation2 + $0x1a8] sm:$0xff]
        %v2305 = vadd.f32 %v2251, %v2117
        %v2306 = vadd.f32 %v2252, %v2119
        %v2307 = vadd.f32 %v2253, %v2122
        %v2308 = vadd.f32 %v2254, %v2124
        %v2309 = vadd.f32 %v2255, %v2127
        %v2310 = vadd.f32 %v2256, %v2129
        %v2311 = vadd.f32 %v2257, %v2132
        %v2312 = vadd.f32 %v2258, %v2134
        %v2313 = vadd.f32 %v2259, %v2137
        %v2314 = vadd.f32 %v2260, %v2139
        %v2315 = vadd.f32 %v2261, %v2142
        %v2316 = vadd.f32 %v2262, %v2144
        %v2317 = vadd.f32 %v2263, %v2147
        %v2318 = vadd.f32 %v2264, %v2149
        %v2319 = vadd.f32 %v2265, %v2152
        %v2320 = vadd.f32 %v2266, %v2154
        %v2321 = vadd.f32 %v2267, %v2157
        %v2322 = vadd.f32 %v2268, %v2159
        %v2323 = vadd.f32 %v2269, %v2162
        %v2324 = vadd.f32 %v2270, %v2164
        %v2325 = vadd.f32 %v2271, %v2167
        %v2326 = vadd.f32 %v2272, %v2169
        %v2327 = vadd.f32 %v2273, %v2172
        %v2328 = vadd.f32 %v2274, %v2174
        %v2329 = vadd.f32 %v2275, %v2177
        %v2330 = vadd.f32 %v2276, %v2179
        %v2331 = vadd.f32 %v2277, %v2182
        %v2332 = vadd.f32 %v2278, %v2184
        %v2333 = vadd.f32 %v2279, %v2187
        %v2334 = vadd.f32 %v2280, %v2189
        %v2335 = vadd.f32 %v2281, %v2192
        %v2336 = vadd.f32 %v2282, %v2194
        %v2337 = vadd.f32 %v2283, %v2197
        %v2338 = vadd.f32 %v2284, %v2199
        %v2339 = vadd.f32 %v2285, %v2202
        %v2340 = vadd.f32 %v2286, %v2204
        %v2341 = vadd.f32 %v2287, %v2207
        %v2342 = vadd.f32 %v2288, %v2209
        %v2343 = vadd.f32 %v2289, %v2212
        %v2344 = vadd.f32 %v2290, %v2214
        %v2345 = vadd.f32 %v2291, %v2217
        %v2346 = vadd.f32 %v2292, %v2219
        %v2347 = vadd.f32 %v2293, %v2222
        %v2348 = vadd.f32 %v2294, %v2224
        %v2349 = vadd.f32 %v2295, %v2227
        %v2350 = vadd.f32 %v2296, %v2229
        %v2351 = vadd.f32 %v2297, %v2232
        %v2352 = vadd.f32 %v2298, %v2234
        %v2353 = vadd.f32 %v2299, %v2237
        %v2354 = vadd.f32 %v2300, %v2239
        %v2355 = vadd.f32 %v2301, %v2242
        %v2356 = vadd.f32 %v2302, %v2244
        %v2357 = vadd.f32 %v2303, %v2247
        %v2358 = vadd.f32 %v2304, %v2249
        %2359 = vst [vmem:[#allocation2] sm:$0xff] %v2305
        %2360 = vst [vmem:[#allocation2 + $0x8] sm:$0xff] %v2306
        %2361 = vst [vmem:[#allocation2 + $0x10] sm:$0xff] %v2307
        %2362 = vst [vmem:[#allocation2 + $0x18] sm:$0xff] %v2308
        %2363 = vst [vmem:[#allocation2 + $0x20] sm:$0xff] %v2309
        %2364 = vst [vmem:[#allocation2 + $0x28] sm:$0xff] %v2310
        %2365 = vst [vmem:[#allocation2 + $0x30] sm:$0xff] %v2311
        %2366 = vst [vmem:[#allocation2 + $0x38] sm:$0xff] %v2312
        %2367 = vst [vmem:[#allocation2 + $0x40] sm:$0xff] %v2313
        %2368 = vst [vmem:[#allocation2 + $0x48] sm:$0xff] %v2314
        %2369 = vst [vmem:[#allocation2 + $0x50] sm:$0xff] %v2315
        %2370 = vst [vmem:[#allocation2 + $0x58] sm:$0xff] %v2316
        %2371 = vst [vmem:[#allocation2 + $0x60] sm:$0xff] %v2317
        %2372 = vst [vmem:[#allocation2 + $0x68] sm:$0xff] %v2318
        %2373 = vst [vmem:[#allocation2 + $0x70] sm:$0xff] %v2319
        %2374 = vst [vmem:[#allocation2 + $0x78] sm:$0xff] %v2320
        %2375 = vst [vmem:[#allocation2 + $0x80] sm:$0xff] %v2321
        %2376 = vst [vmem:[#allocation2 + $0x88] sm:$0xff] %v2322
        %2377 = vst [vmem:[#allocation2 + $0x90] sm:$0xff] %v2323
        %2378 = vst [vmem:[#allocation2 + $0x98] sm:$0xff] %v2324
        %2379 = vst [vmem:[#allocation2 + $0xa0] sm:$0xff] %v2325
        %2380 = vst [vmem:[#allocation2 + $0xa8] sm:$0xff] %v2326
        %2381 = vst [vmem:[#allocation2 + $0xb0] sm:$0xff] %v2327
        %2382 = vst [vmem:[#allocation2 + $0xb8] sm:$0xff] %v2328
        %2383 = vst [vmem:[#allocation2 + $0xc0] sm:$0xff] %v2329
        %2384 = vst [vmem:[#allocation2 + $0xc8] sm:$0xff] %v2330
        %2385 = vst [vmem:[#allocation2 + $0xd0] sm:$0xff] %v2331
        %2386 = vst [vmem:[#allocation2 + $0xd8] sm:$0xff] %v2332
        %2387 = vst [vmem:[#allocation2 + $0xe0] sm:$0xff] %v2333
        %2388 = vst [vmem:[#allocation2 + $0xe8] sm:$0xff] %v2334
        %2389 = vst [vmem:[#allocation2 + $0xf0] sm:$0xff] %v2335
        %2390 = vst [vmem:[#allocation2 + $0xf8] sm:$0xff] %v2336
        %2391 = vst [vmem:[#allocation2 + $0x100] sm:$0xff] %v2337
        %2392 = vst [vmem:[#allocation2 + $0x108] sm:$0xff] %v2338
        %2393 = vst [vmem:[#allocation2 + $0x110] sm:$0xff] %v2339
        %2394 = vst [vmem:[#allocation2 + $0x118] sm:$0xff] %v2340
        %2395 = vst [vmem:[#allocation2 + $0x120] sm:$0xff] %v2341
        %2396 = vst [vmem:[#allocation2 + $0x128] sm:$0xff] %v2342
        %2397 = vst [vmem:[#allocation2 + $0x130] sm:$0xff] %v2343
        %2398 = vst [vmem:[#allocation2 + $0x138] sm:$0xff] %v2344
        %2399 = vst [vmem:[#allocation2 + $0x140] sm:$0xff] %v2345
        %2400 = vst [vmem:[#allocation2 + $0x148] sm:$0xff] %v2346
        %2401 = vst [vmem:[#allocation2 + $0x150] sm:$0xff] %v2347
        %2402 = vst [vmem:[#allocation2 + $0x158] sm:$0xff] %v2348
        %2403 = vst [vmem:[#allocation2 + $0x160] sm:$0xff] %v2349
        %2404 = vst [vmem:[#allocation2 + $0x168] sm:$0xff] %v2350
        %2405 = vst [vmem:[#allocation2 + $0x170] sm:$0xff] %v2351
        %2406 = vst [vmem:[#allocation2 + $0x178] sm:$0xff] %v2352
        %2407 = vst [vmem:[#allocation2 + $0x180] sm:$0xff] %v2353
        %2408 = vst [vmem:[#allocation2 + $0x188] sm:$0xff] %v2354
        %2409 = vst [vmem:[#allocation2 + $0x190] sm:$0xff] %v2355
        %2410 = vst [vmem:[#allocation2 + $0x198] sm:$0xff] %v2356
        %2411 = vst [vmem:[#allocation2 + $0x1a0] sm:$0xff] %v2357
        %2412 = vst [vmem:[#allocation2 + $0x1a8] sm:$0xff] %v2358
        %v2413 = vld [vmem:[%s221 + $0x21] sm:$0xff]
        %v2414 = vld [vmem:[%s221 + $0x29] sm:$0xff]
        %v2415 = vld [vmem:[%s221 + $0x31] sm:$0xff]
        %v2416 = vld [vmem:[%s221 + $0x39] sm:$0xff]
        %v2417 = vld [vmem:[%s221 + $0x41] sm:$0xff]
        %v2418 = vld [vmem:[%s221 + $0x49] sm:$0xff]
        %v2419 = vld [vmem:[%s221 + $0x51] sm:$0xff]
        %v2420 = vld [vmem:[%s221 + $0x59] sm:$0xff]
        %v2421 = vld [vmem:[%s221 + $0x61] sm:$0xff]
        %v2422 = vld [vmem:[%s221 + $0x69] sm:$0xff]
        %v2423 = vld [vmem:[%s221 + $0x71] sm:$0xff]
        %v2424 = vld [vmem:[%s221 + $0x79] sm:$0xff]
        %v2425 = vld [vmem:[%s221 + $0x81] sm:$0xff]
        %v2426 = vld [vmem:[%s221 + $0x89] sm:$0xff]
        %v2427 = vld [vmem:[%s221 + $0x91] sm:$0xff]
        %v2428 = vld [vmem:[%s221 + $0x99] sm:$0xff]
        %v2429 = vld [vmem:[%s221 + $0xa1] sm:$0xff]
        %v2430 = vld [vmem:[%s221 + $0xa9] sm:$0xff]
        %v2431 = vld [vmem:[%s221 + $0xb1] sm:$0xff]
        %v2432 = vld [vmem:[%s221 + $0xb9] sm:$0xff]
        %v2433 = vld [vmem:[%s221 + $0xc1] sm:$0xff]
        %v2434 = vld [vmem:[%s221 + $0xc9] sm:$0xff]
        %v2435 = vld [vmem:[%s221 + $0xd1] sm:$0xff]
        %v2436 = vld [vmem:[%s221 + $0xd9] sm:$0xff]
        %v2437 = vld [vmem:[%s221 + $0xe1] sm:$0xff]
        %v2438 = vld [vmem:[%s221 + $0xe9] sm:$0xff]
        %v2439 = vld [vmem:[%s221 + $0xf1] sm:$0xff]
        %v2440 = vld [vmem:[%s221 + $0xf9] sm:$0xff]
        %v2441 = vld [vmem:[%s221 + $0x101] sm:$0xff]
        %v2442 = vld [vmem:[%s221 + $0x109] sm:$0xff]
        %v2443 = vld [vmem:[%s221 + $0x111] sm:$0xff]
        %v2444 = vld [vmem:[%s221 + $0x119] sm:$0xff]
        %v2445 = vld [vmem:[%s221 + $0x121] sm:$0xff]
        %v2446 = vld [vmem:[%s221 + $0x129] sm:$0xff]
        %v2447 = vld [vmem:[%s221 + $0x131] sm:$0xff]
        %v2448 = vld [vmem:[%s221 + $0x139] sm:$0xff]
        %v2449 = vld [vmem:[%s221 + $0x141] sm:$0xff]
        %v2450 = vld [vmem:[%s221 + $0x149] sm:$0xff]
        %v2451 = vld [vmem:[%s221 + $0x151] sm:$0xff]
        %v2452 = vld [vmem:[%s221 + $0x159] sm:$0xff]
        %v2453 = vld [vmem:[%s221 + $0x161] sm:$0xff]
        %v2454 = vld [vmem:[%s221 + $0x169] sm:$0xff]
        %v2455 = vld [vmem:[%s221 + $0x171] sm:$0xff]
        %v2456 = vld [vmem:[%s221 + $0x179] sm:$0xff]
        %v2457 = vld [vmem:[%s221 + $0x181] sm:$0xff]
        %v2458 = vld [vmem:[%s221 + $0x189] sm:$0xff]
        %v2459 = vld [vmem:[%s221 + $0x191] sm:$0xff]
        %v2460 = vld [vmem:[%s221 + $0x199] sm:$0xff]
        %v2461 = vld [vmem:[%s221 + $0x1a1] sm:$0xff]
        %v2462 = vld [vmem:[%s221 + $0x1a9] sm:$0xff]
        %v2463 = vld [vmem:[%s221 + $0x1b1] sm:$0xff]
        %v2464 = vld [vmem:[%s221 + $0x1b9] sm:$0xff]
        %v2465 = vld [vmem:[%s221 + $0x1c1] sm:$0xff]
        %v2466 = vld [vmem:[%s221 + $0x1c9] sm:$0xff]
        %v2467 = vpack.c.bf16 %v2414, %v2413
        %v2468 = vpack.c.bf16 %v2416, %v2415
        %v2469 = vpack.c.bf16 %v2418, %v2417
        %v2470 = vpack.c.bf16 %v2420, %v2419
        %v2471 = vpack.c.bf16 %v2422, %v2421
        %v2472 = vpack.c.bf16 %v2424, %v2423
        %v2473 = vpack.c.bf16 %v2426, %v2425
        %v2474 = vpack.c.bf16 %v2428, %v2427
        %v2475 = vpack.c.bf16 %v2430, %v2429
        %v2476 = vpack.c.bf16 %v2432, %v2431
        %v2477 = vpack.c.bf16 %v2434, %v2433
        %v2478 = vpack.c.bf16 %v2436, %v2435
        %v2479 = vpack.c.bf16 %v2438, %v2437
        %v2480 = vpack.c.bf16 %v2440, %v2439
        %v2481 = vpack.c.bf16 %v2442, %v2441
        %v2482 = vpack.c.bf16 %v2444, %v2443
        %v2483 = vpack.c.bf16 %v2446, %v2445
        %v2484 = vpack.c.bf16 %v2448, %v2447
        %v2485 = vpack.c.bf16 %v2450, %v2449
        %v2486 = vpack.c.bf16 %v2452, %v2451
        %v2487 = vpack.c.bf16 %v2454, %v2453
        %v2488 = vpack.c.bf16 %v2456, %v2455
        %v2489 = vpack.c.bf16 %v2458, %v2457
        %v2490 = vpack.c.bf16 %v2460, %v2459
        %v2491 = vpack.c.bf16 %v2462, %v2461
        %v2492 = vpack.c.bf16 %v2464, %v2463
        %v2493 = vpack.c.bf16 %v2466, %v2465
        %s2494 = scalar_lea.vmem [#allocation6], 320
        %v2495 = vld [vmem:[%s2494] sm:$0xf]
        %v2496 = vld [vmem:[%s2494 + $0x4] sm:$0xf]
        %v2497 = vld [vmem:[%s2494 + $0x8] sm:$0xf]
        %v2498 = vld [vmem:[%s2494 + $0xc] sm:$0xf]
        %v2499 = vld [vmem:[%s2494 + $0x10] sm:$0xf]
        %v2500 = vld [vmem:[%s2494 + $0x14] sm:$0xf]
        %v2501 = vld [vmem:[%s2494 + $0x18] sm:$0xf]
        %v2502 = vld [vmem:[%s2494 + $0x1c] sm:$0xf]
        %v2503 = vld [vmem:[%s2494 + $0x20] sm:$0xf]
        %v2504 = vld [vmem:[%s2494 + $0x24] sm:$0xf]
        %v2505 = vld [vmem:[%s2494 + $0x28] sm:$0xf]
        %v2506 = vld [vmem:[%s2494 + $0x2c] sm:$0xf]
        %v2507 = vld [vmem:[%s2494 + $0x30] sm:$0xf]
        %v2508 = vld [vmem:[%s2494 + $0x34] sm:$0xf]
        %v2509 = vld [vmem:[%s2494 + $0x38] sm:$0xf]
        %v2510 = vld [vmem:[%s2494 + $0x3c] sm:$0xf]
        %v2527 = vunpack.c.l.b16 %v2495
        %v2528 = vunpack.c.l.b16 %v2496
        %v2529 = vunpack.c.l.b16 %v2497
        %v2530 = vunpack.c.l.b16 %v2498
        %v2531 = vunpack.c.l.b16 %v2499
        %v2532 = vunpack.c.l.b16 %v2500
        %v2533 = vunpack.c.l.b16 %v2501
        %v2534 = vunpack.c.l.b16 %v2502
        %v2535 = vunpack.c.l.b16 %v2503
        %v2536 = vunpack.c.l.b16 %v2504
        %v2537 = vunpack.c.l.b16 %v2505
        %v2538 = vunpack.c.l.b16 %v2506
        %v2539 = vunpack.c.l.b16 %v2507
        %v2540 = vunpack.c.l.b16 %v2508
        %v2541 = vunpack.c.l.b16 %v2509
        %v2542 = vunpack.c.l.b16 %v2510
        %v2543 = vpack.c.b16 %v2528, %v2527
        %v2544 = vpack.c.b16 %v2530, %v2529
        %v2545 = vpack.c.b16 %v2532, %v2531
        %v2546 = vpack.c.b16 %v2534, %v2533
        %v2547 = vpack.c.b16 %v2536, %v2535
        %v2548 = vpack.c.b16 %v2538, %v2537
        %v2549 = vpack.c.b16 %v2540, %v2539
        %v2550 = vpack.c.b16 %v2542, %v2541
        %2559 = vmatpush.bf16.msra.mxu0 %v2550
        %2560 = vmatpush.bf16.msra.mxu0 %v2549
        %2561 = vmatpush.bf16.msra.mxu0 %v2548
        %2562 = vmatpush.bf16.msra.mxu0 %v2547
        %2563 = vmatpush.bf16.msra.mxu0 %v2546
        %2564 = vmatpush.bf16.msra.mxu0 %v2545
        %2565 = vmatpush.bf16.msra.mxu0 %v2544
        %2566 = vmatpush.bf16.msra.mxu0 %v2543
        %2567 = vmatmul.bf16.gmra.mxu0 %v2467
        %v2568 = vpop.f32.mrf.mxu0
        %v2569 = vadd.f32 0.0, %v2568
        %v2570 = vpop.f32.mrf.mxu0
        %v2571 = vadd.f32 0.0, %v2570
        %2572 = vmatmul.bf16.gmra.mxu0 %v2468
        %v2573 = vpop.f32.mrf.mxu0
        %v2574 = vadd.f32 0.0, %v2573
        %v2575 = vpop.f32.mrf.mxu0
        %v2576 = vadd.f32 0.0, %v2575
        %2577 = vmatmul.bf16.gmra.mxu0 %v2469
        %v2578 = vpop.f32.mrf.mxu0
        %v2579 = vadd.f32 0.0, %v2578
        %v2580 = vpop.f32.mrf.mxu0
        %v2581 = vadd.f32 0.0, %v2580
        %2582 = vmatmul.bf16.gmra.mxu0 %v2470
        %v2583 = vpop.f32.mrf.mxu0
        %v2584 = vadd.f32 0.0, %v2583
        %v2585 = vpop.f32.mrf.mxu0
        %v2586 = vadd.f32 0.0, %v2585
        %2587 = vmatmul.bf16.gmra.mxu0 %v2471
        %v2588 = vpop.f32.mrf.mxu0
        %v2589 = vadd.f32 0.0, %v2588
        %v2590 = vpop.f32.mrf.mxu0
        %v2591 = vadd.f32 0.0, %v2590
        %2592 = vmatmul.bf16.gmra.mxu0 %v2472
        %v2593 = vpop.f32.mrf.mxu0
        %v2594 = vadd.f32 0.0, %v2593
        %v2595 = vpop.f32.mrf.mxu0
        %v2596 = vadd.f32 0.0, %v2595
        %2597 = vmatmul.bf16.gmra.mxu0 %v2473
        %v2598 = vpop.f32.mrf.mxu0
        %v2599 = vadd.f32 0.0, %v2598
        %v2600 = vpop.f32.mrf.mxu0
        %v2601 = vadd.f32 0.0, %v2600
        %2602 = vmatmul.bf16.gmra.mxu0 %v2474
        %v2603 = vpop.f32.mrf.mxu0
        %v2604 = vadd.f32 0.0, %v2603
        %v2605 = vpop.f32.mrf.mxu0
        %v2606 = vadd.f32 0.0, %v2605
        %2607 = vmatmul.bf16.gmra.mxu0 %v2475
        %v2608 = vpop.f32.mrf.mxu0
        %v2609 = vadd.f32 0.0, %v2608
        %v2610 = vpop.f32.mrf.mxu0
        %v2611 = vadd.f32 0.0, %v2610
        %2612 = vmatmul.bf16.gmra.mxu0 %v2476
        %v2613 = vpop.f32.mrf.mxu0
        %v2614 = vadd.f32 0.0, %v2613
        %v2615 = vpop.f32.mrf.mxu0
        %v2616 = vadd.f32 0.0, %v2615
        %2617 = vmatmul.bf16.gmra.mxu0 %v2477
        %v2618 = vpop.f32.mrf.mxu0
        %v2619 = vadd.f32 0.0, %v2618
        %v2620 = vpop.f32.mrf.mxu0
        %v2621 = vadd.f32 0.0, %v2620
        %2622 = vmatmul.bf16.gmra.mxu0 %v2478
        %v2623 = vpop.f32.mrf.mxu0
        %v2624 = vadd.f32 0.0, %v2623
        %v2625 = vpop.f32.mrf.mxu0
        %v2626 = vadd.f32 0.0, %v2625
        %2627 = vmatmul.bf16.gmra.mxu0 %v2479
        %v2628 = vpop.f32.mrf.mxu0
        %v2629 = vadd.f32 0.0, %v2628
        %v2630 = vpop.f32.mrf.mxu0
        %v2631 = vadd.f32 0.0, %v2630
        %2632 = vmatmul.bf16.gmra.mxu0 %v2480
        %v2633 = vpop.f32.mrf.mxu0
        %v2634 = vadd.f32 0.0, %v2633
        %v2635 = vpop.f32.mrf.mxu0
        %v2636 = vadd.f32 0.0, %v2635
        %2637 = vmatmul.bf16.gmra.mxu0 %v2481
        %v2638 = vpop.f32.mrf.mxu0
        %v2639 = vadd.f32 0.0, %v2638
        %v2640 = vpop.f32.mrf.mxu0
        %v2641 = vadd.f32 0.0, %v2640
        %2642 = vmatmul.bf16.gmra.mxu0 %v2482
        %v2643 = vpop.f32.mrf.mxu0
        %v2644 = vadd.f32 0.0, %v2643
        %v2645 = vpop.f32.mrf.mxu0
        %v2646 = vadd.f32 0.0, %v2645
        %2647 = vmatmul.bf16.gmra.mxu0 %v2483
        %v2648 = vpop.f32.mrf.mxu0
        %v2649 = vadd.f32 0.0, %v2648
        %v2650 = vpop.f32.mrf.mxu0
        %v2651 = vadd.f32 0.0, %v2650
        %2652 = vmatmul.bf16.gmra.mxu0 %v2484
        %v2653 = vpop.f32.mrf.mxu0
        %v2654 = vadd.f32 0.0, %v2653
        %v2655 = vpop.f32.mrf.mxu0
        %v2656 = vadd.f32 0.0, %v2655
        %2657 = vmatmul.bf16.gmra.mxu0 %v2485
        %v2658 = vpop.f32.mrf.mxu0
        %v2659 = vadd.f32 0.0, %v2658
        %v2660 = vpop.f32.mrf.mxu0
        %v2661 = vadd.f32 0.0, %v2660
        %2662 = vmatmul.bf16.gmra.mxu0 %v2486
        %v2663 = vpop.f32.mrf.mxu0
        %v2664 = vadd.f32 0.0, %v2663
        %v2665 = vpop.f32.mrf.mxu0
        %v2666 = vadd.f32 0.0, %v2665
        %2667 = vmatmul.bf16.gmra.mxu0 %v2487
        %v2668 = vpop.f32.mrf.mxu0
        %v2669 = vadd.f32 0.0, %v2668
        %v2670 = vpop.f32.mrf.mxu0
        %v2671 = vadd.f32 0.0, %v2670
        %2672 = vmatmul.bf16.gmra.mxu0 %v2488
        %v2673 = vpop.f32.mrf.mxu0
        %v2674 = vadd.f32 0.0, %v2673
        %v2675 = vpop.f32.mrf.mxu0
        %v2676 = vadd.f32 0.0, %v2675
        %2677 = vmatmul.bf16.gmra.mxu0 %v2489
        %v2678 = vpop.f32.mrf.mxu0
        %v2679 = vadd.f32 0.0, %v2678
        %v2680 = vpop.f32.mrf.mxu0
        %v2681 = vadd.f32 0.0, %v2680
        %2682 = vmatmul.bf16.gmra.mxu0 %v2490
        %v2683 = vpop.f32.mrf.mxu0
        %v2684 = vadd.f32 0.0, %v2683
        %v2685 = vpop.f32.mrf.mxu0
        %v2686 = vadd.f32 0.0, %v2685
        %2687 = vmatmul.bf16.gmra.mxu0 %v2491
        %v2688 = vpop.f32.mrf.mxu0
        %v2689 = vadd.f32 0.0, %v2688
        %v2690 = vpop.f32.mrf.mxu0
        %v2691 = vadd.f32 0.0, %v2690
        %2692 = vmatmul.bf16.gmra.mxu0 %v2492
        %v2693 = vpop.f32.mrf.mxu0
        %v2694 = vadd.f32 0.0, %v2693
        %v2695 = vpop.f32.mrf.mxu0
        %v2696 = vadd.f32 0.0, %v2695
        %2697 = vmatmul.bf16.gmra.mxu0 %v2493
        %v2698 = vpop.f32.mrf.mxu0
        %v2699 = vadd.f32 0.0, %v2698
        %v2700 = vpop.f32.mrf.mxu0
        %v2701 = vadd.f32 0.0, %v2700
        %2702 = vdwg.mxu0
        %v2703 = vld [vmem:[#allocation2] sm:$0xff]
        %v2704 = vld [vmem:[#allocation2 + $0x8] sm:$0xff]
        %v2705 = vld [vmem:[#allocation2 + $0x10] sm:$0xff]
        %v2706 = vld [vmem:[#allocation2 + $0x18] sm:$0xff]
        %v2707 = vld [vmem:[#allocation2 + $0x20] sm:$0xff]
        %v2708 = vld [vmem:[#allocation2 + $0x28] sm:$0xff]
        %v2709 = vld [vmem:[#allocation2 + $0x30] sm:$0xff]
        %v2710 = vld [vmem:[#allocation2 + $0x38] sm:$0xff]
        %v2711 = vld [vmem:[#allocation2 + $0x40] sm:$0xff]
        %v2712 = vld [vmem:[#allocation2 + $0x48] sm:$0xff]
        %v2713 = vld [vmem:[#allocation2 + $0x50] sm:$0xff]
        %v2714 = vld [vmem:[#allocation2 + $0x58] sm:$0xff]
        %v2715 = vld [vmem:[#allocation2 + $0x60] sm:$0xff]
        %v2716 = vld [vmem:[#allocation2 + $0x68] sm:$0xff]
        %v2717 = vld [vmem:[#allocation2 + $0x70] sm:$0xff]
        %v2718 = vld [vmem:[#allocation2 + $0x78] sm:$0xff]
        %v2719 = vld [vmem:[#allocation2 + $0x80] sm:$0xff]
        %v2720 = vld [vmem:[#allocation2 + $0x88] sm:$0xff]
        %v2721 = vld [vmem:[#allocation2 + $0x90] sm:$0xff]
        %v2722 = vld [vmem:[#allocation2 + $0x98] sm:$0xff]
        %v2723 = vld [vmem:[#allocation2 + $0xa0] sm:$0xff]
        %v2724 = vld [vmem:[#allocation2 + $0xa8] sm:$0xff]
        %v2725 = vld [vmem:[#allocation2 + $0xb0] sm:$0xff]
        %v2726 = vld [vmem:[#allocation2 + $0xb8] sm:$0xff]
        %v2727 = vld [vmem:[#allocation2 + $0xc0] sm:$0xff]
        %v2728 = vld [vmem:[#allocation2 + $0xc8] sm:$0xff]
        %v2729 = vld [vmem:[#allocation2 + $0xd0] sm:$0xff]
        %v2730 = vld [vmem:[#allocation2 + $0xd8] sm:$0xff]
        %v2731 = vld [vmem:[#allocation2 + $0xe0] sm:$0xff]
        %v2732 = vld [vmem:[#allocation2 + $0xe8] sm:$0xff]
        %v2733 = vld [vmem:[#allocation2 + $0xf0] sm:$0xff]
        %v2734 = vld [vmem:[#allocation2 + $0xf8] sm:$0xff]
        %v2735 = vld [vmem:[#allocation2 + $0x100] sm:$0xff]
        %v2736 = vld [vmem:[#allocation2 + $0x108] sm:$0xff]
        %v2737 = vld [vmem:[#allocation2 + $0x110] sm:$0xff]
        %v2738 = vld [vmem:[#allocation2 + $0x118] sm:$0xff]
        %v2739 = vld [vmem:[#allocation2 + $0x120] sm:$0xff]
        %v2740 = vld [vmem:[#allocation2 + $0x128] sm:$0xff]
        %v2741 = vld [vmem:[#allocation2 + $0x130] sm:$0xff]
        %v2742 = vld [vmem:[#allocation2 + $0x138] sm:$0xff]
        %v2743 = vld [vmem:[#allocation2 + $0x140] sm:$0xff]
        %v2744 = vld [vmem:[#allocation2 + $0x148] sm:$0xff]
        %v2745 = vld [vmem:[#allocation2 + $0x150] sm:$0xff]
        %v2746 = vld [vmem:[#allocation2 + $0x158] sm:$0xff]
        %v2747 = vld [vmem:[#allocation2 + $0x160] sm:$0xff]
        %v2748 = vld [vmem:[#allocation2 + $0x168] sm:$0xff]
        %v2749 = vld [vmem:[#allocation2 + $0x170] sm:$0xff]
        %v2750 = vld [vmem:[#allocation2 + $0x178] sm:$0xff]
        %v2751 = vld [vmem:[#allocation2 + $0x180] sm:$0xff]
        %v2752 = vld [vmem:[#allocation2 + $0x188] sm:$0xff]
        %v2753 = vld [vmem:[#allocation2 + $0x190] sm:$0xff]
        %v2754 = vld [vmem:[#allocation2 + $0x198] sm:$0xff]
        %v2755 = vld [vmem:[#allocation2 + $0x1a0] sm:$0xff]
        %v2756 = vld [vmem:[#allocation2 + $0x1a8] sm:$0xff]
        %v2757 = vadd.f32 %v2703, %v2569
        %v2758 = vadd.f32 %v2704, %v2571
        %v2759 = vadd.f32 %v2705, %v2574
        %v2760 = vadd.f32 %v2706, %v2576
        %v2761 = vadd.f32 %v2707, %v2579
        %v2762 = vadd.f32 %v2708, %v2581
        %v2763 = vadd.f32 %v2709, %v2584
        %v2764 = vadd.f32 %v2710, %v2586
        %v2765 = vadd.f32 %v2711, %v2589
        %v2766 = vadd.f32 %v2712, %v2591
        %v2767 = vadd.f32 %v2713, %v2594
        %v2768 = vadd.f32 %v2714, %v2596
        %v2769 = vadd.f32 %v2715, %v2599
        %v2770 = vadd.f32 %v2716, %v2601
        %v2771 = vadd.f32 %v2717, %v2604
        %v2772 = vadd.f32 %v2718, %v2606
        %v2773 = vadd.f32 %v2719, %v2609
        %v2774 = vadd.f32 %v2720, %v2611
        %v2775 = vadd.f32 %v2721, %v2614
        %v2776 = vadd.f32 %v2722, %v2616
        %v2777 = vadd.f32 %v2723, %v2619
        %v2778 = vadd.f32 %v2724, %v2621
        %v2779 = vadd.f32 %v2725, %v2624
        %v2780 = vadd.f32 %v2726, %v2626
        %v2781 = vadd.f32 %v2727, %v2629
        %v2782 = vadd.f32 %v2728, %v2631
        %v2783 = vadd.f32 %v2729, %v2634
        %v2784 = vadd.f32 %v2730, %v2636
        %v2785 = vadd.f32 %v2731, %v2639
        %v2786 = vadd.f32 %v2732, %v2641
        %v2787 = vadd.f32 %v2733, %v2644
        %v2788 = vadd.f32 %v2734, %v2646
        %v2789 = vadd.f32 %v2735, %v2649
        %v2790 = vadd.f32 %v2736, %v2651
        %v2791 = vadd.f32 %v2737, %v2654
        %v2792 = vadd.f32 %v2738, %v2656
        %v2793 = vadd.f32 %v2739, %v2659
        %v2794 = vadd.f32 %v2740, %v2661
        %v2795 = vadd.f32 %v2741, %v2664
        %v2796 = vadd.f32 %v2742, %v2666
        %v2797 = vadd.f32 %v2743, %v2669
        %v2798 = vadd.f32 %v2744, %v2671
        %v2799 = vadd.f32 %v2745, %v2674
        %v2800 = vadd.f32 %v2746, %v2676
        %v2801 = vadd.f32 %v2747, %v2679
        %v2802 = vadd.f32 %v2748, %v2681
        %v2803 = vadd.f32 %v2749, %v2684
        %v2804 = vadd.f32 %v2750, %v2686
        %v2805 = vadd.f32 %v2751, %v2689
        %v2806 = vadd.f32 %v2752, %v2691
        %v2807 = vadd.f32 %v2753, %v2694
        %v2808 = vadd.f32 %v2754, %v2696
        %v2809 = vadd.f32 %v2755, %v2699
        %v2810 = vadd.f32 %v2756, %v2701
        %2811 = vst [vmem:[#allocation2] sm:$0xff] %v2757
        %2812 = vst [vmem:[#allocation2 + $0x8] sm:$0xff] %v2758
        %2813 = vst [vmem:[#allocation2 + $0x10] sm:$0xff] %v2759
        %2814 = vst [vmem:[#allocation2 + $0x18] sm:$0xff] %v2760
        %2815 = vst [vmem:[#allocation2 + $0x20] sm:$0xff] %v2761
        %2816 = vst [vmem:[#allocation2 + $0x28] sm:$0xff] %v2762
        %2817 = vst [vmem:[#allocation2 + $0x30] sm:$0xff] %v2763
        %2818 = vst [vmem:[#allocation2 + $0x38] sm:$0xff] %v2764
        %2819 = vst [vmem:[#allocation2 + $0x40] sm:$0xff] %v2765
        %2820 = vst [vmem:[#allocation2 + $0x48] sm:$0xff] %v2766
        %2821 = vst [vmem:[#allocation2 + $0x50] sm:$0xff] %v2767
        %2822 = vst [vmem:[#allocation2 + $0x58] sm:$0xff] %v2768
        %2823 = vst [vmem:[#allocation2 + $0x60] sm:$0xff] %v2769
        %2824 = vst [vmem:[#allocation2 + $0x68] sm:$0xff] %v2770
        %2825 = vst [vmem:[#allocation2 + $0x70] sm:$0xff] %v2771
        %2826 = vst [vmem:[#allocation2 + $0x78] sm:$0xff] %v2772
        %2827 = vst [vmem:[#allocation2 + $0x80] sm:$0xff] %v2773
        %2828 = vst [vmem:[#allocation2 + $0x88] sm:$0xff] %v2774
        %2829 = vst [vmem:[#allocation2 + $0x90] sm:$0xff] %v2775
        %2830 = vst [vmem:[#allocation2 + $0x98] sm:$0xff] %v2776
        %2831 = vst [vmem:[#allocation2 + $0xa0] sm:$0xff] %v2777
        %2832 = vst [vmem:[#allocation2 + $0xa8] sm:$0xff] %v2778
        %2833 = vst [vmem:[#allocation2 + $0xb0] sm:$0xff] %v2779
        %2834 = vst [vmem:[#allocation2 + $0xb8] sm:$0xff] %v2780
        %2835 = vst [vmem:[#allocation2 + $0xc0] sm:$0xff] %v2781
        %2836 = vst [vmem:[#allocation2 + $0xc8] sm:$0xff] %v2782
        %2837 = vst [vmem:[#allocation2 + $0xd0] sm:$0xff] %v2783
        %2838 = vst [vmem:[#allocation2 + $0xd8] sm:$0xff] %v2784
        %2839 = vst [vmem:[#allocation2 + $0xe0] sm:$0xff] %v2785
        %2840 = vst [vmem:[#allocation2 + $0xe8] sm:$0xff] %v2786
        %2841 = vst [vmem:[#allocation2 + $0xf0] sm:$0xff] %v2787
        %2842 = vst [vmem:[#allocation2 + $0xf8] sm:$0xff] %v2788
        %2843 = vst [vmem:[#allocation2 + $0x100] sm:$0xff] %v2789
        %2844 = vst [vmem:[#allocation2 + $0x108] sm:$0xff] %v2790
        %2845 = vst [vmem:[#allocation2 + $0x110] sm:$0xff] %v2791
        %2846 = vst [vmem:[#allocation2 + $0x118] sm:$0xff] %v2792
        %2847 = vst [vmem:[#allocation2 + $0x120] sm:$0xff] %v2793
        %2848 = vst [vmem:[#allocation2 + $0x128] sm:$0xff] %v2794
        %2849 = vst [vmem:[#allocation2 + $0x130] sm:$0xff] %v2795
        %2850 = vst [vmem:[#allocation2 + $0x138] sm:$0xff] %v2796
        %2851 = vst [vmem:[#allocation2 + $0x140] sm:$0xff] %v2797
        %2852 = vst [vmem:[#allocation2 + $0x148] sm:$0xff] %v2798
        %2853 = vst [vmem:[#allocation2 + $0x150] sm:$0xff] %v2799
        %2854 = vst [vmem:[#allocation2 + $0x158] sm:$0xff] %v2800
        %2855 = vst [vmem:[#allocation2 + $0x160] sm:$0xff] %v2801
        %2856 = vst [vmem:[#allocation2 + $0x168] sm:$0xff] %v2802
        %2857 = vst [vmem:[#allocation2 + $0x170] sm:$0xff] %v2803
        %2858 = vst [vmem:[#allocation2 + $0x178] sm:$0xff] %v2804
        %2859 = vst [vmem:[#allocation2 + $0x180] sm:$0xff] %v2805
        %2860 = vst [vmem:[#allocation2 + $0x188] sm:$0xff] %v2806
        %2861 = vst [vmem:[#allocation2 + $0x190] sm:$0xff] %v2807
        %2862 = vst [vmem:[#allocation2 + $0x198] sm:$0xff] %v2808
        %2863 = vst [vmem:[#allocation2 + $0x1a0] sm:$0xff] %v2809
        %2864 = vst [vmem:[#allocation2 + $0x1a8] sm:$0xff] %v2810
        %v2865 = vld [vmem:[%s221 + $0x37] sm:$0xff]
        %v2866 = vld [vmem:[%s221 + $0x3f] sm:$0xff]
        %v2867 = vld [vmem:[%s221 + $0x47] sm:$0xff]
        %v2868 = vld [vmem:[%s221 + $0x4f] sm:$0xff]
        %v2869 = vld [vmem:[%s221 + $0x57] sm:$0xff]
        %v2870 = vld [vmem:[%s221 + $0x5f] sm:$0xff]
        %v2871 = vld [vmem:[%s221 + $0x67] sm:$0xff]
        %v2872 = vld [vmem:[%s221 + $0x6f] sm:$0xff]
        %v2873 = vld [vmem:[%s221 + $0x77] sm:$0xff]
        %v2874 = vld [vmem:[%s221 + $0x7f] sm:$0xff]
        %v2875 = vld [vmem:[%s221 + $0x87] sm:$0xff]
        %v2876 = vld [vmem:[%s221 + $0x8f] sm:$0xff]
        %v2877 = vld [vmem:[%s221 + $0x97] sm:$0xff]
        %v2878 = vld [vmem:[%s221 + $0x9f] sm:$0xff]
        %v2879 = vld [vmem:[%s221 + $0xa7] sm:$0xff]
        %v2880 = vld [vmem:[%s221 + $0xaf] sm:$0xff]
        %v2881 = vld [vmem:[%s221 + $0xb7] sm:$0xff]
        %v2882 = vld [vmem:[%s221 + $0xbf] sm:$0xff]
        %v2883 = vld [vmem:[%s221 + $0xc7] sm:$0xff]
        %v2884 = vld [vmem:[%s221 + $0xcf] sm:$0xff]
        %v2885 = vld [vmem:[%s221 + $0xd7] sm:$0xff]
        %v2886 = vld [vmem:[%s221 + $0xdf] sm:$0xff]
        %v2887 = vld [vmem:[%s221 + $0xe7] sm:$0xff]
        %v2888 = vld [vmem:[%s221 + $0xef] sm:$0xff]
        %v2889 = vld [vmem:[%s221 + $0xf7] sm:$0xff]
        %v2890 = vld [vmem:[%s221 + $0xff] sm:$0xff]
        %v2891 = vld [vmem:[%s221 + $0x107] sm:$0xff]
        %v2892 = vld [vmem:[%s221 + $0x10f] sm:$0xff]
        %v2893 = vld [vmem:[%s221 + $0x117] sm:$0xff]
        %v2894 = vld [vmem:[%s221 + $0x11f] sm:$0xff]
        %v2895 = vld [vmem:[%s221 + $0x127] sm:$0xff]
        %v2896 = vld [vmem:[%s221 + $0x12f] sm:$0xff]
        %v2897 = vld [vmem:[%s221 + $0x137] sm:$0xff]
        %v2898 = vld [vmem:[%s221 + $0x13f] sm:$0xff]
        %v2899 = vld [vmem:[%s221 + $0x147] sm:$0xff]
        %v2900 = vld [vmem:[%s221 + $0x14f] sm:$0xff]
        %v2901 = vld [vmem:[%s221 + $0x157] sm:$0xff]
        %v2902 = vld [vmem:[%s221 + $0x15f] sm:$0xff]
        %v2903 = vld [vmem:[%s221 + $0x167] sm:$0xff]
        %v2904 = vld [vmem:[%s221 + $0x16f] sm:$0xff]
        %v2905 = vld [vmem:[%s221 + $0x177] sm:$0xff]
        %v2906 = vld [vmem:[%s221 + $0x17f] sm:$0xff]
        %v2907 = vld [vmem:[%s221 + $0x187] sm:$0xff]
        %v2908 = vld [vmem:[%s221 + $0x18f] sm:$0xff]
        %v2909 = vld [vmem:[%s221 + $0x197] sm:$0xff]
        %v2910 = vld [vmem:[%s221 + $0x19f] sm:$0xff]
        %v2911 = vld [vmem:[%s221 + $0x1a7] sm:$0xff]
        %v2912 = vld [vmem:[%s221 + $0x1af] sm:$0xff]
        %v2913 = vld [vmem:[%s221 + $0x1b7] sm:$0xff]
        %v2914 = vld [vmem:[%s221 + $0x1bf] sm:$0xff]
        %v2915 = vld [vmem:[%s221 + $0x1c7] sm:$0xff]
        %v2916 = vld [vmem:[%s221 + $0x1cf] sm:$0xff]
        %v2917 = vld [vmem:[%s221 + $0x1d7] sm:$0xff]
        %v2918 = vld [vmem:[%s221 + $0x1df] sm:$0xff]
        %v2919 = vpack.c.bf16 %v2866, %v2865
        %v2920 = vpack.c.bf16 %v2868, %v2867
        %v2921 = vpack.c.bf16 %v2870, %v2869
        %v2922 = vpack.c.bf16 %v2872, %v2871
        %v2923 = vpack.c.bf16 %v2874, %v2873
        %v2924 = vpack.c.bf16 %v2876, %v2875
        %v2925 = vpack.c.bf16 %v2878, %v2877
        %v2926 = vpack.c.bf16 %v2880, %v2879
        %v2927 = vpack.c.bf16 %v2882, %v2881
        %v2928 = vpack.c.bf16 %v2884, %v2883
        %v2929 = vpack.c.bf16 %v2886, %v2885
        %v2930 = vpack.c.bf16 %v2888, %v2887
        %v2931 = vpack.c.bf16 %v2890, %v2889
        %v2932 = vpack.c.bf16 %v2892, %v2891
        %v2933 = vpack.c.bf16 %v2894, %v2893
        %v2934 = vpack.c.bf16 %v2896, %v2895
        %v2935 = vpack.c.bf16 %v2898, %v2897
        %v2936 = vpack.c.bf16 %v2900, %v2899
        %v2937 = vpack.c.bf16 %v2902, %v2901
        %v2938 = vpack.c.bf16 %v2904, %v2903
        %v2939 = vpack.c.bf16 %v2906, %v2905
        %v2940 = vpack.c.bf16 %v2908, %v2907
        %v2941 = vpack.c.bf16 %v2910, %v2909
        %v2942 = vpack.c.bf16 %v2912, %v2911
        %v2943 = vpack.c.bf16 %v2914, %v2913
        %v2944 = vpack.c.bf16 %v2916, %v2915
        %v2945 = vpack.c.bf16 %v2918, %v2917
        %s2946 = scalar_lea.vmem [#allocation6], 384
        %v2947 = vld [vmem:[%s2946] sm:$0xf]
        %v2948 = vld [vmem:[%s2946 + $0x4] sm:$0xf]
        %v2949 = vld [vmem:[%s2946 + $0x8] sm:$0xf]
        %v2950 = vld [vmem:[%s2946 + $0xc] sm:$0xf]
        %v2951 = vld [vmem:[%s2946 + $0x10] sm:$0xf]
        %v2952 = vld [vmem:[%s2946 + $0x14] sm:$0xf]
        %v2953 = vld [vmem:[%s2946 + $0x18] sm:$0xf]
        %v2954 = vld [vmem:[%s2946 + $0x1c] sm:$0xf]
        %v2955 = vld [vmem:[%s2946 + $0x20] sm:$0xf]
        %v2956 = vld [vmem:[%s2946 + $0x24] sm:$0xf]
        %v2957 = vld [vmem:[%s2946 + $0x28] sm:$0xf]
        %v2958 = vld [vmem:[%s2946 + $0x2c] sm:$0xf]
        %v2959 = vld [vmem:[%s2946 + $0x30] sm:$0xf]
        %v2960 = vld [vmem:[%s2946 + $0x34] sm:$0xf]
        %v2961 = vld [vmem:[%s2946 + $0x38] sm:$0xf]
        %v2962 = vld [vmem:[%s2946 + $0x3c] sm:$0xf]
        %v2979 = vunpack.c.l.b16 %v2947
        %v2980 = vunpack.c.l.b16 %v2948
        %v2981 = vunpack.c.l.b16 %v2949
        %v2982 = vunpack.c.l.b16 %v2950
        %v2983 = vunpack.c.l.b16 %v2951
        %v2984 = vunpack.c.l.b16 %v2952
        %v2985 = vunpack.c.l.b16 %v2953
        %v2986 = vunpack.c.l.b16 %v2954
        %v2987 = vunpack.c.l.b16 %v2955
        %v2988 = vunpack.c.l.b16 %v2956
        %v2989 = vunpack.c.l.b16 %v2957
        %v2990 = vunpack.c.l.b16 %v2958
        %v2991 = vunpack.c.l.b16 %v2959
        %v2992 = vunpack.c.l.b16 %v2960
        %v2993 = vunpack.c.l.b16 %v2961
        %v2994 = vunpack.c.l.b16 %v2962
        %v2995 = vpack.c.b16 %v2980, %v2979
        %v2996 = vpack.c.b16 %v2982, %v2981
        %v2997 = vpack.c.b16 %v2984, %v2983
        %v2998 = vpack.c.b16 %v2986, %v2985
        %v2999 = vpack.c.b16 %v2988, %v2987
        %v3000 = vpack.c.b16 %v2990, %v2989
        %v3001 = vpack.c.b16 %v2992, %v2991
        %v3002 = vpack.c.b16 %v2994, %v2993
        %3011 = vmatpush.bf16.msra.mxu0 %v3002
        %3012 = vmatpush.bf16.msra.mxu0 %v3001
        %3013 = vmatpush.bf16.msra.mxu0 %v3000
        %3014 = vmatpush.bf16.msra.mxu0 %v2999
        %3015 = vmatpush.bf16.msra.mxu0 %v2998
        %3016 = vmatpush.bf16.msra.mxu0 %v2997
        %3017 = vmatpush.bf16.msra.mxu0 %v2996
        %3018 = vmatpush.bf16.msra.mxu0 %v2995
        %3019 = vmatmul.bf16.gmra.mxu0 %v2919
        %v3020 = vpop.f32.mrf.mxu0
        %v3021 = vadd.f32 0.0, %v3020
        %v3022 = vpop.f32.mrf.mxu0
        %v3023 = vadd.f32 0.0, %v3022
        %3024 = vmatmul.bf16.gmra.mxu0 %v2920
        %v3025 = vpop.f32.mrf.mxu0
        %v3026 = vadd.f32 0.0, %v3025
        %v3027 = vpop.f32.mrf.mxu0
        %v3028 = vadd.f32 0.0, %v3027
        %3029 = vmatmul.bf16.gmra.mxu0 %v2921
        %v3030 = vpop.f32.mrf.mxu0
        %v3031 = vadd.f32 0.0, %v3030
        %v3032 = vpop.f32.mrf.mxu0
        %v3033 = vadd.f32 0.0, %v3032
        %3034 = vmatmul.bf16.gmra.mxu0 %v2922
        %v3035 = vpop.f32.mrf.mxu0
        %v3036 = vadd.f32 0.0, %v3035
        %v3037 = vpop.f32.mrf.mxu0
        %v3038 = vadd.f32 0.0, %v3037
        %3039 = vmatmul.bf16.gmra.mxu0 %v2923
        %v3040 = vpop.f32.mrf.mxu0
        %v3041 = vadd.f32 0.0, %v3040
        %v3042 = vpop.f32.mrf.mxu0
        %v3043 = vadd.f32 0.0, %v3042
        %3044 = vmatmul.bf16.gmra.mxu0 %v2924
        %v3045 = vpop.f32.mrf.mxu0
        %v3046 = vadd.f32 0.0, %v3045
        %v3047 = vpop.f32.mrf.mxu0
        %v3048 = vadd.f32 0.0, %v3047
        %3049 = vmatmul.bf16.gmra.mxu0 %v2925
        %v3050 = vpop.f32.mrf.mxu0
        %v3051 = vadd.f32 0.0, %v3050
        %v3052 = vpop.f32.mrf.mxu0
        %v3053 = vadd.f32 0.0, %v3052
        %3054 = vmatmul.bf16.gmra.mxu0 %v2926
        %v3055 = vpop.f32.mrf.mxu0
        %v3056 = vadd.f32 0.0, %v3055
        %v3057 = vpop.f32.mrf.mxu0
        %v3058 = vadd.f32 0.0, %v3057
        %3059 = vmatmul.bf16.gmra.mxu0 %v2927
        %v3060 = vpop.f32.mrf.mxu0
        %v3061 = vadd.f32 0.0, %v3060
        %v3062 = vpop.f32.mrf.mxu0
        %v3063 = vadd.f32 0.0, %v3062
        %3064 = vmatmul.bf16.gmra.mxu0 %v2928
        %v3065 = vpop.f32.mrf.mxu0
        %v3066 = vadd.f32 0.0, %v3065
        %v3067 = vpop.f32.mrf.mxu0
        %v3068 = vadd.f32 0.0, %v3067
        %3069 = vmatmul.bf16.gmra.mxu0 %v2929
        %v3070 = vpop.f32.mrf.mxu0
        %v3071 = vadd.f32 0.0, %v3070
        %v3072 = vpop.f32.mrf.mxu0
        %v3073 = vadd.f32 0.0, %v3072
        %3074 = vmatmul.bf16.gmra.mxu0 %v2930
        %v3075 = vpop.f32.mrf.mxu0
        %v3076 = vadd.f32 0.0, %v3075
        %v3077 = vpop.f32.mrf.mxu0
        %v3078 = vadd.f32 0.0, %v3077
        %3079 = vmatmul.bf16.gmra.mxu0 %v2931
        %v3080 = vpop.f32.mrf.mxu0
        %v3081 = vadd.f32 0.0, %v3080
        %v3082 = vpop.f32.mrf.mxu0
        %v3083 = vadd.f32 0.0, %v3082
        %3084 = vmatmul.bf16.gmra.mxu0 %v2932
        %v3085 = vpop.f32.mrf.mxu0
        %v3086 = vadd.f32 0.0, %v3085
        %v3087 = vpop.f32.mrf.mxu0
        %v3088 = vadd.f32 0.0, %v3087
        %3089 = vmatmul.bf16.gmra.mxu0 %v2933
        %v3090 = vpop.f32.mrf.mxu0
        %v3091 = vadd.f32 0.0, %v3090
        %v3092 = vpop.f32.mrf.mxu0
        %v3093 = vadd.f32 0.0, %v3092
        %3094 = vmatmul.bf16.gmra.mxu0 %v2934
        %v3095 = vpop.f32.mrf.mxu0
        %v3096 = vadd.f32 0.0, %v3095
        %v3097 = vpop.f32.mrf.mxu0
        %v3098 = vadd.f32 0.0, %v3097
        %3099 = vmatmul.bf16.gmra.mxu0 %v2935
        %v3100 = vpop.f32.mrf.mxu0
        %v3101 = vadd.f32 0.0, %v3100
        %v3102 = vpop.f32.mrf.mxu0
        %v3103 = vadd.f32 0.0, %v3102
        %3104 = vmatmul.bf16.gmra.mxu0 %v2936
        %v3105 = vpop.f32.mrf.mxu0
        %v3106 = vadd.f32 0.0, %v3105
        %v3107 = vpop.f32.mrf.mxu0
        %v3108 = vadd.f32 0.0, %v3107
        %3109 = vmatmul.bf16.gmra.mxu0 %v2937
        %v3110 = vpop.f32.mrf.mxu0
        %v3111 = vadd.f32 0.0, %v3110
        %v3112 = vpop.f32.mrf.mxu0
        %v3113 = vadd.f32 0.0, %v3112
        %3114 = vmatmul.bf16.gmra.mxu0 %v2938
        %v3115 = vpop.f32.mrf.mxu0
        %v3116 = vadd.f32 0.0, %v3115
        %v3117 = vpop.f32.mrf.mxu0
        %v3118 = vadd.f32 0.0, %v3117
        %3119 = vmatmul.bf16.gmra.mxu0 %v2939
        %v3120 = vpop.f32.mrf.mxu0
        %v3121 = vadd.f32 0.0, %v3120
        %v3122 = vpop.f32.mrf.mxu0
        %v3123 = vadd.f32 0.0, %v3122
        %3124 = vmatmul.bf16.gmra.mxu0 %v2940
        %v3125 = vpop.f32.mrf.mxu0
        %v3126 = vadd.f32 0.0, %v3125
        %v3127 = vpop.f32.mrf.mxu0
        %v3128 = vadd.f32 0.0, %v3127
        %3129 = vmatmul.bf16.gmra.mxu0 %v2941
        %v3130 = vpop.f32.mrf.mxu0
        %v3131 = vadd.f32 0.0, %v3130
        %v3132 = vpop.f32.mrf.mxu0
        %v3133 = vadd.f32 0.0, %v3132
        %3134 = vmatmul.bf16.gmra.mxu0 %v2942
        %v3135 = vpop.f32.mrf.mxu0
        %v3136 = vadd.f32 0.0, %v3135
        %v3137 = vpop.f32.mrf.mxu0
        %v3138 = vadd.f32 0.0, %v3137
        %3139 = vmatmul.bf16.gmra.mxu0 %v2943
        %v3140 = vpop.f32.mrf.mxu0
        %v3141 = vadd.f32 0.0, %v3140
        %v3142 = vpop.f32.mrf.mxu0
        %v3143 = vadd.f32 0.0, %v3142
        %3144 = vmatmul.bf16.gmra.mxu0 %v2944
        %v3145 = vpop.f32.mrf.mxu0
        %v3146 = vadd.f32 0.0, %v3145
        %v3147 = vpop.f32.mrf.mxu0
        %v3148 = vadd.f32 0.0, %v3147
        %3149 = vmatmul.bf16.gmra.mxu0 %v2945
        %v3150 = vpop.f32.mrf.mxu0
        %v3151 = vadd.f32 0.0, %v3150
        %v3152 = vpop.f32.mrf.mxu0
        %v3153 = vadd.f32 0.0, %v3152
        %3154 = vdwg.mxu0
        %v3155 = vld [vmem:[#allocation2] sm:$0xff]
        %v3156 = vld [vmem:[#allocation2 + $0x8] sm:$0xff]
        %v3157 = vld [vmem:[#allocation2 + $0x10] sm:$0xff]
        %v3158 = vld [vmem:[#allocation2 + $0x18] sm:$0xff]
        %v3159 = vld [vmem:[#allocation2 + $0x20] sm:$0xff]
        %v3160 = vld [vmem:[#allocation2 + $0x28] sm:$0xff]
        %v3161 = vld [vmem:[#allocation2 + $0x30] sm:$0xff]
        %v3162 = vld [vmem:[#allocation2 + $0x38] sm:$0xff]
        %v3163 = vld [vmem:[#allocation2 + $0x40] sm:$0xff]
        %v3164 = vld [vmem:[#allocation2 + $0x48] sm:$0xff]
        %v3165 = vld [vmem:[#allocation2 + $0x50] sm:$0xff]
        %v3166 = vld [vmem:[#allocation2 + $0x58] sm:$0xff]
        %v3167 = vld [vmem:[#allocation2 + $0x60] sm:$0xff]
        %v3168 = vld [vmem:[#allocation2 + $0x68] sm:$0xff]
        %v3169 = vld [vmem:[#allocation2 + $0x70] sm:$0xff]
        %v3170 = vld [vmem:[#allocation2 + $0x78] sm:$0xff]
        %v3171 = vld [vmem:[#allocation2 + $0x80] sm:$0xff]
        %v3172 = vld [vmem:[#allocation2 + $0x88] sm:$0xff]
        %v3173 = vld [vmem:[#allocation2 + $0x90] sm:$0xff]
        %v3174 = vld [vmem:[#allocation2 + $0x98] sm:$0xff]
        %v3175 = vld [vmem:[#allocation2 + $0xa0] sm:$0xff]
        %v3176 = vld [vmem:[#allocation2 + $0xa8] sm:$0xff]
        %v3177 = vld [vmem:[#allocation2 + $0xb0] sm:$0xff]
        %v3178 = vld [vmem:[#allocation2 + $0xb8] sm:$0xff]
        %v3179 = vld [vmem:[#allocation2 + $0xc0] sm:$0xff]
        %v3180 = vld [vmem:[#allocation2 + $0xc8] sm:$0xff]
        %v3181 = vld [vmem:[#allocation2 + $0xd0] sm:$0xff]
        %v3182 = vld [vmem:[#allocation2 + $0xd8] sm:$0xff]
        %v3183 = vld [vmem:[#allocation2 + $0xe0] sm:$0xff]
        %v3184 = vld [vmem:[#allocation2 + $0xe8] sm:$0xff]
        %v3185 = vld [vmem:[#allocation2 + $0xf0] sm:$0xff]
        %v3186 = vld [vmem:[#allocation2 + $0xf8] sm:$0xff]
        %v3187 = vld [vmem:[#allocation2 + $0x100] sm:$0xff]
        %v3188 = vld [vmem:[#allocation2 + $0x108] sm:$0xff]
        %v3189 = vld [vmem:[#allocation2 + $0x110] sm:$0xff]
        %v3190 = vld [vmem:[#allocation2 + $0x118] sm:$0xff]
        %v3191 = vld [vmem:[#allocation2 + $0x120] sm:$0xff]
        %v3192 = vld [vmem:[#allocation2 + $0x128] sm:$0xff]
        %v3193 = vld [vmem:[#allocation2 + $0x130] sm:$0xff]
        %v3194 = vld [vmem:[#allocation2 + $0x138] sm:$0xff]
        %v3195 = vld [vmem:[#allocation2 + $0x140] sm:$0xff]
        %v3196 = vld [vmem:[#allocation2 + $0x148] sm:$0xff]
        %v3197 = vld [vmem:[#allocation2 + $0x150] sm:$0xff]
        %v3198 = vld [vmem:[#allocation2 + $0x158] sm:$0xff]
        %v3199 = vld [vmem:[#allocation2 + $0x160] sm:$0xff]
        %v3200 = vld [vmem:[#allocation2 + $0x168] sm:$0xff]
        %v3201 = vld [vmem:[#allocation2 + $0x170] sm:$0xff]
        %v3202 = vld [vmem:[#allocation2 + $0x178] sm:$0xff]
        %v3203 = vld [vmem:[#allocation2 + $0x180] sm:$0xff]
        %v3204 = vld [vmem:[#allocation2 + $0x188] sm:$0xff]
        %v3205 = vld [vmem:[#allocation2 + $0x190] sm:$0xff]
        %v3206 = vld [vmem:[#allocation2 + $0x198] sm:$0xff]
        %v3207 = vld [vmem:[#allocation2 + $0x1a0] sm:$0xff]
        %v3208 = vld [vmem:[#allocation2 + $0x1a8] sm:$0xff]
        %v3209 = vadd.f32 %v3155, %v3021
        %v3210 = vadd.f32 %v3156, %v3023
        %v3211 = vadd.f32 %v3157, %v3026
        %v3212 = vadd.f32 %v3158, %v3028
        %v3213 = vadd.f32 %v3159, %v3031
        %v3214 = vadd.f32 %v3160, %v3033
        %v3215 = vadd.f32 %v3161, %v3036
        %v3216 = vadd.f32 %v3162, %v3038
        %v3217 = vadd.f32 %v3163, %v3041
        %v3218 = vadd.f32 %v3164, %v3043
        %v3219 = vadd.f32 %v3165, %v3046
        %v3220 = vadd.f32 %v3166, %v3048
        %v3221 = vadd.f32 %v3167, %v3051
        %v3222 = vadd.f32 %v3168, %v3053
        %v3223 = vadd.f32 %v3169, %v3056
        %v3224 = vadd.f32 %v3170, %v3058
        %v3225 = vadd.f32 %v3171, %v3061
        %v3226 = vadd.f32 %v3172, %v3063
        %v3227 = vadd.f32 %v3173, %v3066
        %v3228 = vadd.f32 %v3174, %v3068
        %v3229 = vadd.f32 %v3175, %v3071
        %v3230 = vadd.f32 %v3176, %v3073
        %v3231 = vadd.f32 %v3177, %v3076
        %v3232 = vadd.f32 %v3178, %v3078
        %v3233 = vadd.f32 %v3179, %v3081
        %v3234 = vadd.f32 %v3180, %v3083
        %v3235 = vadd.f32 %v3181, %v3086
        %v3236 = vadd.f32 %v3182, %v3088
        %v3237 = vadd.f32 %v3183, %v3091
        %v3238 = vadd.f32 %v3184, %v3093
        %v3239 = vadd.f32 %v3185, %v3096
        %v3240 = vadd.f32 %v3186, %v3098
        %v3241 = vadd.f32 %v3187, %v3101
        %v3242 = vadd.f32 %v3188, %v3103
        %v3243 = vadd.f32 %v3189, %v3106
        %v3244 = vadd.f32 %v3190, %v3108
        %v3245 = vadd.f32 %v3191, %v3111
        %v3246 = vadd.f32 %v3192, %v3113
        %v3247 = vadd.f32 %v3193, %v3116
        %v3248 = vadd.f32 %v3194, %v3118
        %v3249 = vadd.f32 %v3195, %v3121
        %v3250 = vadd.f32 %v3196, %v3123
        %v3251 = vadd.f32 %v3197, %v3126
        %v3252 = vadd.f32 %v3198, %v3128
        %v3253 = vadd.f32 %v3199, %v3131
        %v3254 = vadd.f32 %v3200, %v3133
        %v3255 = vadd.f32 %v3201, %v3136
        %v3256 = vadd.f32 %v3202, %v3138
        %v3257 = vadd.f32 %v3203, %v3141
        %v3258 = vadd.f32 %v3204, %v3143
        %v3259 = vadd.f32 %v3205, %v3146
        %v3260 = vadd.f32 %v3206, %v3148
        %v3261 = vadd.f32 %v3207, %v3151
        %v3262 = vadd.f32 %v3208, %v3153
        %3263 = vst [vmem:[#allocation2] sm:$0xff] %v3209
        %3264 = vst [vmem:[#allocation2 + $0x8] sm:$0xff] %v3210
        %3265 = vst [vmem:[#allocation2 + $0x10] sm:$0xff] %v3211
        %3266 = vst [vmem:[#allocation2 + $0x18] sm:$0xff] %v3212
        %3267 = vst [vmem:[#allocation2 + $0x20] sm:$0xff] %v3213
        %3268 = vst [vmem:[#allocation2 + $0x28] sm:$0xff] %v3214
        %3269 = vst [vmem:[#allocation2 + $0x30] sm:$0xff] %v3215
        %3270 = vst [vmem:[#allocation2 + $0x38] sm:$0xff] %v3216
        %3271 = vst [vmem:[#allocation2 + $0x40] sm:$0xff] %v3217
        %3272 = vst [vmem:[#allocation2 + $0x48] sm:$0xff] %v3218
        %3273 = vst [vmem:[#allocation2 + $0x50] sm:$0xff] %v3219
        %3274 = vst [vmem:[#allocation2 + $0x58] sm:$0xff] %v3220
        %3275 = vst [vmem:[#allocation2 + $0x60] sm:$0xff] %v3221
        %3276 = vst [vmem:[#allocation2 + $0x68] sm:$0xff] %v3222
        %3277 = vst [vmem:[#allocation2 + $0x70] sm:$0xff] %v3223
        %3278 = vst [vmem:[#allocation2 + $0x78] sm:$0xff] %v3224
        %3279 = vst [vmem:[#allocation2 + $0x80] sm:$0xff] %v3225
        %3280 = vst [vmem:[#allocation2 + $0x88] sm:$0xff] %v3226
        %3281 = vst [vmem:[#allocation2 + $0x90] sm:$0xff] %v3227
        %3282 = vst [vmem:[#allocation2 + $0x98] sm:$0xff] %v3228
        %3283 = vst [vmem:[#allocation2 + $0xa0] sm:$0xff] %v3229
        %3284 = vst [vmem:[#allocation2 + $0xa8] sm:$0xff] %v3230
        %3285 = vst [vmem:[#allocation2 + $0xb0] sm:$0xff] %v3231
        %3286 = vst [vmem:[#allocation2 + $0xb8] sm:$0xff] %v3232
        %3287 = vst [vmem:[#allocation2 + $0xc0] sm:$0xff] %v3233
        %3288 = vst [vmem:[#allocation2 + $0xc8] sm:$0xff] %v3234
        %3289 = vst [vmem:[#allocation2 + $0xd0] sm:$0xff] %v3235
        %3290 = vst [vmem:[#allocation2 + $0xd8] sm:$0xff] %v3236
        %3291 = vst [vmem:[#allocation2 + $0xe0] sm:$0xff] %v3237
        %3292 = vst [vmem:[#allocation2 + $0xe8] sm:$0xff] %v3238
        %3293 = vst [vmem:[#allocation2 + $0xf0] sm:$0xff] %v3239
        %3294 = vst [vmem:[#allocation2 + $0xf8] sm:$0xff] %v3240
        %3295 = vst [vmem:[#allocation2 + $0x100] sm:$0xff] %v3241
        %3296 = vst [vmem:[#allocation2 + $0x108] sm:$0xff] %v3242
        %3297 = vst [vmem:[#allocation2 + $0x110] sm:$0xff] %v3243
        %3298 = vst [vmem:[#allocation2 + $0x118] sm:$0xff] %v3244
        %3299 = vst [vmem:[#allocation2 + $0x120] sm:$0xff] %v3245
        %3300 = vst [vmem:[#allocation2 + $0x128] sm:$0xff] %v3246
        %3301 = vst [vmem:[#allocation2 + $0x130] sm:$0xff] %v3247
        %3302 = vst [vmem:[#allocation2 + $0x138] sm:$0xff] %v3248
        %3303 = vst [vmem:[#allocation2 + $0x140] sm:$0xff] %v3249
        %3304 = vst [vmem:[#allocation2 + $0x148] sm:$0xff] %v3250
        %3305 = vst [vmem:[#allocation2 + $0x150] sm:$0xff] %v3251
        %3306 = vst [vmem:[#allocation2 + $0x158] sm:$0xff] %v3252
        %3307 = vst [vmem:[#allocation2 + $0x160] sm:$0xff] %v3253
        %3308 = vst [vmem:[#allocation2 + $0x168] sm:$0xff] %v3254
        %3309 = vst [vmem:[#allocation2 + $0x170] sm:$0xff] %v3255
        %3310 = vst [vmem:[#allocation2 + $0x178] sm:$0xff] %v3256
        %3311 = vst [vmem:[#allocation2 + $0x180] sm:$0xff] %v3257
        %3312 = vst [vmem:[#allocation2 + $0x188] sm:$0xff] %v3258
        %3313 = vst [vmem:[#allocation2 + $0x190] sm:$0xff] %v3259
        %3314 = vst [vmem:[#allocation2 + $0x198] sm:$0xff] %v3260
        %3315 = vst [vmem:[#allocation2 + $0x1a0] sm:$0xff] %v3261
        %3316 = vst [vmem:[#allocation2 + $0x1a8] sm:$0xff] %v3262
        %v3317 = vld [vmem:[%s221 + $0x38] sm:$0xff]
        %v3318 = vld [vmem:[%s221 + $0x40] sm:$0xff]
        %v3319 = vld [vmem:[%s221 + $0x48] sm:$0xff]
        %v3320 = vld [vmem:[%s221 + $0x50] sm:$0xff]
        %v3321 = vld [vmem:[%s221 + $0x58] sm:$0xff]
        %v3322 = vld [vmem:[%s221 + $0x60] sm:$0xff]
        %v3323 = vld [vmem:[%s221 + $0x68] sm:$0xff]
        %v3324 = vld [vmem:[%s221 + $0x70] sm:$0xff]
        %v3325 = vld [vmem:[%s221 + $0x78] sm:$0xff]
        %v3326 = vld [vmem:[%s221 + $0x80] sm:$0xff]
        %v3327 = vld [vmem:[%s221 + $0x88] sm:$0xff]
        %v3328 = vld [vmem:[%s221 + $0x90] sm:$0xff]
        %v3329 = vld [vmem:[%s221 + $0x98] sm:$0xff]
        %v3330 = vld [vmem:[%s221 + $0xa0] sm:$0xff]
        %v3331 = vld [vmem:[%s221 + $0xa8] sm:$0xff]
        %v3332 = vld [vmem:[%s221 + $0xb0] sm:$0xff]
        %v3333 = vld [vmem:[%s221 + $0xb8] sm:$0xff]
        %v3334 = vld [vmem:[%s221 + $0xc0] sm:$0xff]
        %v3335 = vld [vmem:[%s221 + $0xc8] sm:$0xff]
        %v3336 = vld [vmem:[%s221 + $0xd0] sm:$0xff]
        %v3337 = vld [vmem:[%s221 + $0xd8] sm:$0xff]
        %v3338 = vld [vmem:[%s221 + $0xe0] sm:$0xff]
        %v3339 = vld [vmem:[%s221 + $0xe8] sm:$0xff]
        %v3340 = vld [vmem:[%s221 + $0xf0] sm:$0xff]
        %v3341 = vld [vmem:[%s221 + $0xf8] sm:$0xff]
        %v3342 = vld [vmem:[%s221 + $0x100] sm:$0xff]
        %v3343 = vld [vmem:[%s221 + $0x108] sm:$0xff]
        %v3344 = vld [vmem:[%s221 + $0x110] sm:$0xff]
        %v3345 = vld [vmem:[%s221 + $0x118] sm:$0xff]
        %v3346 = vld [vmem:[%s221 + $0x120] sm:$0xff]
        %v3347 = vld [vmem:[%s221 + $0x128] sm:$0xff]
        %v3348 = vld [vmem:[%s221 + $0x130] sm:$0xff]
        %v3349 = vld [vmem:[%s221 + $0x138] sm:$0xff]
        %v3350 = vld [vmem:[%s221 + $0x140] sm:$0xff]
        %v3351 = vld [vmem:[%s221 + $0x148] sm:$0xff]
        %v3352 = vld [vmem:[%s221 + $0x150] sm:$0xff]
        %v3353 = vld [vmem:[%s221 + $0x158] sm:$0xff]
        %v3354 = vld [vmem:[%s221 + $0x160] sm:$0xff]
        %v3355 = vld [vmem:[%s221 + $0x168] sm:$0xff]
        %v3356 = vld [vmem:[%s221 + $0x170] sm:$0xff]
        %v3357 = vld [vmem:[%s221 + $0x178] sm:$0xff]
        %v3358 = vld [vmem:[%s221 + $0x180] sm:$0xff]
        %v3359 = vld [vmem:[%s221 + $0x188] sm:$0xff]
        %v3360 = vld [vmem:[%s221 + $0x190] sm:$0xff]
        %v3361 = vld [vmem:[%s221 + $0x198] sm:$0xff]
        %v3362 = vld [vmem:[%s221 + $0x1a0] sm:$0xff]
        %v3363 = vld [vmem:[%s221 + $0x1a8] sm:$0xff]
        %v3364 = vld [vmem:[%s221 + $0x1b0] sm:$0xff]
        %v3365 = vld [vmem:[%s221 + $0x1b8] sm:$0xff]
        %v3366 = vld [vmem:[%s221 + $0x1c0] sm:$0xff]
        %v3367 = vld [vmem:[%s221 + $0x1c8] sm:$0xff]
        %v3368 = vld [vmem:[%s221 + $0x1d0] sm:$0xff]
        %v3369 = vld [vmem:[%s221 + $0x1d8] sm:$0xff]
        %v3370 = vld [vmem:[%s221 + $0x1e0] sm:$0xff]
        %v3371 = vpack.c.bf16 %v3318, %v3317
        %v3372 = vpack.c.bf16 %v3320, %v3319
        %v3373 = vpack.c.bf16 %v3322, %v3321
        %v3374 = vpack.c.bf16 %v3324, %v3323
        %v3375 = vpack.c.bf16 %v3326, %v3325
        %v3376 = vpack.c.bf16 %v3328, %v3327
        %v3377 = vpack.c.bf16 %v3330, %v3329
        %v3378 = vpack.c.bf16 %v3332, %v3331
        %v3379 = vpack.c.bf16 %v3334, %v3333
        %v3380 = vpack.c.bf16 %v3336, %v3335
        %v3381 = vpack.c.bf16 %v3338, %v3337
        %v3382 = vpack.c.bf16 %v3340, %v3339
        %v3383 = vpack.c.bf16 %v3342, %v3341
        %v3384 = vpack.c.bf16 %v3344, %v3343
        %v3385 = vpack.c.bf16 %v3346, %v3345
        %v3386 = vpack.c.bf16 %v3348, %v3347
        %v3387 = vpack.c.bf16 %v3350, %v3349
        %v3388 = vpack.c.bf16 %v3352, %v3351
        %v3389 = vpack.c.bf16 %v3354, %v3353
        %v3390 = vpack.c.bf16 %v3356, %v3355
        %v3391 = vpack.c.bf16 %v3358, %v3357
        %v3392 = vpack.c.bf16 %v3360, %v3359
        %v3393 = vpack.c.bf16 %v3362, %v3361
        %v3394 = vpack.c.bf16 %v3364, %v3363
        %v3395 = vpack.c.bf16 %v3366, %v3365
        %v3396 = vpack.c.bf16 %v3368, %v3367
        %v3397 = vpack.c.bf16 %v3370, %v3369
        %s3398 = scalar_lea.vmem [#allocation6], 448
        %v3399 = vld [vmem:[%s3398] sm:$0xf]
        %v3400 = vld [vmem:[%s3398 + $0x4] sm:$0xf]
        %v3401 = vld [vmem:[%s3398 + $0x8] sm:$0xf]
        %v3402 = vld [vmem:[%s3398 + $0xc] sm:$0xf]
        %v3403 = vld [vmem:[%s3398 + $0x10] sm:$0xf]
        %v3404 = vld [vmem:[%s3398 + $0x14] sm:$0xf]
        %v3405 = vld [vmem:[%s3398 + $0x18] sm:$0xf]
        %v3406 = vld [vmem:[%s3398 + $0x1c] sm:$0xf]
        %v3407 = vld [vmem:[%s3398 + $0x20] sm:$0xf]
        %v3408 = vld [vmem:[%s3398 + $0x24] sm:$0xf]
        %v3409 = vld [vmem:[%s3398 + $0x28] sm:$0xf]
        %v3410 = vld [vmem:[%s3398 + $0x2c] sm:$0xf]
        %v3411 = vld [vmem:[%s3398 + $0x30] sm:$0xf]
        %v3412 = vld [vmem:[%s3398 + $0x34] sm:$0xf]
        %v3413 = vld [vmem:[%s3398 + $0x38] sm:$0xf]
        %v3414 = vld [vmem:[%s3398 + $0x3c] sm:$0xf]
        %v3431 = vunpack.c.l.b16 %v3399
        %v3432 = vunpack.c.l.b16 %v3400
        %v3433 = vunpack.c.l.b16 %v3401
        %v3434 = vunpack.c.l.b16 %v3402
        %v3435 = vunpack.c.l.b16 %v3403
        %v3436 = vunpack.c.l.b16 %v3404
        %v3437 = vunpack.c.l.b16 %v3405
        %v3438 = vunpack.c.l.b16 %v3406
        %v3439 = vunpack.c.l.b16 %v3407
        %v3440 = vunpack.c.l.b16 %v3408
        %v3441 = vunpack.c.l.b16 %v3409
        %v3442 = vunpack.c.l.b16 %v3410
        %v3443 = vunpack.c.l.b16 %v3411
        %v3444 = vunpack.c.l.b16 %v3412
        %v3445 = vunpack.c.l.b16 %v3413
        %v3446 = vunpack.c.l.b16 %v3414
        %v3447 = vpack.c.b16 %v3432, %v3431
        %v3448 = vpack.c.b16 %v3434, %v3433
        %v3449 = vpack.c.b16 %v3436, %v3435
        %v3450 = vpack.c.b16 %v3438, %v3437
        %v3451 = vpack.c.b16 %v3440, %v3439
        %v3452 = vpack.c.b16 %v3442, %v3441
        %v3453 = vpack.c.b16 %v3444, %v3443
        %v3454 = vpack.c.b16 %v3446, %v3445
        %3463 = vmatpush.bf16.msra.mxu0 %v3454
        %3464 = vmatpush.bf16.msra.mxu0 %v3453
        %3465 = vmatpush.bf16.msra.mxu0 %v3452
        %3466 = vmatpush.bf16.msra.mxu0 %v3451
        %3467 = vmatpush.bf16.msra.mxu0 %v3450
        %3468 = vmatpush.bf16.msra.mxu0 %v3449
        %3469 = vmatpush.bf16.msra.mxu0 %v3448
        %3470 = vmatpush.bf16.msra.mxu0 %v3447
        %3471 = vmatmul.bf16.gmra.mxu0 %v3371
        %v3472 = vpop.f32.mrf.mxu0
        %v3473 = vadd.f32 0.0, %v3472
        %v3474 = vpop.f32.mrf.mxu0
        %v3475 = vadd.f32 0.0, %v3474
        %3476 = vmatmul.bf16.gmra.mxu0 %v3372
        %v3477 = vpop.f32.mrf.mxu0
        %v3478 = vadd.f32 0.0, %v3477
        %v3479 = vpop.f32.mrf.mxu0
        %v3480 = vadd.f32 0.0, %v3479
        %3481 = vmatmul.bf16.gmra.mxu0 %v3373
        %v3482 = vpop.f32.mrf.mxu0
        %v3483 = vadd.f32 0.0, %v3482
        %v3484 = vpop.f32.mrf.mxu0
        %v3485 = vadd.f32 0.0, %v3484
        %3486 = vmatmul.bf16.gmra.mxu0 %v3374
        %v3487 = vpop.f32.mrf.mxu0
        %v3488 = vadd.f32 0.0, %v3487
        %v3489 = vpop.f32.mrf.mxu0
        %v3490 = vadd.f32 0.0, %v3489
        %3491 = vmatmul.bf16.gmra.mxu0 %v3375
        %v3492 = vpop.f32.mrf.mxu0
        %v3493 = vadd.f32 0.0, %v3492
        %v3494 = vpop.f32.mrf.mxu0
        %v3495 = vadd.f32 0.0, %v3494
        %3496 = vmatmul.bf16.gmra.mxu0 %v3376
        %v3497 = vpop.f32.mrf.mxu0
        %v3498 = vadd.f32 0.0, %v3497
        %v3499 = vpop.f32.mrf.mxu0
        %v3500 = vadd.f32 0.0, %v3499
        %3501 = vmatmul.bf16.gmra.mxu0 %v3377
        %v3502 = vpop.f32.mrf.mxu0
        %v3503 = vadd.f32 0.0, %v3502
        %v3504 = vpop.f32.mrf.mxu0
        %v3505 = vadd.f32 0.0, %v3504
        %3506 = vmatmul.bf16.gmra.mxu0 %v3378
        %v3507 = vpop.f32.mrf.mxu0
        %v3508 = vadd.f32 0.0, %v3507
        %v3509 = vpop.f32.mrf.mxu0
        %v3510 = vadd.f32 0.0, %v3509
        %3511 = vmatmul.bf16.gmra.mxu0 %v3379
        %v3512 = vpop.f32.mrf.mxu0
        %v3513 = vadd.f32 0.0, %v3512
        %v3514 = vpop.f32.mrf.mxu0
        %v3515 = vadd.f32 0.0, %v3514
        %3516 = vmatmul.bf16.gmra.mxu0 %v3380
        %v3517 = vpop.f32.mrf.mxu0
        %v3518 = vadd.f32 0.0, %v3517
        %v3519 = vpop.f32.mrf.mxu0
        %v3520 = vadd.f32 0.0, %v3519
        %3521 = vmatmul.bf16.gmra.mxu0 %v3381
        %v3522 = vpop.f32.mrf.mxu0
        %v3523 = vadd.f32 0.0, %v3522
        %v3524 = vpop.f32.mrf.mxu0
        %v3525 = vadd.f32 0.0, %v3524
        %3526 = vmatmul.bf16.gmra.mxu0 %v3382
        %v3527 = vpop.f32.mrf.mxu0
        %v3528 = vadd.f32 0.0, %v3527
        %v3529 = vpop.f32.mrf.mxu0
        %v3530 = vadd.f32 0.0, %v3529
        %3531 = vmatmul.bf16.gmra.mxu0 %v3383
        %v3532 = vpop.f32.mrf.mxu0
        %v3533 = vadd.f32 0.0, %v3532
        %v3534 = vpop.f32.mrf.mxu0
        %v3535 = vadd.f32 0.0, %v3534
        %3536 = vmatmul.bf16.gmra.mxu0 %v3384
        %v3537 = vpop.f32.mrf.mxu0
        %v3538 = vadd.f32 0.0, %v3537
        %v3539 = vpop.f32.mrf.mxu0
        %v3540 = vadd.f32 0.0, %v3539
        %3541 = vmatmul.bf16.gmra.mxu0 %v3385
        %v3542 = vpop.f32.mrf.mxu0
        %v3543 = vadd.f32 0.0, %v3542
        %v3544 = vpop.f32.mrf.mxu0
        %v3545 = vadd.f32 0.0, %v3544
        %3546 = vmatmul.bf16.gmra.mxu0 %v3386
        %v3547 = vpop.f32.mrf.mxu0
        %v3548 = vadd.f32 0.0, %v3547
        %v3549 = vpop.f32.mrf.mxu0
        %v3550 = vadd.f32 0.0, %v3549
        %3551 = vmatmul.bf16.gmra.mxu0 %v3387
        %v3552 = vpop.f32.mrf.mxu0
        %v3553 = vadd.f32 0.0, %v3552
        %v3554 = vpop.f32.mrf.mxu0
        %v3555 = vadd.f32 0.0, %v3554
        %3556 = vmatmul.bf16.gmra.mxu0 %v3388
        %v3557 = vpop.f32.mrf.mxu0
        %v3558 = vadd.f32 0.0, %v3557
        %v3559 = vpop.f32.mrf.mxu0
        %v3560 = vadd.f32 0.0, %v3559
        %3561 = vmatmul.bf16.gmra.mxu0 %v3389
        %v3562 = vpop.f32.mrf.mxu0
        %v3563 = vadd.f32 0.0, %v3562
        %v3564 = vpop.f32.mrf.mxu0
        %v3565 = vadd.f32 0.0, %v3564
        %3566 = vmatmul.bf16.gmra.mxu0 %v3390
        %v3567 = vpop.f32.mrf.mxu0
        %v3568 = vadd.f32 0.0, %v3567
        %v3569 = vpop.f32.mrf.mxu0
        %v3570 = vadd.f32 0.0, %v3569
        %3571 = vmatmul.bf16.gmra.mxu0 %v3391
        %v3572 = vpop.f32.mrf.mxu0
        %v3573 = vadd.f32 0.0, %v3572
        %v3574 = vpop.f32.mrf.mxu0
        %v3575 = vadd.f32 0.0, %v3574
        %3576 = vmatmul.bf16.gmra.mxu0 %v3392
        %v3577 = vpop.f32.mrf.mxu0
        %v3578 = vadd.f32 0.0, %v3577
        %v3579 = vpop.f32.mrf.mxu0
        %v3580 = vadd.f32 0.0, %v3579
        %3581 = vmatmul.bf16.gmra.mxu0 %v3393
        %v3582 = vpop.f32.mrf.mxu0
        %v3583 = vadd.f32 0.0, %v3582
        %v3584 = vpop.f32.mrf.mxu0
        %v3585 = vadd.f32 0.0, %v3584
        %3586 = vmatmul.bf16.gmra.mxu0 %v3394
        %v3587 = vpop.f32.mrf.mxu0
        %v3588 = vadd.f32 0.0, %v3587
        %v3589 = vpop.f32.mrf.mxu0
        %v3590 = vadd.f32 0.0, %v3589
        %3591 = vmatmul.bf16.gmra.mxu0 %v3395
        %v3592 = vpop.f32.mrf.mxu0
        %v3593 = vadd.f32 0.0, %v3592
        %v3594 = vpop.f32.mrf.mxu0
        %v3595 = vadd.f32 0.0, %v3594
        %3596 = vmatmul.bf16.gmra.mxu0 %v3396
        %v3597 = vpop.f32.mrf.mxu0
        %v3598 = vadd.f32 0.0, %v3597
        %v3599 = vpop.f32.mrf.mxu0
        %v3600 = vadd.f32 0.0, %v3599
        %3601 = vmatmul.bf16.gmra.mxu0 %v3397
        %v3602 = vpop.f32.mrf.mxu0
        %v3603 = vadd.f32 0.0, %v3602
        %v3604 = vpop.f32.mrf.mxu0
        %v3605 = vadd.f32 0.0, %v3604
        %3606 = vdwg.mxu0
        %v3607 = vld [vmem:[#allocation2] sm:$0xff]
        %v3608 = vld [vmem:[#allocation2 + $0x8] sm:$0xff]
        %v3609 = vld [vmem:[#allocation2 + $0x10] sm:$0xff]
        %v3610 = vld [vmem:[#allocation2 + $0x18] sm:$0xff]
        %v3611 = vld [vmem:[#allocation2 + $0x20] sm:$0xff]
        %v3612 = vld [vmem:[#allocation2 + $0x28] sm:$0xff]
        %v3613 = vld [vmem:[#allocation2 + $0x30] sm:$0xff]
        %v3614 = vld [vmem:[#allocation2 + $0x38] sm:$0xff]
        %v3615 = vld [vmem:[#allocation2 + $0x40] sm:$0xff]
        %v3616 = vld [vmem:[#allocation2 + $0x48] sm:$0xff]
        %v3617 = vld [vmem:[#allocation2 + $0x50] sm:$0xff]
        %v3618 = vld [vmem:[#allocation2 + $0x58] sm:$0xff]
        %v3619 = vld [vmem:[#allocation2 + $0x60] sm:$0xff]
        %v3620 = vld [vmem:[#allocation2 + $0x68] sm:$0xff]
        %v3621 = vld [vmem:[#allocation2 + $0x70] sm:$0xff]
        %v3622 = vld [vmem:[#allocation2 + $0x78] sm:$0xff]
        %v3623 = vld [vmem:[#allocation2 + $0x80] sm:$0xff]
        %v3624 = vld [vmem:[#allocation2 + $0x88] sm:$0xff]
        %v3625 = vld [vmem:[#allocation2 + $0x90] sm:$0xff]
        %v3626 = vld [vmem:[#allocation2 + $0x98] sm:$0xff]
        %v3627 = vld [vmem:[#allocation2 + $0xa0] sm:$0xff]
        %v3628 = vld [vmem:[#allocation2 + $0xa8] sm:$0xff]
        %v3629 = vld [vmem:[#allocation2 + $0xb0] sm:$0xff]
        %v3630 = vld [vmem:[#allocation2 + $0xb8] sm:$0xff]
        %v3631 = vld [vmem:[#allocation2 + $0xc0] sm:$0xff]
        %v3632 = vld [vmem:[#allocation2 + $0xc8] sm:$0xff]
        %v3633 = vld [vmem:[#allocation2 + $0xd0] sm:$0xff]
        %v3634 = vld [vmem:[#allocation2 + $0xd8] sm:$0xff]
        %v3635 = vld [vmem:[#allocation2 + $0xe0] sm:$0xff]
        %v3636 = vld [vmem:[#allocation2 + $0xe8] sm:$0xff]
        %v3637 = vld [vmem:[#allocation2 + $0xf0] sm:$0xff]
        %v3638 = vld [vmem:[#allocation2 + $0xf8] sm:$0xff]
        %v3639 = vld [vmem:[#allocation2 + $0x100] sm:$0xff]
        %v3640 = vld [vmem:[#allocation2 + $0x108] sm:$0xff]
        %v3641 = vld [vmem:[#allocation2 + $0x110] sm:$0xff]
        %v3642 = vld [vmem:[#allocation2 + $0x118] sm:$0xff]
        %v3643 = vld [vmem:[#allocation2 + $0x120] sm:$0xff]
        %v3644 = vld [vmem:[#allocation2 + $0x128] sm:$0xff]
        %v3645 = vld [vmem:[#allocation2 + $0x130] sm:$0xff]
        %v3646 = vld [vmem:[#allocation2 + $0x138] sm:$0xff]
        %v3647 = vld [vmem:[#allocation2 + $0x140] sm:$0xff]
        %v3648 = vld [vmem:[#allocation2 + $0x148] sm:$0xff]
        %v3649 = vld [vmem:[#allocation2 + $0x150] sm:$0xff]
        %v3650 = vld [vmem:[#allocation2 + $0x158] sm:$0xff]
        %v3651 = vld [vmem:[#allocation2 + $0x160] sm:$0xff]
        %v3652 = vld [vmem:[#allocation2 + $0x168] sm:$0xff]
        %v3653 = vld [vmem:[#allocation2 + $0x170] sm:$0xff]
        %v3654 = vld [vmem:[#allocation2 + $0x178] sm:$0xff]
        %v3655 = vld [vmem:[#allocation2 + $0x180] sm:$0xff]
        %v3656 = vld [vmem:[#allocation2 + $0x188] sm:$0xff]
        %v3657 = vld [vmem:[#allocation2 + $0x190] sm:$0xff]
        %v3658 = vld [vmem:[#allocation2 + $0x198] sm:$0xff]
        %v3659 = vld [vmem:[#allocation2 + $0x1a0] sm:$0xff]
        %v3660 = vld [vmem:[#allocation2 + $0x1a8] sm:$0xff]
        %v3661 = vadd.f32 %v3607, %v3473
        %v3662 = vadd.f32 %v3608, %v3475
        %v3663 = vadd.f32 %v3609, %v3478
        %v3664 = vadd.f32 %v3610, %v3480
        %v3665 = vadd.f32 %v3611, %v3483
        %v3666 = vadd.f32 %v3612, %v3485
        %v3667 = vadd.f32 %v3613, %v3488
        %v3668 = vadd.f32 %v3614, %v3490
        %v3669 = vadd.f32 %v3615, %v3493
        %v3670 = vadd.f32 %v3616, %v3495
        %v3671 = vadd.f32 %v3617, %v3498
        %v3672 = vadd.f32 %v3618, %v3500
        %v3673 = vadd.f32 %v3619, %v3503
        %v3674 = vadd.f32 %v3620, %v3505
        %v3675 = vadd.f32 %v3621, %v3508
        %v3676 = vadd.f32 %v3622, %v3510
        %v3677 = vadd.f32 %v3623, %v3513
        %v3678 = vadd.f32 %v3624, %v3515
        %v3679 = vadd.f32 %v3625, %v3518
        %v3680 = vadd.f32 %v3626, %v3520
        %v3681 = vadd.f32 %v3627, %v3523
        %v3682 = vadd.f32 %v3628, %v3525
        %v3683 = vadd.f32 %v3629, %v3528
        %v3684 = vadd.f32 %v3630, %v3530
        %v3685 = vadd.f32 %v3631, %v3533
        %v3686 = vadd.f32 %v3632, %v3535
        %v3687 = vadd.f32 %v3633, %v3538
        %v3688 = vadd.f32 %v3634, %v3540
        %v3689 = vadd.f32 %v3635, %v3543
        %v3690 = vadd.f32 %v3636, %v3545
        %v3691 = vadd.f32 %v3637, %v3548
        %v3692 = vadd.f32 %v3638, %v3550
        %v3693 = vadd.f32 %v3639, %v3553
        %v3694 = vadd.f32 %v3640, %v3555
        %v3695 = vadd.f32 %v3641, %v3558
        %v3696 = vadd.f32 %v3642, %v3560
        %v3697 = vadd.f32 %v3643, %v3563
        %v3698 = vadd.f32 %v3644, %v3565
        %v3699 = vadd.f32 %v3645, %v3568
        %v3700 = vadd.f32 %v3646, %v3570
        %v3701 = vadd.f32 %v3647, %v3573
        %v3702 = vadd.f32 %v3648, %v3575
        %v3703 = vadd.f32 %v3649, %v3578
        %v3704 = vadd.f32 %v3650, %v3580
        %v3705 = vadd.f32 %v3651, %v3583
        %v3706 = vadd.f32 %v3652, %v3585
        %v3707 = vadd.f32 %v3653, %v3588
        %v3708 = vadd.f32 %v3654, %v3590
        %v3709 = vadd.f32 %v3655, %v3593
        %v3710 = vadd.f32 %v3656, %v3595
        %v3711 = vadd.f32 %v3657, %v3598
        %v3712 = vadd.f32 %v3658, %v3600
        %v3713 = vadd.f32 %v3659, %v3603
        %v3714 = vadd.f32 %v3660, %v3605
        %3715 = vst [vmem:[#allocation2] sm:$0xff] %v3661
        %3716 = vst [vmem:[#allocation2 + $0x8] sm:$0xff] %v3662
        %3717 = vst [vmem:[#allocation2 + $0x10] sm:$0xff] %v3663
        %3718 = vst [vmem:[#allocation2 + $0x18] sm:$0xff] %v3664
        %3719 = vst [vmem:[#allocation2 + $0x20] sm:$0xff] %v3665
        %3720 = vst [vmem:[#allocation2 + $0x28] sm:$0xff] %v3666
        %3721 = vst [vmem:[#allocation2 + $0x30] sm:$0xff] %v3667
        %3722 = vst [vmem:[#allocation2 + $0x38] sm:$0xff] %v3668
        %3723 = vst [vmem:[#allocation2 + $0x40] sm:$0xff] %v3669
        %3724 = vst [vmem:[#allocation2 + $0x48] sm:$0xff] %v3670
        %3725 = vst [vmem:[#allocation2 + $0x50] sm:$0xff] %v3671
        %3726 = vst [vmem:[#allocation2 + $0x58] sm:$0xff] %v3672
        %3727 = vst [vmem:[#allocation2 + $0x60] sm:$0xff] %v3673
        %3728 = vst [vmem:[#allocation2 + $0x68] sm:$0xff] %v3674
        %3729 = vst [vmem:[#allocation2 + $0x70] sm:$0xff] %v3675
        %3730 = vst [vmem:[#allocation2 + $0x78] sm:$0xff] %v3676
        %3731 = vst [vmem:[#allocation2 + $0x80] sm:$0xff] %v3677
        %3732 = vst [vmem:[#allocation2 + $0x88] sm:$0xff] %v3678
        %3733 = vst [vmem:[#allocation2 + $0x90] sm:$0xff] %v3679
        %3734 = vst [vmem:[#allocation2 + $0x98] sm:$0xff] %v3680
        %3735 = vst [vmem:[#allocation2 + $0xa0] sm:$0xff] %v3681
        %3736 = vst [vmem:[#allocation2 + $0xa8] sm:$0xff] %v3682
        %3737 = vst [vmem:[#allocation2 + $0xb0] sm:$0xff] %v3683
        %3738 = vst [vmem:[#allocation2 + $0xb8] sm:$0xff] %v3684
        %3739 = vst [vmem:[#allocation2 + $0xc0] sm:$0xff] %v3685
        %3740 = vst [vmem:[#allocation2 + $0xc8] sm:$0xff] %v3686
        %3741 = vst [vmem:[#allocation2 + $0xd0] sm:$0xff] %v3687
        %3742 = vst [vmem:[#allocation2 + $0xd8] sm:$0xff] %v3688
        %3743 = vst [vmem:[#allocation2 + $0xe0] sm:$0xff] %v3689
        %3744 = vst [vmem:[#allocation2 + $0xe8] sm:$0xff] %v3690
        %3745 = vst [vmem:[#allocation2 + $0xf0] sm:$0xff] %v3691
        %3746 = vst [vmem:[#allocation2 + $0xf8] sm:$0xff] %v3692
        %3747 = vst [vmem:[#allocation2 + $0x100] sm:$0xff] %v3693
        %3748 = vst [vmem:[#allocation2 + $0x108] sm:$0xff] %v3694
        %3749 = vst [vmem:[#allocation2 + $0x110] sm:$0xff] %v3695
        %3750 = vst [vmem:[#allocation2 + $0x118] sm:$0xff] %v3696
        %3751 = vst [vmem:[#allocation2 + $0x120] sm:$0xff] %v3697
        %3752 = vst [vmem:[#allocation2 + $0x128] sm:$0xff] %v3698
        %3753 = vst [vmem:[#allocation2 + $0x130] sm:$0xff] %v3699
        %3754 = vst [vmem:[#allocation2 + $0x138] sm:$0xff] %v3700
        %3755 = vst [vmem:[#allocation2 + $0x140] sm:$0xff] %v3701
        %3756 = vst [vmem:[#allocation2 + $0x148] sm:$0xff] %v3702
        %3757 = vst [vmem:[#allocation2 + $0x150] sm:$0xff] %v3703
        %3758 = vst [vmem:[#allocation2 + $0x158] sm:$0xff] %v3704
        %3759 = vst [vmem:[#allocation2 + $0x160] sm:$0xff] %v3705
        %3760 = vst [vmem:[#allocation2 + $0x168] sm:$0xff] %v3706
        %3761 = vst [vmem:[#allocation2 + $0x170] sm:$0xff] %v3707
        %3762 = vst [vmem:[#allocation2 + $0x178] sm:$0xff] %v3708
        %3763 = vst [vmem:[#allocation2 + $0x180] sm:$0xff] %v3709
        %3764 = vst [vmem:[#allocation2 + $0x188] sm:$0xff] %v3710
        %3765 = vst [vmem:[#allocation2 + $0x190] sm:$0xff] %v3711
        %3766 = vst [vmem:[#allocation2 + $0x198] sm:$0xff] %v3712
        %3767 = vst [vmem:[#allocation2 + $0x1a0] sm:$0xff] %v3713
        %3768 = vst [vmem:[#allocation2 + $0x1a8] sm:$0xff] %v3714
        %v3769 = vld [vmem:[%s221 + $0x39] sm:$0xff]
        %v3770 = vld [vmem:[%s221 + $0x41] sm:$0xff]
        %v3771 = vld [vmem:[%s221 + $0x49] sm:$0xff]
        %v3772 = vld [vmem:[%s221 + $0x51] sm:$0xff]
        %v3773 = vld [vmem:[%s221 + $0x59] sm:$0xff]
        %v3774 = vld [vmem:[%s221 + $0x61] sm:$0xff]
        %v3775 = vld [vmem:[%s221 + $0x69] sm:$0xff]
        %v3776 = vld [vmem:[%s221 + $0x71] sm:$0xff]
        %v3777 = vld [vmem:[%s221 + $0x79] sm:$0xff]
        %v3778 = vld [vmem:[%s221 + $0x81] sm:$0xff]
        %v3779 = vld [vmem:[%s221 + $0x89] sm:$0xff]
        %v3780 = vld [vmem:[%s221 + $0x91] sm:$0xff]
        %v3781 = vld [vmem:[%s221 + $0x99] sm:$0xff]
        %v3782 = vld [vmem:[%s221 + $0xa1] sm:$0xff]
        %v3783 = vld [vmem:[%s221 + $0xa9] sm:$0xff]
        %v3784 = vld [vmem:[%s221 + $0xb1] sm:$0xff]
        %v3785 = vld [vmem:[%s221 + $0xb9] sm:$0xff]
        %v3786 = vld [vmem:[%s221 + $0xc1] sm:$0xff]
        %v3787 = vld [vmem:[%s221 + $0xc9] sm:$0xff]
        %v3788 = vld [vmem:[%s221 + $0xd1] sm:$0xff]
        %v3789 = vld [vmem:[%s221 + $0xd9] sm:$0xff]
        %v3790 = vld [vmem:[%s221 + $0xe1] sm:$0xff]
        %v3791 = vld [vmem:[%s221 + $0xe9] sm:$0xff]
        %v3792 = vld [vmem:[%s221 + $0xf1] sm:$0xff]
        %v3793 = vld [vmem:[%s221 + $0xf9] sm:$0xff]
        %v3794 = vld [vmem:[%s221 + $0x101] sm:$0xff]
        %v3795 = vld [vmem:[%s221 + $0x109] sm:$0xff]
        %v3796 = vld [vmem:[%s221 + $0x111] sm:$0xff]
        %v3797 = vld [vmem:[%s221 + $0x119] sm:$0xff]
        %v3798 = vld [vmem:[%s221 + $0x121] sm:$0xff]
        %v3799 = vld [vmem:[%s221 + $0x129] sm:$0xff]
        %v3800 = vld [vmem:[%s221 + $0x131] sm:$0xff]
        %v3801 = vld [vmem:[%s221 + $0x139] sm:$0xff]
        %v3802 = vld [vmem:[%s221 + $0x141] sm:$0xff]
        %v3803 = vld [vmem:[%s221 + $0x149] sm:$0xff]
        %v3804 = vld [vmem:[%s221 + $0x151] sm:$0xff]
        %v3805 = vld [vmem:[%s221 + $0x159] sm:$0xff]
        %v3806 = vld [vmem:[%s221 + $0x161] sm:$0xff]
        %v3807 = vld [vmem:[%s221 + $0x169] sm:$0xff]
        %v3808 = vld [vmem:[%s221 + $0x171] sm:$0xff]
        %v3809 = vld [vmem:[%s221 + $0x179] sm:$0xff]
        %v3810 = vld [vmem:[%s221 + $0x181] sm:$0xff]
        %v3811 = vld [vmem:[%s221 + $0x189] sm:$0xff]
        %v3812 = vld [vmem:[%s221 + $0x191] sm:$0xff]
        %v3813 = vld [vmem:[%s221 + $0x199] sm:$0xff]
        %v3814 = vld [vmem:[%s221 + $0x1a1] sm:$0xff]
        %v3815 = vld [vmem:[%s221 + $0x1a9] sm:$0xff]
        %v3816 = vld [vmem:[%s221 + $0x1b1] sm:$0xff]
        %v3817 = vld [vmem:[%s221 + $0x1b9] sm:$0xff]
        %v3818 = vld [vmem:[%s221 + $0x1c1] sm:$0xff]
        %v3819 = vld [vmem:[%s221 + $0x1c9] sm:$0xff]
        %v3820 = vld [vmem:[%s221 + $0x1d1] sm:$0xff]
        %v3821 = vld [vmem:[%s221 + $0x1d9] sm:$0xff]
        %v3822 = vld [vmem:[%s221 + $0x1e1] sm:$0xff]
        %v3823 = vpack.c.bf16 %v3770, %v3769
        %v3824 = vpack.c.bf16 %v3772, %v3771
        %v3825 = vpack.c.bf16 %v3774, %v3773
        %v3826 = vpack.c.bf16 %v3776, %v3775
        %v3827 = vpack.c.bf16 %v3778, %v3777
        %v3828 = vpack.c.bf16 %v3780, %v3779
        %v3829 = vpack.c.bf16 %v3782, %v3781
        %v3830 = vpack.c.bf16 %v3784, %v3783
        %v3831 = vpack.c.bf16 %v3786, %v3785
        %v3832 = vpack.c.bf16 %v3788, %v3787
        %v3833 = vpack.c.bf16 %v3790, %v3789
        %v3834 = vpack.c.bf16 %v3792, %v3791
        %v3835 = vpack.c.bf16 %v3794, %v3793
        %v3836 = vpack.c.bf16 %v3796, %v3795
        %v3837 = vpack.c.bf16 %v3798, %v3797
        %v3838 = vpack.c.bf16 %v3800, %v3799
        %v3839 = vpack.c.bf16 %v3802, %v3801
        %v3840 = vpack.c.bf16 %v3804, %v3803
        %v3841 = vpack.c.bf16 %v3806, %v3805
        %v3842 = vpack.c.bf16 %v3808, %v3807
        %v3843 = vpack.c.bf16 %v3810, %v3809
        %v3844 = vpack.c.bf16 %v3812, %v3811
        %v3845 = vpack.c.bf16 %v3814, %v3813
        %v3846 = vpack.c.bf16 %v3816, %v3815
        %v3847 = vpack.c.bf16 %v3818, %v3817
        %v3848 = vpack.c.bf16 %v3820, %v3819
        %v3849 = vpack.c.bf16 %v3822, %v3821
        %s3850 = scalar_lea.vmem [#allocation6], 512
        %v3851 = vld [vmem:[%s3850] sm:$0xf]
        %v3852 = vld [vmem:[%s3850 + $0x4] sm:$0xf]
        %v3853 = vld [vmem:[%s3850 + $0x8] sm:$0xf]
        %v3854 = vld [vmem:[%s3850 + $0xc] sm:$0xf]
        %v3855 = vld [vmem:[%s3850 + $0x10] sm:$0xf]
        %v3856 = vld [vmem:[%s3850 + $0x14] sm:$0xf]
        %v3857 = vld [vmem:[%s3850 + $0x18] sm:$0xf]
        %v3858 = vld [vmem:[%s3850 + $0x1c] sm:$0xf]
        %v3859 = vld [vmem:[%s3850 + $0x20] sm:$0xf]
        %v3860 = vld [vmem:[%s3850 + $0x24] sm:$0xf]
        %v3861 = vld [vmem:[%s3850 + $0x28] sm:$0xf]
        %v3862 = vld [vmem:[%s3850 + $0x2c] sm:$0xf]
        %v3863 = vld [vmem:[%s3850 + $0x30] sm:$0xf]
        %v3864 = vld [vmem:[%s3850 + $0x34] sm:$0xf]
        %v3865 = vld [vmem:[%s3850 + $0x38] sm:$0xf]
        %v3866 = vld [vmem:[%s3850 + $0x3c] sm:$0xf]
        %v3883 = vunpack.c.l.b16 %v3851
        %v3884 = vunpack.c.l.b16 %v3852
        %v3885 = vunpack.c.l.b16 %v3853
        %v3886 = vunpack.c.l.b16 %v3854
        %v3887 = vunpack.c.l.b16 %v3855
        %v3888 = vunpack.c.l.b16 %v3856
        %v3889 = vunpack.c.l.b16 %v3857
        %v3890 = vunpack.c.l.b16 %v3858
        %v3891 = vunpack.c.l.b16 %v3859
        %v3892 = vunpack.c.l.b16 %v3860
        %v3893 = vunpack.c.l.b16 %v3861
        %v3894 = vunpack.c.l.b16 %v3862
        %v3895 = vunpack.c.l.b16 %v3863
        %v3896 = vunpack.c.l.b16 %v3864
        %v3897 = vunpack.c.l.b16 %v3865
        %v3898 = vunpack.c.l.b16 %v3866
        %v3899 = vpack.c.b16 %v3884, %v3883
        %v3900 = vpack.c.b16 %v3886, %v3885
        %v3901 = vpack.c.b16 %v3888, %v3887
        %v3902 = vpack.c.b16 %v3890, %v3889
        %v3903 = vpack.c.b16 %v3892, %v3891
        %v3904 = vpack.c.b16 %v3894, %v3893
        %v3905 = vpack.c.b16 %v3896, %v3895
        %v3906 = vpack.c.b16 %v3898, %v3897
        %3915 = vmatpush.bf16.msra.mxu0 %v3906
        %3916 = vmatpush.bf16.msra.mxu0 %v3905
        %3917 = vmatpush.bf16.msra.mxu0 %v3904
        %3918 = vmatpush.bf16.msra.mxu0 %v3903
        %3919 = vmatpush.bf16.msra.mxu0 %v3902
        %3920 = vmatpush.bf16.msra.mxu0 %v3901
        %3921 = vmatpush.bf16.msra.mxu0 %v3900
        %3922 = vmatpush.bf16.msra.mxu0 %v3899
        %3923 = vmatmul.bf16.gmra.mxu0 %v3823
        %v3924 = vpop.f32.mrf.mxu0
        %v3925 = vadd.f32 0.0, %v3924
        %v3926 = vpop.f32.mrf.mxu0
        %v3927 = vadd.f32 0.0, %v3926
        %3928 = vmatmul.bf16.gmra.mxu0 %v3824
        %v3929 = vpop.f32.mrf.mxu0
        %v3930 = vadd.f32 0.0, %v3929
        %v3931 = vpop.f32.mrf.mxu0
        %v3932 = vadd.f32 0.0, %v3931
        %3933 = vmatmul.bf16.gmra.mxu0 %v3825
        %v3934 = vpop.f32.mrf.mxu0
        %v3935 = vadd.f32 0.0, %v3934
        %v3936 = vpop.f32.mrf.mxu0
        %v3937 = vadd.f32 0.0, %v3936
        %3938 = vmatmul.bf16.gmra.mxu0 %v3826
        %v3939 = vpop.f32.mrf.mxu0
        %v3940 = vadd.f32 0.0, %v3939
        %v3941 = vpop.f32.mrf.mxu0
        %v3942 = vadd.f32 0.0, %v3941
        %3943 = vmatmul.bf16.gmra.mxu0 %v3827
        %v3944 = vpop.f32.mrf.mxu0
        %v3945 = vadd.f32 0.0, %v3944
        %v3946 = vpop.f32.mrf.mxu0
        %v3947 = vadd.f32 0.0, %v3946
        %3948 = vmatmul.bf16.gmra.mxu0 %v3828
        %v3949 = vpop.f32.mrf.mxu0
        %v3950 = vadd.f32 0.0, %v3949
        %v3951 = vpop.f32.mrf.mxu0
        %v3952 = vadd.f32 0.0, %v3951
        %3953 = vmatmul.bf16.gmra.mxu0 %v3829
        %v3954 = vpop.f32.mrf.mxu0
        %v3955 = vadd.f32 0.0, %v3954
        %v3956 = vpop.f32.mrf.mxu0
        %v3957 = vadd.f32 0.0, %v3956
        %3958 = vmatmul.bf16.gmra.mxu0 %v3830
        %v3959 = vpop.f32.mrf.mxu0
        %v3960 = vadd.f32 0.0, %v3959
        %v3961 = vpop.f32.mrf.mxu0
        %v3962 = vadd.f32 0.0, %v3961
        %3963 = vmatmul.bf16.gmra.mxu0 %v3831
        %v3964 = vpop.f32.mrf.mxu0
        %v3965 = vadd.f32 0.0, %v3964
        %v3966 = vpop.f32.mrf.mxu0
        %v3967 = vadd.f32 0.0, %v3966
        %3968 = vmatmul.bf16.gmra.mxu0 %v3832
        %v3969 = vpop.f32.mrf.mxu0
        %v3970 = vadd.f32 0.0, %v3969
        %v3971 = vpop.f32.mrf.mxu0
        %v3972 = vadd.f32 0.0, %v3971
        %3973 = vmatmul.bf16.gmra.mxu0 %v3833
        %v3974 = vpop.f32.mrf.mxu0
        %v3975 = vadd.f32 0.0, %v3974
        %v3976 = vpop.f32.mrf.mxu0
        %v3977 = vadd.f32 0.0, %v3976
        %3978 = vmatmul.bf16.gmra.mxu0 %v3834
        %v3979 = vpop.f32.mrf.mxu0
        %v3980 = vadd.f32 0.0, %v3979
        %v3981 = vpop.f32.mrf.mxu0
        %v3982 = vadd.f32 0.0, %v3981
        %3983 = vmatmul.bf16.gmra.mxu0 %v3835
        %v3984 = vpop.f32.mrf.mxu0
        %v3985 = vadd.f32 0.0, %v3984
        %v3986 = vpop.f32.mrf.mxu0
        %v3987 = vadd.f32 0.0, %v3986
        %3988 = vmatmul.bf16.gmra.mxu0 %v3836
        %v3989 = vpop.f32.mrf.mxu0
        %v3990 = vadd.f32 0.0, %v3989
        %v3991 = vpop.f32.mrf.mxu0
        %v3992 = vadd.f32 0.0, %v3991
        %3993 = vmatmul.bf16.gmra.mxu0 %v3837
        %v3994 = vpop.f32.mrf.mxu0
        %v3995 = vadd.f32 0.0, %v3994
        %v3996 = vpop.f32.mrf.mxu0
        %v3997 = vadd.f32 0.0, %v3996
        %3998 = vmatmul.bf16.gmra.mxu0 %v3838
        %v3999 = vpop.f32.mrf.mxu0
        %v4000 = vadd.f32 0.0, %v3999
        %v4001 = vpop.f32.mrf.mxu0
        %v4002 = vadd.f32 0.0, %v4001
        %4003 = vmatmul.bf16.gmra.mxu0 %v3839
        %v4004 = vpop.f32.mrf.mxu0
        %v4005 = vadd.f32 0.0, %v4004
        %v4006 = vpop.f32.mrf.mxu0
        %v4007 = vadd.f32 0.0, %v4006
        %4008 = vmatmul.bf16.gmra.mxu0 %v3840
        %v4009 = vpop.f32.mrf.mxu0
        %v4010 = vadd.f32 0.0, %v4009
        %v4011 = vpop.f32.mrf.mxu0
        %v4012 = vadd.f32 0.0, %v4011
        %4013 = vmatmul.bf16.gmra.mxu0 %v3841
        %v4014 = vpop.f32.mrf.mxu0
        %v4015 = vadd.f32 0.0, %v4014
        %v4016 = vpop.f32.mrf.mxu0
        %v4017 = vadd.f32 0.0, %v4016
        %4018 = vmatmul.bf16.gmra.mxu0 %v3842
        %v4019 = vpop.f32.mrf.mxu0
        %v4020 = vadd.f32 0.0, %v4019
        %v4021 = vpop.f32.mrf.mxu0
        %v4022 = vadd.f32 0.0, %v4021
        %4023 = vmatmul.bf16.gmra.mxu0 %v3843
        %v4024 = vpop.f32.mrf.mxu0
        %v4025 = vadd.f32 0.0, %v4024
        %v4026 = vpop.f32.mrf.mxu0
        %v4027 = vadd.f32 0.0, %v4026
        %4028 = vmatmul.bf16.gmra.mxu0 %v3844
        %v4029 = vpop.f32.mrf.mxu0
        %v4030 = vadd.f32 0.0, %v4029
        %v4031 = vpop.f32.mrf.mxu0
        %v4032 = vadd.f32 0.0, %v4031
        %4033 = vmatmul.bf16.gmra.mxu0 %v3845
        %v4034 = vpop.f32.mrf.mxu0
        %v4035 = vadd.f32 0.0, %v4034
        %v4036 = vpop.f32.mrf.mxu0
        %v4037 = vadd.f32 0.0, %v4036
        %4038 = vmatmul.bf16.gmra.mxu0 %v3846
        %v4039 = vpop.f32.mrf.mxu0
        %v4040 = vadd.f32 0.0, %v4039
        %v4041 = vpop.f32.mrf.mxu0
        %v4042 = vadd.f32 0.0, %v4041
        %4043 = vmatmul.bf16.gmra.mxu0 %v3847
        %v4044 = vpop.f32.mrf.mxu0
        %v4045 = vadd.f32 0.0, %v4044
        %v4046 = vpop.f32.mrf.mxu0
        %v4047 = vadd.f32 0.0, %v4046
        %4048 = vmatmul.bf16.gmra.mxu0 %v3848
        %v4049 = vpop.f32.mrf.mxu0
        %v4050 = vadd.f32 0.0, %v4049
        %v4051 = vpop.f32.mrf.mxu0
        %v4052 = vadd.f32 0.0, %v4051
        %4053 = vmatmul.bf16.gmra.mxu0 %v3849
        %v4054 = vpop.f32.mrf.mxu0
        %v4055 = vadd.f32 0.0, %v4054
        %v4056 = vpop.f32.mrf.mxu0
        %v4057 = vadd.f32 0.0, %v4056
        %4058 = vdwg.mxu0
        %v4059 = vld [vmem:[#allocation2] sm:$0xff]
        %v4060 = vld [vmem:[#allocation2 + $0x8] sm:$0xff]
        %v4061 = vld [vmem:[#allocation2 + $0x10] sm:$0xff]
        %v4062 = vld [vmem:[#allocation2 + $0x18] sm:$0xff]
        %v4063 = vld [vmem:[#allocation2 + $0x20] sm:$0xff]
        %v4064 = vld [vmem:[#allocation2 + $0x28] sm:$0xff]
        %v4065 = vld [vmem:[#allocation2 + $0x30] sm:$0xff]
        %v4066 = vld [vmem:[#allocation2 + $0x38] sm:$0xff]
        %v4067 = vld [vmem:[#allocation2 + $0x40] sm:$0xff]
        %v4068 = vld [vmem:[#allocation2 + $0x48] sm:$0xff]
        %v4069 = vld [vmem:[#allocation2 + $0x50] sm:$0xff]
        %v4070 = vld [vmem:[#allocation2 + $0x58] sm:$0xff]
        %v4071 = vld [vmem:[#allocation2 + $0x60] sm:$0xff]
        %v4072 = vld [vmem:[#allocation2 + $0x68] sm:$0xff]
        %v4073 = vld [vmem:[#allocation2 + $0x70] sm:$0xff]
        %v4074 = vld [vmem:[#allocation2 + $0x78] sm:$0xff]
        %v4075 = vld [vmem:[#allocation2 + $0x80] sm:$0xff]
        %v4076 = vld [vmem:[#allocation2 + $0x88] sm:$0xff]
        %v4077 = vld [vmem:[#allocation2 + $0x90] sm:$0xff]
        %v4078 = vld [vmem:[#allocation2 + $0x98] sm:$0xff]
        %v4079 = vld [vmem:[#allocation2 + $0xa0] sm:$0xff]
        %v4080 = vld [vmem:[#allocation2 + $0xa8] sm:$0xff]
        %v4081 = vld [vmem:[#allocation2 + $0xb0] sm:$0xff]
        %v4082 = vld [vmem:[#allocation2 + $0xb8] sm:$0xff]
        %v4083 = vld [vmem:[#allocation2 + $0xc0] sm:$0xff]
        %v4084 = vld [vmem:[#allocation2 + $0xc8] sm:$0xff]
        %v4085 = vld [vmem:[#allocation2 + $0xd0] sm:$0xff]
        %v4086 = vld [vmem:[#allocation2 + $0xd8] sm:$0xff]
        %v4087 = vld [vmem:[#allocation2 + $0xe0] sm:$0xff]
        %v4088 = vld [vmem:[#allocation2 + $0xe8] sm:$0xff]
        %v4089 = vld [vmem:[#allocation2 + $0xf0] sm:$0xff]
        %v4090 = vld [vmem:[#allocation2 + $0xf8] sm:$0xff]
        %v4091 = vld [vmem:[#allocation2 + $0x100] sm:$0xff]
        %v4092 = vld [vmem:[#allocation2 + $0x108] sm:$0xff]
        %v4093 = vld [vmem:[#allocation2 + $0x110] sm:$0xff]
        %v4094 = vld [vmem:[#allocation2 + $0x118] sm:$0xff]
        %v4095 = vld [vmem:[#allocation2 + $0x120] sm:$0xff]
        %v4096 = vld [vmem:[#allocation2 + $0x128] sm:$0xff]
        %v4097 = vld [vmem:[#allocation2 + $0x130] sm:$0xff]
        %v4098 = vld [vmem:[#allocation2 + $0x138] sm:$0xff]
        %v4099 = vld [vmem:[#allocation2 + $0x140] sm:$0xff]
        %v4100 = vld [vmem:[#allocation2 + $0x148] sm:$0xff]
        %v4101 = vld [vmem:[#allocation2 + $0x150] sm:$0xff]
        %v4102 = vld [vmem:[#allocation2 + $0x158] sm:$0xff]
        %v4103 = vld [vmem:[#allocation2 + $0x160] sm:$0xff]
        %v4104 = vld [vmem:[#allocation2 + $0x168] sm:$0xff]
        %v4105 = vld [vmem:[#allocation2 + $0x170] sm:$0xff]
        %v4106 = vld [vmem:[#allocation2 + $0x178] sm:$0xff]
        %v4107 = vld [vmem:[#allocation2 + $0x180] sm:$0xff]
        %v4108 = vld [vmem:[#allocation2 + $0x188] sm:$0xff]
        %v4109 = vld [vmem:[#allocation2 + $0x190] sm:$0xff]
        %v4110 = vld [vmem:[#allocation2 + $0x198] sm:$0xff]
        %v4111 = vld [vmem:[#allocation2 + $0x1a0] sm:$0xff]
        %v4112 = vld [vmem:[#allocation2 + $0x1a8] sm:$0xff]
        %v4113 = vadd.f32 %v4059, %v3925
        %v4114 = vadd.f32 %v4060, %v3927
        %v4115 = vadd.f32 %v4061, %v3930
        %v4116 = vadd.f32 %v4062, %v3932
        %v4117 = vadd.f32 %v4063, %v3935
        %v4118 = vadd.f32 %v4064, %v3937
        %v4119 = vadd.f32 %v4065, %v3940
        %v4120 = vadd.f32 %v4066, %v3942
        %v4121 = vadd.f32 %v4067, %v3945
        %v4122 = vadd.f32 %v4068, %v3947
        %v4123 = vadd.f32 %v4069, %v3950
        %v4124 = vadd.f32 %v4070, %v3952
        %v4125 = vadd.f32 %v4071, %v3955
        %v4126 = vadd.f32 %v4072, %v3957
        %v4127 = vadd.f32 %v4073, %v3960
        %v4128 = vadd.f32 %v4074, %v3962
        %v4129 = vadd.f32 %v4075, %v3965
        %v4130 = vadd.f32 %v4076, %v3967
        %v4131 = vadd.f32 %v4077, %v3970
        %v4132 = vadd.f32 %v4078, %v3972
        %v4133 = vadd.f32 %v4079, %v3975
        %v4134 = vadd.f32 %v4080, %v3977
        %v4135 = vadd.f32 %v4081, %v3980
        %v4136 = vadd.f32 %v4082, %v3982
        %v4137 = vadd.f32 %v4083, %v3985
        %v4138 = vadd.f32 %v4084, %v3987
        %v4139 = vadd.f32 %v4085, %v3990
        %v4140 = vadd.f32 %v4086, %v3992
        %v4141 = vadd.f32 %v4087, %v3995
        %v4142 = vadd.f32 %v4088, %v3997
        %v4143 = vadd.f32 %v4089, %v4000
        %v4144 = vadd.f32 %v4090, %v4002
        %v4145 = vadd.f32 %v4091, %v4005
        %v4146 = vadd.f32 %v4092, %v4007
        %v4147 = vadd.f32 %v4093, %v4010
        %v4148 = vadd.f32 %v4094, %v4012
        %v4149 = vadd.f32 %v4095, %v4015
        %v4150 = vadd.f32 %v4096, %v4017
        %v4151 = vadd.f32 %v4097, %v4020
        %v4152 = vadd.f32 %v4098, %v4022
        %v4153 = vadd.f32 %v4099, %v4025
        %v4154 = vadd.f32 %v4100, %v4027
        %v4155 = vadd.f32 %v4101, %v4030
        %v4156 = vadd.f32 %v4102, %v4032
        %v4157 = vadd.f32 %v4103, %v4035
        %v4158 = vadd.f32 %v4104, %v4037
        %v4159 = vadd.f32 %v4105, %v4040
        %v4160 = vadd.f32 %v4106, %v4042
        %v4161 = vadd.f32 %v4107, %v4045
        %v4162 = vadd.f32 %v4108, %v4047
        %v4163 = vadd.f32 %v4109, %v4050
        %v4164 = vadd.f32 %v4110, %v4052
        %v4165 = vadd.f32 %v4111, %v4055
        %v4166 = vadd.f32 %v4112, %v4057
        %4167 = vst [vmem:[#allocation2] sm:$0xff] %v4113
        %4168 = vst [vmem:[#allocation2 + $0x8] sm:$0xff] %v4114
        %4169 = vst [vmem:[#allocation2 + $0x10] sm:$0xff] %v4115
        %4170 = vst [vmem:[#allocation2 + $0x18] sm:$0xff] %v4116
        %4171 = vst [vmem:[#allocation2 + $0x20] sm:$0xff] %v4117
        %4172 = vst [vmem:[#allocation2 + $0x28] sm:$0xff] %v4118
        %4173 = vst [vmem:[#allocation2 + $0x30] sm:$0xff] %v4119
        %4174 = vst [vmem:[#allocation2 + $0x38] sm:$0xff] %v4120
        %4175 = vst [vmem:[#allocation2 + $0x40] sm:$0xff] %v4121
        %4176 = vst [vmem:[#allocation2 + $0x48] sm:$0xff] %v4122
        %4177 = vst [vmem:[#allocation2 + $0x50] sm:$0xff] %v4123
        %4178 = vst [vmem:[#allocation2 + $0x58] sm:$0xff] %v4124
        %4179 = vst [vmem:[#allocation2 + $0x60] sm:$0xff] %v4125
        %4180 = vst [vmem:[#allocation2 + $0x68] sm:$0xff] %v4126
        %4181 = vst [vmem:[#allocation2 + $0x70] sm:$0xff] %v4127
        %4182 = vst [vmem:[#allocation2 + $0x78] sm:$0xff] %v4128
        %4183 = vst [vmem:[#allocation2 + $0x80] sm:$0xff] %v4129
        %4184 = vst [vmem:[#allocation2 + $0x88] sm:$0xff] %v4130
        %4185 = vst [vmem:[#allocation2 + $0x90] sm:$0xff] %v4131
        %4186 = vst [vmem:[#allocation2 + $0x98] sm:$0xff] %v4132
        %4187 = vst [vmem:[#allocation2 + $0xa0] sm:$0xff] %v4133
        %4188 = vst [vmem:[#allocation2 + $0xa8] sm:$0xff] %v4134
        %4189 = vst [vmem:[#allocation2 + $0xb0] sm:$0xff] %v4135
        %4190 = vst [vmem:[#allocation2 + $0xb8] sm:$0xff] %v4136
        %4191 = vst [vmem:[#allocation2 + $0xc0] sm:$0xff] %v4137
        %4192 = vst [vmem:[#allocation2 + $0xc8] sm:$0xff] %v4138
        %4193 = vst [vmem:[#allocation2 + $0xd0] sm:$0xff] %v4139
        %4194 = vst [vmem:[#allocation2 + $0xd8] sm:$0xff] %v4140
        %4195 = vst [vmem:[#allocation2 + $0xe0] sm:$0xff] %v4141
        %4196 = vst [vmem:[#allocation2 + $0xe8] sm:$0xff] %v4142
        %4197 = vst [vmem:[#allocation2 + $0xf0] sm:$0xff] %v4143
        %4198 = vst [vmem:[#allocation2 + $0xf8] sm:$0xff] %v4144
        %4199 = vst [vmem:[#allocation2 + $0x100] sm:$0xff] %v4145
        %4200 = vst [vmem:[#allocation2 + $0x108] sm:$0xff] %v4146
        %4201 = vst [vmem:[#allocation2 + $0x110] sm:$0xff] %v4147
        %4202 = vst [vmem:[#allocation2 + $0x118] sm:$0xff] %v4148
        %4203 = vst [vmem:[#allocation2 + $0x120] sm:$0xff] %v4149
        %4204 = vst [vmem:[#allocation2 + $0x128] sm:$0xff] %v4150
        %4205 = vst [vmem:[#allocation2 + $0x130] sm:$0xff] %v4151
        %4206 = vst [vmem:[#allocation2 + $0x138] sm:$0xff] %v4152
        %4207 = vst [vmem:[#allocation2 + $0x140] sm:$0xff] %v4153
        %4208 = vst [vmem:[#allocation2 + $0x148] sm:$0xff] %v4154
        %4209 = vst [vmem:[#allocation2 + $0x150] sm:$0xff] %v4155
        %4210 = vst [vmem:[#allocation2 + $0x158] sm:$0xff] %v4156
        %4211 = vst [vmem:[#allocation2 + $0x160] sm:$0xff] %v4157
        %4212 = vst [vmem:[#allocation2 + $0x168] sm:$0xff] %v4158
        %4213 = vst [vmem:[#allocation2 + $0x170] sm:$0xff] %v4159
        %4214 = vst [vmem:[#allocation2 + $0x178] sm:$0xff] %v4160
        %4215 = vst [vmem:[#allocation2 + $0x180] sm:$0xff] %v4161
        %4216 = vst [vmem:[#allocation2 + $0x188] sm:$0xff] %v4162
        %4217 = vst [vmem:[#allocation2 + $0x190] sm:$0xff] %v4163
        %4218 = vst [vmem:[#allocation2 + $0x198] sm:$0xff] %v4164
        %4219 = vst [vmem:[#allocation2 + $0x1a0] sm:$0xff] %v4165
        %4220 = vst [vmem:[#allocation2 + $0x1a8] sm:$0xff] %v4166
        %v4221 = vld [vmem:[#allocation2] sm:$0xff]
        %v4222 = vld [vmem:[#allocation2 + $0x8] sm:$0xff]
        %v4223 = vld [vmem:[#allocation2 + $0x10] sm:$0xff]
        %v4224 = vld [vmem:[#allocation2 + $0x18] sm:$0xff]
        %v4225 = vld [vmem:[#allocation2 + $0x20] sm:$0xff]
        %v4226 = vld [vmem:[#allocation2 + $0x28] sm:$0xff]
        %v4227 = vld [vmem:[#allocation2 + $0x30] sm:$0xff]
        %v4228 = vld [vmem:[#allocation2 + $0x38] sm:$0xff]
        %v4229 = vld [vmem:[#allocation2 + $0x40] sm:$0xff]
        %v4230 = vld [vmem:[#allocation2 + $0x48] sm:$0xff]
        %v4231 = vld [vmem:[#allocation2 + $0x50] sm:$0xff]
        %v4232 = vld [vmem:[#allocation2 + $0x58] sm:$0xff]
        %v4233 = vld [vmem:[#allocation2 + $0x60] sm:$0xff]
        %v4234 = vld [vmem:[#allocation2 + $0x68] sm:$0xff]
        %v4235 = vld [vmem:[#allocation2 + $0x70] sm:$0xff]
        %v4236 = vld [vmem:[#allocation2 + $0x78] sm:$0xff]
        %v4237 = vld [vmem:[#allocation2 + $0x80] sm:$0xff]
        %v4238 = vld [vmem:[#allocation2 + $0x88] sm:$0xff]
        %v4239 = vld [vmem:[#allocation2 + $0x90] sm:$0xff]
        %v4240 = vld [vmem:[#allocation2 + $0x98] sm:$0xff]
        %v4241 = vld [vmem:[#allocation2 + $0xa0] sm:$0xff]
        %v4242 = vld [vmem:[#allocation2 + $0xa8] sm:$0xff]
        %v4243 = vld [vmem:[#allocation2 + $0xb0] sm:$0xff]
        %v4244 = vld [vmem:[#allocation2 + $0xb8] sm:$0xff]
        %v4245 = vld [vmem:[#allocation2 + $0xc0] sm:$0xff]
        %v4246 = vld [vmem:[#allocation2 + $0xc8] sm:$0xff]
        %v4247 = vld [vmem:[#allocation2 + $0xd0] sm:$0xff]
        %v4248 = vld [vmem:[#allocation2 + $0xd8] sm:$0xff]
        %v4249 = vld [vmem:[#allocation2 + $0xe0] sm:$0xff]
        %v4250 = vld [vmem:[#allocation2 + $0xe8] sm:$0xff]
        %v4251 = vld [vmem:[#allocation2 + $0xf0] sm:$0xff]
        %v4252 = vld [vmem:[#allocation2 + $0xf8] sm:$0xff]
        %v4253 = vld [vmem:[#allocation2 + $0x100] sm:$0xff]
        %v4254 = vld [vmem:[#allocation2 + $0x108] sm:$0xff]
        %v4255 = vld [vmem:[#allocation2 + $0x110] sm:$0xff]
        %v4256 = vld [vmem:[#allocation2 + $0x118] sm:$0xff]
        %v4257 = vld [vmem:[#allocation2 + $0x120] sm:$0xff]
        %v4258 = vld [vmem:[#allocation2 + $0x128] sm:$0xff]
        %v4259 = vld [vmem:[#allocation2 + $0x130] sm:$0xff]
        %v4260 = vld [vmem:[#allocation2 + $0x138] sm:$0xff]
        %v4261 = vld [vmem:[#allocation2 + $0x140] sm:$0xff]
        %v4262 = vld [vmem:[#allocation2 + $0x148] sm:$0xff]
        %v4263 = vld [vmem:[#allocation2 + $0x150] sm:$0xff]
        %v4264 = vld [vmem:[#allocation2 + $0x158] sm:$0xff]
        %v4265 = vld [vmem:[#allocation2 + $0x160] sm:$0xff]
        %v4266 = vld [vmem:[#allocation2 + $0x168] sm:$0xff]
        %v4267 = vld [vmem:[#allocation2 + $0x170] sm:$0xff]
        %v4268 = vld [vmem:[#allocation2 + $0x178] sm:$0xff]
        %v4269 = vld [vmem:[#allocation2 + $0x180] sm:$0xff]
        %v4270 = vld [vmem:[#allocation2 + $0x188] sm:$0xff]
        %v4271 = vld [vmem:[#allocation2 + $0x190] sm:$0xff]
        %v4272 = vld [vmem:[#allocation2 + $0x198] sm:$0xff]
        %v4273 = vld [vmem:[#allocation2 + $0x1a0] sm:$0xff]
        %v4274 = vld [vmem:[#allocation2 + $0x1a8] sm:$0xff]
        %v4275 = vld [vmem:[#allocation8] sm:$0xff]
        %v4276 = vld [vmem:[#allocation8 + $0x8] sm:$0xff]
        %v4277 = vld [vmem:[#allocation8 + $0x10] sm:$0xff]
        %v4278 = vld [vmem:[#allocation8 + $0x18] sm:$0xff]
        %v4279 = vld [vmem:[#allocation8 + $0x20] sm:$0xff]
        %v4280 = vld [vmem:[#allocation8 + $0x28] sm:$0xff]
        %v4281 = vld [vmem:[#allocation8 + $0x30] sm:$0xff]
        %v4282 = vld [vmem:[#allocation8 + $0x38] sm:$0xff]
        %v4283 = vld [vmem:[#allocation8 + $0x40] sm:$0xff]
        %v4284 = vld [vmem:[#allocation8 + $0x48] sm:$0xff]
        %v4285 = vld [vmem:[#allocation8 + $0x50] sm:$0xff]
        %v4286 = vld [vmem:[#allocation8 + $0x58] sm:$0xff]
        %v4287 = vld [vmem:[#allocation8 + $0x60] sm:$0xff]
        %v4288 = vld [vmem:[#allocation8 + $0x68] sm:$0xff]
        %v4289 = vld [vmem:[#allocation8 + $0x70] sm:$0xff]
        %v4290 = vld [vmem:[#allocation8 + $0x78] sm:$0xff]
        %v4291 = vld [vmem:[#allocation8 + $0x80] sm:$0xff]
        %v4292 = vld [vmem:[#allocation8 + $0x88] sm:$0xff]
        %v4293 = vld [vmem:[#allocation8 + $0x90] sm:$0xff]
        %v4294 = vld [vmem:[#allocation8 + $0x98] sm:$0xff]
        %v4295 = vld [vmem:[#allocation8 + $0xa0] sm:$0xff]
        %v4296 = vld [vmem:[#allocation8 + $0xa8] sm:$0xff]
        %v4297 = vld [vmem:[#allocation8 + $0xb0] sm:$0xff]
        %v4298 = vld [vmem:[#allocation8 + $0xb8] sm:$0xff]
        %v4299 = vld [vmem:[#allocation8 + $0xc0] sm:$0xff]
        %v4300 = vld [vmem:[#allocation8 + $0xc8] sm:$0xff]
        %v4301 = vld [vmem:[#allocation8 + $0xd0] sm:$0xff]
        %v4302 = vld [vmem:[#allocation8 + $0xd8] sm:$0xff]
        %v4303 = vld [vmem:[#allocation8 + $0xe0] sm:$0xff]
        %v4304 = vld [vmem:[#allocation8 + $0xe8] sm:$0xff]
        %v4305 = vld [vmem:[#allocation8 + $0xf0] sm:$0xff]
        %v4306 = vld [vmem:[#allocation8 + $0xf8] sm:$0xff]
        %v4307 = vld [vmem:[#allocation8 + $0x100] sm:$0xff]
        %v4308 = vld [vmem:[#allocation8 + $0x108] sm:$0xff]
        %v4309 = vld [vmem:[#allocation8 + $0x110] sm:$0xff]
        %v4310 = vld [vmem:[#allocation8 + $0x118] sm:$0xff]
        %v4311 = vld [vmem:[#allocation8 + $0x120] sm:$0xff]
        %v4312 = vld [vmem:[#allocation8 + $0x128] sm:$0xff]
        %v4313 = vld [vmem:[#allocation8 + $0x130] sm:$0xff]
        %v4314 = vld [vmem:[#allocation8 + $0x138] sm:$0xff]
        %v4315 = vld [vmem:[#allocation8 + $0x140] sm:$0xff]
        %v4316 = vld [vmem:[#allocation8 + $0x148] sm:$0xff]
        %v4317 = vld [vmem:[#allocation8 + $0x150] sm:$0xff]
        %v4318 = vld [vmem:[#allocation8 + $0x158] sm:$0xff]
        %v4319 = vld [vmem:[#allocation8 + $0x160] sm:$0xff]
        %v4320 = vld [vmem:[#allocation8 + $0x168] sm:$0xff]
        %v4321 = vld [vmem:[#allocation8 + $0x170] sm:$0xff]
        %v4322 = vld [vmem:[#allocation8 + $0x178] sm:$0xff]
        %v4323 = vld [vmem:[#allocation8 + $0x180] sm:$0xff]
        %v4324 = vld [vmem:[#allocation8 + $0x188] sm:$0xff]
        %v4325 = vld [vmem:[#allocation8 + $0x190] sm:$0xff]
        %v4326 = vld [vmem:[#allocation8 + $0x198] sm:$0xff]
        %v4327 = vld [vmem:[#allocation8 + $0x1a0] sm:$0xff]
        %v4328 = vld [vmem:[#allocation8 + $0x1a8] sm:$0xff]
        %v4329 = vmul.f32 %v4221, %v4275
        %v4330 = vmul.f32 %v4222, %v4276
        %v4331 = vmul.f32 %v4223, %v4277
        %v4332 = vmul.f32 %v4224, %v4278
        %v4333 = vmul.f32 %v4225, %v4279
        %v4334 = vmul.f32 %v4226, %v4280
        %v4335 = vmul.f32 %v4227, %v4281
        %v4336 = vmul.f32 %v4228, %v4282
        %v4337 = vmul.f32 %v4229, %v4283
        %v4338 = vmul.f32 %v4230, %v4284
        %v4339 = vmul.f32 %v4231, %v4285
        %v4340 = vmul.f32 %v4232, %v4286
        %v4341 = vmul.f32 %v4233, %v4287
        %v4342 = vmul.f32 %v4234, %v4288
        %v4343 = vmul.f32 %v4235, %v4289
        %v4344 = vmul.f32 %v4236, %v4290
        %v4345 = vmul.f32 %v4237, %v4291
        %v4346 = vmul.f32 %v4238, %v4292
        %v4347 = vmul.f32 %v4239, %v4293
        %v4348 = vmul.f32 %v4240, %v4294
        %v4349 = vmul.f32 %v4241, %v4295
        %v4350 = vmul.f32 %v4242, %v4296
        %v4351 = vmul.f32 %v4243, %v4297
        %v4352 = vmul.f32 %v4244, %v4298
        %v4353 = vmul.f32 %v4245, %v4299
        %v4354 = vmul.f32 %v4246, %v4300
        %v4355 = vmul.f32 %v4247, %v4301
        %v4356 = vmul.f32 %v4248, %v4302
        %v4357 = vmul.f32 %v4249, %v4303
        %v4358 = vmul.f32 %v4250, %v4304
        %v4359 = vmul.f32 %v4251, %v4305
        %v4360 = vmul.f32 %v4252, %v4306
        %v4361 = vmul.f32 %v4253, %v4307
        %v4362 = vmul.f32 %v4254, %v4308
        %v4363 = vmul.f32 %v4255, %v4309
        %v4364 = vmul.f32 %v4256, %v4310
        %v4365 = vmul.f32 %v4257, %v4311
        %v4366 = vmul.f32 %v4258, %v4312
        %v4367 = vmul.f32 %v4259, %v4313
        %v4368 = vmul.f32 %v4260, %v4314
        %v4369 = vmul.f32 %v4261, %v4315
        %v4370 = vmul.f32 %v4262, %v4316
        %v4371 = vmul.f32 %v4263, %v4317
        %v4372 = vmul.f32 %v4264, %v4318
        %v4373 = vmul.f32 %v4265, %v4319
        %v4374 = vmul.f32 %v4266, %v4320
        %v4375 = vmul.f32 %v4267, %v4321
        %v4376 = vmul.f32 %v4268, %v4322
        %v4377 = vmul.f32 %v4269, %v4323
        %v4378 = vmul.f32 %v4270, %v4324
        %v4379 = vmul.f32 %v4271, %v4325
        %v4380 = vmul.f32 %v4272, %v4326
        %v4381 = vmul.f32 %v4273, %v4327
        %v4382 = vmul.f32 %v4274, %v4328
        %v4383 = vpack.c.bf16 %v4329, %v4329
        %v4384 = vpack.c.bf16 %v4330, %v4330
        %v4385 = vpack.c.bf16 %v4331, %v4331
        %v4386 = vpack.c.bf16 %v4332, %v4332
        %v4387 = vpack.c.bf16 %v4333, %v4333
        %v4388 = vpack.c.bf16 %v4334, %v4334
        %v4389 = vpack.c.bf16 %v4335, %v4335
        %v4390 = vpack.c.bf16 %v4336, %v4336
        %v4391 = vpack.c.bf16 %v4337, %v4337
        %v4392 = vpack.c.bf16 %v4338, %v4338
        %v4393 = vpack.c.bf16 %v4339, %v4339
        %v4394 = vpack.c.bf16 %v4340, %v4340
        %v4395 = vpack.c.bf16 %v4341, %v4341
        %v4396 = vpack.c.bf16 %v4342, %v4342
        %v4397 = vpack.c.bf16 %v4343, %v4343
        %v4398 = vpack.c.bf16 %v4344, %v4344
        %v4399 = vpack.c.bf16 %v4345, %v4345
        %v4400 = vpack.c.bf16 %v4346, %v4346
        %v4401 = vpack.c.bf16 %v4347, %v4347
        %v4402 = vpack.c.bf16 %v4348, %v4348
        %v4403 = vpack.c.bf16 %v4349, %v4349
        %v4404 = vpack.c.bf16 %v4350, %v4350
        %v4405 = vpack.c.bf16 %v4351, %v4351
        %v4406 = vpack.c.bf16 %v4352, %v4352
        %v4407 = vpack.c.bf16 %v4353, %v4353
        %v4408 = vpack.c.bf16 %v4354, %v4354
        %v4409 = vpack.c.bf16 %v4355, %v4355
        %v4410 = vpack.c.bf16 %v4356, %v4356
        %v4411 = vpack.c.bf16 %v4357, %v4357
        %v4412 = vpack.c.bf16 %v4358, %v4358
        %v4413 = vpack.c.bf16 %v4359, %v4359
        %v4414 = vpack.c.bf16 %v4360, %v4360
        %v4415 = vpack.c.bf16 %v4361, %v4361
        %v4416 = vpack.c.bf16 %v4362, %v4362
        %v4417 = vpack.c.bf16 %v4363, %v4363
        %v4418 = vpack.c.bf16 %v4364, %v4364
        %v4419 = vpack.c.bf16 %v4365, %v4365
        %v4420 = vpack.c.bf16 %v4366, %v4366
        %v4421 = vpack.c.bf16 %v4367, %v4367
        %v4422 = vpack.c.bf16 %v4368, %v4368
        %v4423 = vpack.c.bf16 %v4369, %v4369
        %v4424 = vpack.c.bf16 %v4370, %v4370
        %v4425 = vpack.c.bf16 %v4371, %v4371
        %v4426 = vpack.c.bf16 %v4372, %v4372
        %v4427 = vpack.c.bf16 %v4373, %v4373
        %v4428 = vpack.c.bf16 %v4374, %v4374
        %v4429 = vpack.c.bf16 %v4375, %v4375
        %v4430 = vpack.c.bf16 %v4376, %v4376
        %v4431 = vpack.c.bf16 %v4377, %v4377
        %v4432 = vpack.c.bf16 %v4378, %v4378
        %v4433 = vpack.c.bf16 %v4379, %v4379
        %v4434 = vpack.c.bf16 %v4380, %v4380
        %v4435 = vpack.c.bf16 %v4381, %v4381
        %v4436 = vpack.c.bf16 %v4382, %v4382
        %4437 = vst [vmem:[%s254] sm:$0xf] %v4383
        %4438 = vst [vmem:[%s254 + $0x4] sm:$0xf] %v4384
        %4439 = vst [vmem:[%s254 + $0x8] sm:$0xf] %v4385
        %4440 = vst [vmem:[%s254 + $0xc] sm:$0xf] %v4386
        %4441 = vst [vmem:[%s254 + $0x10] sm:$0xf] %v4387
        %4442 = vst [vmem:[%s254 + $0x14] sm:$0xf] %v4388
        %4443 = vst [vmem:[%s254 + $0x18] sm:$0xf] %v4389
        %4444 = vst [vmem:[%s254 + $0x1c] sm:$0xf] %v4390
        %4445 = vst [vmem:[%s254 + $0x20] sm:$0xf] %v4391
        %4446 = vst [vmem:[%s254 + $0x24] sm:$0xf] %v4392
        %4447 = vst [vmem:[%s254 + $0x28] sm:$0xf] %v4393
        %4448 = vst [vmem:[%s254 + $0x2c] sm:$0xf] %v4394
        %4449 = vst [vmem:[%s254 + $0x30] sm:$0xf] %v4395
        %4450 = vst [vmem:[%s254 + $0x34] sm:$0xf] %v4396
        %4451 = vst [vmem:[%s254 + $0x38] sm:$0xf] %v4397
        %4452 = vst [vmem:[%s254 + $0x3c] sm:$0xf] %v4398
        %4453 = vst [vmem:[%s254 + $0x40] sm:$0xf] %v4399
        %4454 = vst [vmem:[%s254 + $0x44] sm:$0xf] %v4400
        %4455 = vst [vmem:[%s254 + $0x48] sm:$0xf] %v4401
        %4456 = vst [vmem:[%s254 + $0x4c] sm:$0xf] %v4402
        %4457 = vst [vmem:[%s254 + $0x50] sm:$0xf] %v4403
        %4458 = vst [vmem:[%s254 + $0x54] sm:$0xf] %v4404
        %4459 = vst [vmem:[%s254 + $0x58] sm:$0xf] %v4405
        %4460 = vst [vmem:[%s254 + $0x5c] sm:$0xf] %v4406
        %4461 = vst [vmem:[%s254 + $0x60] sm:$0xf] %v4407
        %4462 = vst [vmem:[%s254 + $0x64] sm:$0xf] %v4408
        %4463 = vst [vmem:[%s254 + $0x68] sm:$0xf] %v4409
        %4464 = vst [vmem:[%s254 + $0x6c] sm:$0xf] %v4410
        %4465 = vst [vmem:[%s254 + $0x70] sm:$0xf] %v4411
        %4466 = vst [vmem:[%s254 + $0x74] sm:$0xf] %v4412
        %4467 = vst [vmem:[%s254 + $0x78] sm:$0xf] %v4413
        %4468 = vst [vmem:[%s254 + $0x7c] sm:$0xf] %v4414
        %4469 = vst [vmem:[%s254 + $0x80] sm:$0xf] %v4415
        %4470 = vst [vmem:[%s254 + $0x84] sm:$0xf] %v4416
        %4471 = vst [vmem:[%s254 + $0x88] sm:$0xf] %v4417
        %4472 = vst [vmem:[%s254 + $0x8c] sm:$0xf] %v4418
        %4473 = vst [vmem:[%s254 + $0x90] sm:$0xf] %v4419
        %4474 = vst [vmem:[%s254 + $0x94] sm:$0xf] %v4420
        %4475 = vst [vmem:[%s254 + $0x98] sm:$0xf] %v4421
        %4476 = vst [vmem:[%s254 + $0x9c] sm:$0xf] %v4422
        %4477 = vst [vmem:[%s254 + $0xa0] sm:$0xf] %v4423
        %4478 = vst [vmem:[%s254 + $0xa4] sm:$0xf] %v4424
        %4479 = vst [vmem:[%s254 + $0xa8] sm:$0xf] %v4425
        %4480 = vst [vmem:[%s254 + $0xac] sm:$0xf] %v4426
        %4481 = vst [vmem:[%s254 + $0xb0] sm:$0xf] %v4427
        %4482 = vst [vmem:[%s254 + $0xb4] sm:$0xf] %v4428
        %4483 = vst [vmem:[%s254 + $0xb8] sm:$0xf] %v4429
        %4484 = vst [vmem:[%s254 + $0xbc] sm:$0xf] %v4430
        %4485 = vst [vmem:[%s254 + $0xc0] sm:$0xf] %v4431
        %4486 = vst [vmem:[%s254 + $0xc4] sm:$0xf] %v4432
        %4487 = vst [vmem:[%s254 + $0xc8] sm:$0xf] %v4433
        %4488 = vst [vmem:[%s254 + $0xcc] sm:$0xf] %v4434
        %4489 = vst [vmem:[%s254 + $0xd0] sm:$0xf] %v4435
        %4490 = vst [vmem:[%s254 + $0xd4] sm:$0xf] %v4436
        %v4491 = vadd.f32 %v4329, %v4330
        %v4492 = vadd.f32 %v4491, %v4331
        %v4493 = vadd.f32 %v4492, %v4332
        %v4494 = vadd.f32 %v4493, %v4333
        %v4495 = vadd.f32 %v4494, %v4334
        %v4496 = vadd.f32 %v4495, %v4335
        %v4497 = vadd.f32 %v4496, %v4336
        %v4498 = vadd.f32 %v4497, %v4337
        %v4499 = vadd.f32 %v4498, %v4338
        %v4500 = vadd.f32 %v4499, %v4339
        %v4501 = vadd.f32 %v4500, %v4340
        %v4502 = vadd.f32 %v4501, %v4341
        %v4503 = vadd.f32 %v4502, %v4342
        %v4504 = vadd.f32 %v4503, %v4343
        %v4505 = vadd.f32 %v4504, %v4344
        %v4506 = vadd.f32 %v4505, %v4345
        %v4507 = vadd.f32 %v4506, %v4346
        %v4508 = vadd.f32 %v4507, %v4347
        %v4509 = vadd.f32 %v4508, %v4348
        %v4510 = vadd.f32 %v4509, %v4349
        %v4511 = vadd.f32 %v4510, %v4350
        %v4512 = vadd.f32 %v4511, %v4351
        %v4513 = vadd.f32 %v4512, %v4352
        %v4514 = vadd.f32 %v4513, %v4353
        %v4515 = vadd.f32 %v4514, %v4354
        %v4516 = vadd.f32 %v4515, %v4355
        %v4517 = vadd.f32 %v4516, %v4356
        %v4518 = vadd.f32 %v4517, %v4357
        %v4519 = vadd.f32 %v4518, %v4358
        %v4520 = vadd.f32 %v4519, %v4359
        %v4521 = vadd.f32 %v4520, %v4360
        %v4522 = vadd.f32 %v4521, %v4361
        %v4523 = vadd.f32 %v4522, %v4362
        %v4524 = vadd.f32 %v4523, %v4363
        %v4525 = vadd.f32 %v4524, %v4364
        %v4526 = vadd.f32 %v4525, %v4365
        %v4527 = vadd.f32 %v4526, %v4366
        %v4528 = vadd.f32 %v4527, %v4367
        %v4529 = vadd.f32 %v4528, %v4368
        %v4530 = vadd.f32 %v4529, %v4369
        %v4531 = vadd.f32 %v4530, %v4370
        %v4532 = vadd.f32 %v4531, %v4371
        %v4533 = vadd.f32 %v4532, %v4372
        %v4534 = vadd.f32 %v4533, %v4373
        %v4535 = vadd.f32 %v4534, %v4374
        %v4536 = vadd.f32 %v4535, %v4375
        %v4537 = vadd.f32 %v4536, %v4376
        %v4538 = vadd.f32 %v4537, %v4377
        %v4539 = vadd.f32 %v4538, %v4378
        %v4540 = vadd.f32 %v4539, %v4379
        %v4541 = vadd.f32 %v4540, %v4380
        %v4542 = vadd.f32 %v4541, %v4381
        %v4543 = vadd.f32 %v4542, %v4382
        %v4544 = vrot.slane %v4543, 4
        %v4545 = vadd.f32 %v4543, %v4544
        %v4546 = vrot.slane %v4545, 2
        %v4547 = vadd.f32 %v4545, %v4546
        %v4548 = vrot.slane %v4547, 1
        %v4549 = vadd.f32 %v4547, %v4548
        %4550 = vst [vmem:[%s261] sm:$0x1] %v4549
        %v4551 = vmul.f32 %v4329, %v4329
        %v4552 = vmul.f32 %v4330, %v4330
        %v4553 = vmul.f32 %v4331, %v4331
        %v4554 = vmul.f32 %v4332, %v4332
        %v4555 = vmul.f32 %v4333, %v4333
        %v4556 = vmul.f32 %v4334, %v4334
        %v4557 = vmul.f32 %v4335, %v4335
        %v4558 = vmul.f32 %v4336, %v4336
        %v4559 = vmul.f32 %v4337, %v4337
        %v4560 = vmul.f32 %v4338, %v4338
        %v4561 = vmul.f32 %v4339, %v4339
        %v4562 = vmul.f32 %v4340, %v4340
        %v4563 = vmul.f32 %v4341, %v4341
        %v4564 = vmul.f32 %v4342, %v4342
        %v4565 = vmul.f32 %v4343, %v4343
        %v4566 = vmul.f32 %v4344, %v4344
        %v4567 = vmul.f32 %v4345, %v4345
        %v4568 = vmul.f32 %v4346, %v4346
        %v4569 = vmul.f32 %v4347, %v4347
        %v4570 = vmul.f32 %v4348, %v4348
        %v4571 = vmul.f32 %v4349, %v4349
        %v4572 = vmul.f32 %v4350, %v4350
        %v4573 = vmul.f32 %v4351, %v4351
        %v4574 = vmul.f32 %v4352, %v4352
        %v4575 = vmul.f32 %v4353, %v4353
        %v4576 = vmul.f32 %v4354, %v4354
        %v4577 = vmul.f32 %v4355, %v4355
        %v4578 = vmul.f32 %v4356, %v4356
        %v4579 = vmul.f32 %v4357, %v4357
        %v4580 = vmul.f32 %v4358, %v4358
        %v4581 = vmul.f32 %v4359, %v4359
        %v4582 = vmul.f32 %v4360, %v4360
        %v4583 = vmul.f32 %v4361, %v4361
        %v4584 = vmul.f32 %v4362, %v4362
        %v4585 = vmul.f32 %v4363, %v4363
        %v4586 = vmul.f32 %v4364, %v4364
        %v4587 = vmul.f32 %v4365, %v4365
        %v4588 = vmul.f32 %v4366, %v4366
        %v4589 = vmul.f32 %v4367, %v4367
        %v4590 = vmul.f32 %v4368, %v4368
        %v4591 = vmul.f32 %v4369, %v4369
        %v4592 = vmul.f32 %v4370, %v4370
        %v4593 = vmul.f32 %v4371, %v4371
        %v4594 = vmul.f32 %v4372, %v4372
        %v4595 = vmul.f32 %v4373, %v4373
        %v4596 = vmul.f32 %v4374, %v4374
        %v4597 = vmul.f32 %v4375, %v4375
        %v4598 = vmul.f32 %v4376, %v4376
        %v4599 = vmul.f32 %v4377, %v4377
        %v4600 = vmul.f32 %v4378, %v4378
        %v4601 = vmul.f32 %v4379, %v4379
        %v4602 = vmul.f32 %v4380, %v4380
        %v4603 = vmul.f32 %v4381, %v4381
        %v4604 = vmul.f32 %v4382, %v4382
        %v4605 = vadd.f32 %v4551, %v4552
        %v4606 = vadd.f32 %v4605, %v4553
        %v4607 = vadd.f32 %v4606, %v4554
        %v4608 = vadd.f32 %v4607, %v4555
        %v4609 = vadd.f32 %v4608, %v4556
        %v4610 = vadd.f32 %v4609, %v4557
        %v4611 = vadd.f32 %v4610, %v4558
        %v4612 = vadd.f32 %v4611, %v4559
        %v4613 = vadd.f32 %v4612, %v4560
        %v4614 = vadd.f32 %v4613, %v4561
        %v4615 = vadd.f32 %v4614, %v4562
        %v4616 = vadd.f32 %v4615, %v4563
        %v4617 = vadd.f32 %v4616, %v4564
        %v4618 = vadd.f32 %v4617, %v4565
        %v4619 = vadd.f32 %v4618, %v4566
        %v4620 = vadd.f32 %v4619, %v4567
        %v4621 = vadd.f32 %v4620, %v4568
        %v4622 = vadd.f32 %v4621, %v4569
        %v4623 = vadd.f32 %v4622, %v4570
        %v4624 = vadd.f32 %v4623, %v4571
        %v4625 = vadd.f32 %v4624, %v4572
        %v4626 = vadd.f32 %v4625, %v4573
        %v4627 = vadd.f32 %v4626, %v4574
        %v4628 = vadd.f32 %v4627, %v4575
        %v4629 = vadd.f32 %v4628, %v4576
        %v4630 = vadd.f32 %v4629, %v4577
        %v4631 = vadd.f32 %v4630, %v4578
        %v4632 = vadd.f32 %v4631, %v4579
        %v4633 = vadd.f32 %v4632, %v4580
        %v4634 = vadd.f32 %v4633, %v4581
        %v4635 = vadd.f32 %v4634, %v4582
        %v4636 = vadd.f32 %v4635, %v4583
        %v4637 = vadd.f32 %v4636, %v4584
        %v4638 = vadd.f32 %v4637, %v4585
        %v4639 = vadd.f32 %v4638, %v4586
        %v4640 = vadd.f32 %v4639, %v4587
        %v4641 = vadd.f32 %v4640, %v4588
        %v4642 = vadd.f32 %v4641, %v4589
        %v4643 = vadd.f32 %v4642, %v4590
        %v4644 = vadd.f32 %v4643, %v4591
        %v4645 = vadd.f32 %v4644, %v4592
        %v4646 = vadd.f32 %v4645, %v4593
        %v4647 = vadd.f32 %v4646, %v4594
        %v4648 = vadd.f32 %v4647, %v4595
        %v4649 = vadd.f32 %v4648, %v4596
        %v4650 = vadd.f32 %v4649, %v4597
        %v4651 = vadd.f32 %v4650, %v4598
        %v4652 = vadd.f32 %v4651, %v4599
        %v4653 = vadd.f32 %v4652, %v4600
        %v4654 = vadd.f32 %v4653, %v4601
        %v4655 = vadd.f32 %v4654, %v4602
        %v4656 = vadd.f32 %v4655, %v4603
        %v4657 = vadd.f32 %v4656, %v4604
        %v4658 = vrot.slane %v4657, 4
        %v4659 = vadd.f32 %v4657, %v4658
        %v4660 = vrot.slane %v4659, 2
        %v4661 = vadd.f32 %v4659, %v4660
        %v4662 = vrot.slane %v4661, 1
        %v4663 = vadd.f32 %v4661, %v4662
        %4664 = vst [vmem:[%s261 + $0x1] sm:$0x1] %v4663
        %s4665 = sand.u32 %s102, 1
        %s4666 = scalar_lea.sflag [#allocation5], %s4665
        %s4667 = sand.u32 %s102, 1
        %s4668 = smul.addr %s4667, 216
        %s4669 = scalar_lea.vmem [#allocation9], %s4668
        %s4670 = sand.u32 %s128, 1
        %s4671 = scalar_lea.sflag [#allocation11], %s4670
        %s4672 = sand.u32 %s128, 1
        %s4673 = smul.addr %s4672, 2
        %s4674 = scalar_lea.vmem [#allocation10], %s4673
        // Predicated region
        $region45: #{tpu_custom_call.1} parent=31 // pred_check
          %p4675 = pneg %p112
        $region46: #{tpu_custom_call.1} parent=31 // pred_check_branch
          %4677 = sbr.rel (%p4675) target = $region48
        $region47: #{tpu_custom_call.1} parent=31 // pred_region
          %4679 = vsyncadd %s4666, 0
          %s4680 = smul.addr %s26, 54
          %s4681 = smul.addr %s4680, 4
          %s4682 = scalar_lea.hbm %s3, %s4681
          %s4683 = sshll.u32 %s4669, 4
          %s4684 = int_to_ptr.vmem [resolvable:$true] %s4683
          %s4685 = sshll.u32 %s4682, 4
          %s4686 = int_to_ptr.hbm [resolvable:$true] %s4685
          %4691 = dma.vmem_to_hbm [thread:$0]  %s4684, 3456, %s4686, %s4666, 64, 64, 4
        $region48: #{tpu_custom_call.1} parent=31 // pred_fallthru
          _
        // Predicated region
        $region49: #{tpu_custom_call.1} parent=31 // pred_check
          %p4692 = pneg %p138
        $region50: #{tpu_custom_call.1} parent=31 // pred_check_branch
          %4694 = sbr.rel (%p4692) target = $region52
        $region51: #{tpu_custom_call.1} parent=31 // pred_region
          %4696 = vsyncadd %s4671, 0
          %s4697 = smul.addr %s26, 2
          %s4698 = scalar_lea.hbm %s4, %s4697
          %s4700 = sshll.u32 %s4674, 4
          %s4701 = int_to_ptr.vmem [resolvable:$true] %s4700
          %s4702 = sshll.u32 %s4698, 4
          %s4703 = int_to_ptr.hbm [resolvable:$true] %s4702
          %4705 = dma.vmem_to_hbm [thread:$0]  %s4701, 32, %s4703, %s4671
        $region52: #{tpu_custom_call.1} parent=31 // pred_fallthru
          _
      $region32: #{tpu_custom_call.1} parent=5 // pred_fallthru
        _
      %p4706 = scmp.le.s32.totalorder 2, %s21
      // Predicated region
      $region53: #{tpu_custom_call.1} parent=5 // pred_check
        %p4707 = pneg %p4706
      $region54: #{tpu_custom_call.1} parent=5 // pred_check_branch
        %4709 = sbr.rel (%p4707) target = $region56
      $region55: #{tpu_custom_call.1} parent=5 // pred_region
        %s4710 = ssub.s32 %s21, 2
        // Predicated region
        $region57: #{tpu_custom_call.1} parent=55 // pred_check
          %p4711 = pneg %p118
        $region58: #{tpu_custom_call.1} parent=55 // pred_check_branch
          %4713 = sbr.rel (%p4711) target = $region60
        $region59: #{tpu_custom_call.1} parent=55 // pred_region
          %s4714 = sand.u32 %s103, 1
          %s4715 = scalar_lea.sflag [#allocation5], %s4714
          %s4716 = sand.u32 %s103, 1
          %s4717 = smul.addr %s4716, 216
          %s4718 = scalar_lea.vmem [#allocation9], %s4717
          %4720 = dma.done %s4715, 3456
        $region60: #{tpu_custom_call.1} parent=55 // pred_fallthru
          _
        // Predicated region
        $region61: #{tpu_custom_call.1} parent=55 // pred_check
          %p4721 = pneg %p144
        $region62: #{tpu_custom_call.1} parent=55 // pred_check_branch
          %4723 = sbr.rel (%p4721) target = $region64
        $region63: #{tpu_custom_call.1} parent=55 // pred_region
          %s4724 = sand.u32 %s129, 1
          %s4725 = scalar_lea.sflag [#allocation11], %s4724
          %s4726 = sand.u32 %s129, 1
          %s4727 = smul.addr %s4726, 2
          %s4728 = scalar_lea.vmem [#allocation10], %s4727
          %4730 = dma.done %s4725, 32
        $region64: #{tpu_custom_call.1} parent=55 // pred_fallthru
          _
      $region56: #{tpu_custom_call.1} parent=5 // pred_fallthru
        _
    $region6: #{tpu_custom_call.1} parent=1 // loop_footer
      %s25 = sadd.s32 1, %s21
    $region7: #{tpu_custom_call.1} parent=1 // loop_footer_branch
      %20 = sbr.rel target = $region3
    $region8: #{tpu_custom_call.1} parent=1 // loop_exit
      _
    %4731 = vsyncpa [#allocation4], 1
    %s4732 = scalar_lea.sflag [#allocation4], 1
    %4733 = vsyncpa %s4732, 1
    %4734 = vsyncpa [#allocation7], 1
    %4735 = vsyncpa [#allocation5], 1
    %s4736 = scalar_lea.sflag [#allocation5], 1
    %4737 = vsyncpa %s4736, 1
    %4738 = vsyncpa [#allocation11], 1
    %s4739 = scalar_lea.sflag [#allocation11], 1
    %4740 = vsyncpa %s4739, 1

</llo_original>
